<compile_context>
chip_gen: v6e
topology: v6e:2x2x1
jax: 0.10.0
libtpu: 0.0.40
codegen_flags: <defaults>
</compile_context>

<pallas_src>
import numpy as np
import jax
import jax.numpy as jnp
from jax.experimental import pallas as pl
from jax.experimental.pallas import tpu as pltpu


# ----------------------------- Pallas kernel --------------------------------

def autoencoder_kernel(x_ref,
                       w1_ref, b1_ref, w2_ref, b2_ref, w3_ref, b3_ref,
                       w4_ref, b4_ref, w5_ref, b5_ref, w6_ref, b6_ref,
                       out_ref, mid_ref):
    """One batch-tile of the full autoencoder forward pass."""
    x = x_ref[...].astype(jnp.float32)                       # (TB, input_size)

    # ---- encoder: Linear(I,1024) Tanh, Linear(1024,512) Tanh, Linear(512,M) Tanh
    h = jnp.tanh(jnp.dot(x, w1_ref[...], preferred_element_type=jnp.float32) + b1_ref[...])
    h = jnp.tanh(jnp.dot(h, w2_ref[...], preferred_element_type=jnp.float32) + b2_ref[...])
    m = jnp.tanh(jnp.dot(h, w3_ref[...], preferred_element_type=jnp.float32) + b3_ref[...])
    mid_ref[...] = m.astype(mid_ref.dtype)                   # (TB, middle_size)

    # ---- decoder: Linear(M,512) Tanh, Linear(512,1024) Tanh, Linear(1024,I)
    h = jnp.tanh(jnp.dot(m, w4_ref[...], preferred_element_type=jnp.float32) + b4_ref[...])
    h = jnp.tanh(jnp.dot(h, w5_ref[...], preferred_element_type=jnp.float32) + b5_ref[...])
    y = jnp.dot(h, w6_ref[...], preferred_element_type=jnp.float32) + b6_ref[...]
    out_ref[...] = y.astype(out_ref.dtype)                   # (TB, input_size)


# ----------------------------- wrapper ---------------------------------------

def autoencoder_forward(params, x, *, max_tile_b=256):
    """x: (B, input_size) -> (reconstruction (B, input_size), middle_x (B, middle_size))."""
    B, I = x.shape
    M = params["w3"].shape[-1]

    # Pad batch up to a multiple of the sublane width (8), then pick the batch
    # tile: the full padded batch when small, otherwise a large MXU-friendly tile.
    Bp8 = pl.cdiv(B, 8) * 8
    tile_b = Bp8 if Bp8 <= max_tile_b else max_tile_b
    Bp = pl.cdiv(Bp8, tile_b) * tile_b
    if Bp != B:
        x = jnp.pad(x, ((0, Bp - B), (0, 0)))

    weights = [params[k] for k in ("w1", "b1", "w2", "b2", "w3", "b3",
                                   "w4", "b4", "w5", "b5", "w6", "b6")]

    def resident_spec(arr):
        nd = arr.ndim
        # Constant index_map -> this operand's block never changes across grid
        # steps, so Pallas DMAs it once and keeps it VMEM-resident.
        return pl.BlockSpec(arr.shape, lambda i, _nd=nd: (0,) * _nd)

    grid = (Bp // tile_b,)
    out, mid = pl.pallas_call(
        autoencoder_kernel,
        grid=grid,
        in_specs=[pl.BlockSpec((tile_b, I), lambda i: (i, 0))]
                 + [resident_spec(a) for a in weights],
        out_specs=(pl.BlockSpec((tile_b, I), lambda i: (i, 0)),
                   pl.BlockSpec((tile_b, M), lambda i: (i, 0))),
        out_shape=(jax.ShapeDtypeStruct((Bp, I), jnp.float32),
                   jax.ShapeDtypeStruct((Bp, M), jnp.float32)),
        compiler_params=pltpu.CompilerParams(
            dimension_semantics=("parallel",),
            vmem_limit_bytes=48 * 1024 * 1024),
    )(x, *weights)
    return out[:B], mid[:B]


# ----------------------------- parameters ------------------------------------

def init_params(key, input_size, middle_size):
    """PyTorch-Linear-style init: U(-1/sqrt(fan_in), 1/sqrt(fan_in)).
    Weights are stored already transposed as (fan_in, fan_out); biases as (1, fan_out)."""
    dims = [(input_size, 1024), (1024, 512), (512, middle_size),
            (middle_size, 512), (512, 1024), (1024, input_size)]
    keys = jax.random.split(key, 2 * len(dims))
    params = {}
    for n, (fan_in, fan_out) in enumerate(dims, start=1):
        bound = 1.0 / float(np.sqrt(fan_in))
        params[f"w{n}"] = jax.random.uniform(keys[2 * (n - 1)], (fan_in, fan_out),
                                             jnp.float32, -bound, bound)
        params[f"b{n}"] = jax.random.uniform(keys[2 * (n - 1) + 1], (1, fan_out),
                                             jnp.float32, -bound, bound)
    return params


# ----------------------------- pure-JAX reference ----------------------------

def autoencoder_ref(params, x):
    h = jnp.tanh(x @ params["w1"] + params["b1"])
    h = jnp.tanh(h @ params["w2"] + params["b2"])
    m = jnp.tanh(h @ params["w3"] + params["b3"])
    h = jnp.tanh(m @ params["w4"] + params["b4"])
    h = jnp.tanh(h @ params["w5"] + params["b5"])
    y = h @ params["w6"] + params["b6"]
    return y, m


# --------------------------------- main ---------------------------------------

if __name__ == "__main__":
    key = jax.random.PRNGKey(0)
    input_size = 256      # module's input_size
    middle_size = 128     # module's middle_size (lane-dense)
    B = 16                # small batch

    pkey, xkey = jax.random.split(key)
    params = init_params(pkey, input_size, middle_size)
    x = jax.random.normal(xkey, (B, input_size), jnp.float32)

    recon, middle = autoencoder_forward(params, x)
    jax.block_until_ready((recon, middle))

    assert recon.shape == (B, input_size)
    assert middle.shape == (B, middle_size)

    recon_ref, middle_ref = autoencoder_ref(params, x)
    np.testing.assert_allclose(np.asarray(middle), np.asarray(middle_ref), atol=2e-4, rtol=2e-4)
    np.testing.assert_allclose(np.asarray(recon), np.asarray(recon_ref), atol=2e-4, rtol=2e-4)

    print("KERNEL_OK")
</pallas_src>

<mosaic_0001>
module attributes {stable_mosaic.version = 11 : i64} {
  func.func @autoencoder_kernel(%arg0: i32, %arg1: memref<16x256xf32, #tpu.memory_space<vmem>>, %arg2: memref<256x1024xf32, #tpu.memory_space<vmem>>, %arg3: memref<1x1024xf32, #tpu.memory_space<vmem>>, %arg4: memref<1024x512xf32, #tpu.memory_space<vmem>>, %arg5: memref<1x512xf32, #tpu.memory_space<vmem>>, %arg6: memref<512x128xf32, #tpu.memory_space<vmem>>, %arg7: memref<1x128xf32, #tpu.memory_space<vmem>>, %arg8: memref<128x512xf32, #tpu.memory_space<vmem>>, %arg9: memref<1x512xf32, #tpu.memory_space<vmem>>, %arg10: memref<512x1024xf32, #tpu.memory_space<vmem>>, %arg11: memref<1x1024xf32, #tpu.memory_space<vmem>>, %arg12: memref<1024x256xf32, #tpu.memory_space<vmem>>, %arg13: memref<1x256xf32, #tpu.memory_space<vmem>>, %arg14: memref<16x256xf32, #tpu.memory_space<vmem>>, %arg15: memref<16x128xf32, #tpu.memory_space<vmem>>) attributes {dimension_semantics = [#tpu.dimension_semantics<parallel>], iteration_bounds = array<i64: 1>, scalar_prefetch = 0 : i64, scratch_operands = 0 : i64, tpu.core_type = #tpu.core_type<tc>, window_params = [{transform_indices = @transform_0, window_bounds = array<i64: 16, 256>}, {pipeline_mode = #tpu.pipeline_mode<synchronous>, transform_indices = @transform_1, window_bounds = array<i64: 256, 1024>}, {pipeline_mode = #tpu.pipeline_mode<synchronous>, transform_indices = @transform_2, window_bounds = array<i64: 1, 1024>}, {pipeline_mode = #tpu.pipeline_mode<synchronous>, transform_indices = @transform_3, window_bounds = array<i64: 1024, 512>}, {pipeline_mode = #tpu.pipeline_mode<synchronous>, transform_indices = @transform_4, window_bounds = array<i64: 1, 512>}, {pipeline_mode = #tpu.pipeline_mode<synchronous>, transform_indices = @transform_5, window_bounds = array<i64: 512, 128>}, {pipeline_mode = #tpu.pipeline_mode<synchronous>, transform_indices = @transform_6, window_bounds = array<i64: 1, 128>}, {pipeline_mode = #tpu.pipeline_mode<synchronous>, transform_indices = @transform_7, window_bounds = array<i64: 128, 512>}, {pipeline_mode = #tpu.pipeline_mode<synchronous>, transform_indices = @transform_8, window_bounds = array<i64: 1, 512>}, {pipeline_mode = #tpu.pipeline_mode<synchronous>, transform_indices = @transform_9, window_bounds = array<i64: 512, 1024>}, {pipeline_mode = #tpu.pipeline_mode<synchronous>, transform_indices = @transform_10, window_bounds = array<i64: 1, 1024>}, {pipeline_mode = #tpu.pipeline_mode<synchronous>, transform_indices = @transform_11, window_bounds = array<i64: 1024, 256>}, {pipeline_mode = #tpu.pipeline_mode<synchronous>, transform_indices = @transform_12, window_bounds = array<i64: 1, 256>}, {transform_indices = @transform_13, window_bounds = array<i64: 16, 256>}, {transform_indices = @transform_14, window_bounds = array<i64: 16, 128>}]} {
    %c0 = arith.constant 0 : index
    %c0_0 = arith.constant 0 : index
    %0 = vector.load %arg1[%c0, %c0_0] : memref<16x256xf32, #tpu.memory_space<vmem>>, vector<16x256xf32>
    %c0_1 = arith.constant 0 : index
    %c0_2 = arith.constant 0 : index
    %1 = vector.load %arg2[%c0_1, %c0_2] : memref<256x1024xf32, #tpu.memory_space<vmem>>, vector<256x1024xf32>
    %cst = arith.constant dense<0.000000e+00> : vector<16x1024xf32>
    %2 = tpu.matmul %0, %1, %cst {dimension_numbers = #tpu.dot_dimension_numbers<[1], [0], [0], [1], [0, 0, 1, 1], [], []>} : vector<16x256xf32>, vector<256x1024xf32>, vector<16x1024xf32> -> vector<16x1024xf32>
    %c0_3 = arith.constant 0 : index
    %c0_4 = arith.constant 0 : index
    %3 = vector.load %arg3[%c0_3, %c0_4] : memref<1x1024xf32, #tpu.memory_space<vmem>>, vector<1x1024xf32>
    %4 = vector.broadcast %3 : vector<1x1024xf32> to vector<16x1024xf32>
    %5 = arith.addf %2, %4 : vector<16x1024xf32>
    %6 = math.tanh %5 : vector<16x1024xf32>
    %c0_5 = arith.constant 0 : index
    %c0_6 = arith.constant 0 : index
    %7 = vector.load %arg4[%c0_5, %c0_6] : memref<1024x512xf32, #tpu.memory_space<vmem>>, vector<1024x512xf32>
    %cst_7 = arith.constant dense<0.000000e+00> : vector<16x512xf32>
    %8 = tpu.matmul %6, %7, %cst_7 {dimension_numbers = #tpu.dot_dimension_numbers<[1], [0], [0], [1], [0, 0, 1, 1], [], []>} : vector<16x1024xf32>, vector<1024x512xf32>, vector<16x512xf32> -> vector<16x512xf32>
    %c0_8 = arith.constant 0 : index
    %c0_9 = arith.constant 0 : index
    %9 = vector.load %arg5[%c0_8, %c0_9] : memref<1x512xf32, #tpu.memory_space<vmem>>, vector<1x512xf32>
    %10 = vector.broadcast %9 : vector<1x512xf32> to vector<16x512xf32>
    %11 = arith.addf %8, %10 : vector<16x512xf32>
    %12 = math.tanh %11 : vector<16x512xf32>
    %c0_10 = arith.constant 0 : index
    %c0_11 = arith.constant 0 : index
    %13 = vector.load %arg6[%c0_10, %c0_11] : memref<512x128xf32, #tpu.memory_space<vmem>>, vector<512x128xf32>
    %cst_12 = arith.constant dense<0.000000e+00> : vector<16x128xf32>
    %14 = tpu.matmul %12, %13, %cst_12 {dimension_numbers = #tpu.dot_dimension_numbers<[1], [0], [0], [1], [0, 0, 1, 1], [], []>} : vector<16x512xf32>, vector<512x128xf32>, vector<16x128xf32> -> vector<16x128xf32>
    %c0_13 = arith.constant 0 : index
    %c0_14 = arith.constant 0 : index
    %15 = vector.load %arg7[%c0_13, %c0_14] : memref<1x128xf32, #tpu.memory_space<vmem>>, vector<1x128xf32>
    %16 = vector.broadcast %15 : vector<1x128xf32> to vector<16x128xf32>
    %17 = arith.addf %14, %16 : vector<16x128xf32>
    %18 = math.tanh %17 : vector<16x128xf32>
    %c0_15 = arith.constant 0 : index
    %c0_16 = arith.constant 0 : index
    %19 = vector.load %arg15[%c0_15, %c0_16] : memref<16x128xf32, #tpu.memory_space<vmem>>, vector<16x128xf32>
    tpu.vector_store %arg15[%c0_15, %c0_16], %18 {strides = array<i32>} : memref<16x128xf32, #tpu.memory_space<vmem>>, vector<16x128xf32>,
    %c0_17 = arith.constant 0 : index
    %c0_18 = arith.constant 0 : index
    %20 = vector.load %arg8[%c0_17, %c0_18] : memref<128x512xf32, #tpu.memory_space<vmem>>, vector<128x512xf32>
    %cst_19 = arith.constant dense<0.000000e+00> : vector<16x512xf32>
    %21 = tpu.matmul %18, %20, %cst_19 {dimension_numbers = #tpu.dot_dimension_numbers<[1], [0], [0], [1], [0, 0, 1, 1], [], []>} : vector<16x128xf32>, vector<128x512xf32>, vector<16x512xf32> -> vector<16x512xf32>
    %c0_20 = arith.constant 0 : index
    %c0_21 = arith.constant 0 : index
    %22 = vector.load %arg9[%c0_20, %c0_21] : memref<1x512xf32, #tpu.memory_space<vmem>>, vector<1x512xf32>
    %23 = vector.broadcast %22 : vector<1x512xf32> to vector<16x512xf32>
    %24 = arith.addf %21, %23 : vector<16x512xf32>
    %25 = math.tanh %24 : vector<16x512xf32>
    %c0_22 = arith.constant 0 : index
    %c0_23 = arith.constant 0 : index
    %26 = vector.load %arg10[%c0_22, %c0_23] : memref<512x1024xf32, #tpu.memory_space<vmem>>, vector<512x1024xf32>
    %cst_24 = arith.constant dense<0.000000e+00> : vector<16x1024xf32>
    %27 = tpu.matmul %25, %26, %cst_24 {dimension_numbers = #tpu.dot_dimension_numbers<[1], [0], [0], [1], [0, 0, 1, 1], [], []>} : vector<16x512xf32>, vector<512x1024xf32>, vector<16x1024xf32> -> vector<16x1024xf32>
    %c0_25 = arith.constant 0 : index
    %c0_26 = arith.constant 0 : index
    %28 = vector.load %arg11[%c0_25, %c0_26] : memref<1x1024xf32, #tpu.memory_space<vmem>>, vector<1x1024xf32>
    %29 = vector.broadcast %28 : vector<1x1024xf32> to vector<16x1024xf32>
    %30 = arith.addf %27, %29 : vector<16x1024xf32>
    %31 = math.tanh %30 : vector<16x1024xf32>
    %c0_27 = arith.constant 0 : index
    %c0_28 = arith.constant 0 : index
    %32 = vector.load %arg12[%c0_27, %c0_28] : memref<1024x256xf32, #tpu.memory_space<vmem>>, vector<1024x256xf32>
    %cst_29 = arith.constant dense<0.000000e+00> : vector<16x256xf32>
    %33 = tpu.matmul %31, %32, %cst_29 {dimension_numbers = #tpu.dot_dimension_numbers<[1], [0], [0], [1], [0, 0, 1, 1], [], []>} : vector<16x1024xf32>, vector<1024x256xf32>, vector<16x256xf32> -> vector<16x256xf32>
    %c0_30 = arith.constant 0 : index
    %c0_31 = arith.constant 0 : index
    %34 = vector.load %arg13[%c0_30, %c0_31] : memref<1x256xf32, #tpu.memory_space<vmem>>, vector<1x256xf32>
    %35 = vector.broadcast %34 : vector<1x256xf32> to vector<16x256xf32>
    %36 = arith.addf %33, %35 : vector<16x256xf32>
    %c0_32 = arith.constant 0 : index
    %c0_33 = arith.constant 0 : index
    %37 = vector.load %arg14[%c0_32, %c0_33] : memref<16x256xf32, #tpu.memory_space<vmem>>, vector<16x256xf32>
    tpu.vector_store %arg14[%c0_32, %c0_33], %36 {strides = array<i32>} : memref<16x256xf32, #tpu.memory_space<vmem>>, vector<16x256xf32>,
    return
  }
  func.func @transform_0(%arg0: i32) -> (i32, i32) {
    %c0_i32 = arith.constant 0 : i32
    %c0_i32_0 = arith.constant 0 : i32
    return %arg0, %c0_i32 : i32, i32
  }
  func.func @transform_1(%arg0: i32) -> (i32, i32) {
    %c0_i32 = arith.constant 0 : i32
    %c0_i32_0 = arith.constant 0 : i32
    %c0_i32_1 = arith.constant 0 : i32
    return %c0_i32, %c0_i32_0 : i32, i32
  }
  func.func @transform_2(%arg0: i32) -> (i32, i32) {
    %c0_i32 = arith.constant 0 : i32
    %c0_i32_0 = arith.constant 0 : i32
    %c0_i32_1 = arith.constant 0 : i32
    return %c0_i32, %c0_i32_0 : i32, i32
  }
  func.func @transform_3(%arg0: i32) -> (i32, i32) {
    %c0_i32 = arith.constant 0 : i32
    %c0_i32_0 = arith.constant 0 : i32
    %c0_i32_1 = arith.constant 0 : i32
    return %c0_i32, %c0_i32_0 : i32, i32
  }
  func.func @transform_4(%arg0: i32) -> (i32, i32) {
    %c0_i32 = arith.constant 0 : i32
    %c0_i32_0 = arith.constant 0 : i32
    %c0_i32_1 = arith.constant 0 : i32
    return %c0_i32, %c0_i32_0 : i32, i32
  }
  func.func @transform_5(%arg0: i32) -> (i32, i32) {
    %c0_i32 = arith.constant 0 : i32
    %c0_i32_0 = arith.constant 0 : i32
    %c0_i32_1 = arith.constant 0 : i32
    return %c0_i32, %c0_i32_0 : i32, i32
  }
  func.func @transform_6(%arg0: i32) -> (i32, i32) {
    %c0_i32 = arith.constant 0 : i32
    %c0_i32_0 = arith.constant 0 : i32
    %c0_i32_1 = arith.constant 0 : i32
    return %c0_i32, %c0_i32_0 : i32, i32
  }
  func.func @transform_7(%arg0: i32) -> (i32, i32) {
    %c0_i32 = arith.constant 0 : i32
    %c0_i32_0 = arith.constant 0 : i32
    %c0_i32_1 = arith.constant 0 : i32
    return %c0_i32, %c0_i32_0 : i32, i32
  }
  func.func @transform_8(%arg0: i32) -> (i32, i32) {
    %c0_i32 = arith.constant 0 : i32
    %c0_i32_0 = arith.constant 0 : i32
    %c0_i32_1 = arith.constant 0 : i32
    return %c0_i32, %c0_i32_0 : i32, i32
  }
  func.func @transform_9(%arg0: i32) -> (i32, i32) {
    %c0_i32 = arith.constant 0 : i32
    %c0_i32_0 = arith.constant 0 : i32
    %c0_i32_1 = arith.constant 0 : i32
    return %c0_i32, %c0_i32_0 : i32, i32
  }
  func.func @transform_10(%arg0: i32) -> (i32, i32) {
    %c0_i32 = arith.constant 0 : i32
    %c0_i32_0 = arith.constant 0 : i32
    %c0_i32_1 = arith.constant 0 : i32
    return %c0_i32, %c0_i32_0 : i32, i32
  }
  func.func @transform_11(%arg0: i32) -> (i32, i32) {
    %c0_i32 = arith.constant 0 : i32
    %c0_i32_0 = arith.constant 0 : i32
    %c0_i32_1 = arith.constant 0 : i32
    return %c0_i32, %c0_i32_0 : i32, i32
  }
  func.func @transform_12(%arg0: i32) -> (i32, i32) {
    %c0_i32 = arith.constant 0 : i32
    %c0_i32_0 = arith.constant 0 : i32
    %c0_i32_1 = arith.constant 0 : i32
    return %c0_i32, %c0_i32_0 : i32, i32
  }
  func.func @transform_13(%arg0: i32) -> (i32, i32) {
    %c0_i32 = arith.constant 0 : i32
    %c0_i32_0 = arith.constant 0 : i32
    return %arg0, %c0_i32 : i32, i32
  }
  func.func @transform_14(%arg0: i32) -> (i32, i32) {
    %c0_i32 = arith.constant 0 : i32
    %c0_i32_0 = arith.constant 0 : i32
    return %arg0, %c0_i32 : i32, i32
  }
}

</mosaic_0001>

<llo_original>
// kernel: tpu_custom_call.1
$region0: #{tpu_custom_call.1}
  #allocation0 [shape = 'u32[]', space=smem, size = 0x4, offset = 0x4, fixed_abs, tag = 'smem constant byte address 0x4 - core index']
  #allocation1 [shape = 'u32[144,128]{1,0:T(1,128)}', space=vmem, size = 0x12000, scoped, tag = 'internal scratch']
  %s0 = inlined_call_operand.hbm [shape: f32[16,256], index: 0, kind: input, shape index: {}]
  %s1 = inlined_call_operand.hbm [shape: f32[256,1024], index: 1, kind: input, shape index: {}]
  %s2 = inlined_call_operand.hbm [shape: f32[1,1024], index: 2, kind: input, shape index: {}]
  %s3 = inlined_call_operand.hbm [shape: f32[1024,512], index: 3, kind: input, shape index: {}]
  %s4 = inlined_call_operand.hbm [shape: f32[1,512], index: 4, kind: input, shape index: {}]
  %s5 = inlined_call_operand.hbm [shape: f32[512,128], index: 5, kind: input, shape index: {}]
  %s6 = inlined_call_operand.hbm [shape: f32[1,128], index: 6, kind: input, shape index: {}]
  %s7 = inlined_call_operand.hbm [shape: f32[128,512], index: 7, kind: input, shape index: {}]
  %s8 = inlined_call_operand.hbm [shape: f32[1,512], index: 8, kind: input, shape index: {}]
  %s9 = inlined_call_operand.hbm [shape: f32[512,1024], index: 9, kind: input, shape index: {}]
  %s10 = inlined_call_operand.hbm [shape: f32[1,1024], index: 10, kind: input, shape index: {}]
  %s11 = inlined_call_operand.hbm [shape: f32[1024,256], index: 11, kind: input, shape index: {}]
  %s12 = inlined_call_operand.hbm [shape: f32[1,256], index: 12, kind: input, shape index: {}]
  %s13 = inlined_call_operand.hbm [shape: f32[16,256], index: 13, kind: output, shape index: {0}]
  %s14 = inlined_call_operand.hbm [shape: f32[16,128], index: 14, kind: output, shape index: {1}]
  %15 = xla_tuple %s13, %s14
  %s16 = sld [smem:[#allocation0]]
  $region122: #{tpu_custom_call.1} parent=0
    _
  %s18 = ssub.s32 1, %s16
  %s19 = scalar_select 0, %s18, %s16
  $region1: #{tpu_custom_call.1} parent=0
    #allocation2 [shape = 'u8[16384]{0}', space=vmem, size = 0x4000, scoped, tag = 'input window, operand 0, single buffered']
    #allocation3 [shape = 's32[1]{0}', space=sflag, size = 0x4, scoped, tag = 'scoped memory for tpu_custom_call.1']
    #allocation4 [shape = 's32[1]{0}', space=sflag, size = 0x4, scoped, tag = 'scoped memory for tpu_custom_call.1']
    #allocation5 [shape = 'u8[1048576]{0}', space=vmem, size = 0x100000, scoped, tag = 'input window, operand 1, single buffered']
    #allocation6 [shape = 's32[1]{0}', space=sflag, size = 0x4, scoped, tag = 'scoped memory for tpu_custom_call.1']
    #allocation7 [shape = 'u8[4096]{0}', space=vmem, size = 0x1000, scoped, tag = 'input window, operand 2, single buffered']
    #allocation8 [shape = 'u8[2097152]{0}', space=vmem, size = 0x200000, scoped, tag = 'input window, operand 3, single buffered']
    #allocation9 [shape = 's32[1]{0}', space=sflag, size = 0x4, scoped, tag = 'scoped memory for tpu_custom_call.1']
    #allocation10 [shape = 'u8[2048]{0}', space=vmem, size = 0x800, scoped, tag = 'input window, operand 4, single buffered']
    #allocation11 [shape = 'u8[262144]{0}', space=vmem, size = 0x40000, scoped, tag = 'input window, operand 5, single buffered']
    #allocation12 [shape = 's32[1]{0}', space=sflag, size = 0x4, scoped, tag = 'scoped memory for tpu_custom_call.1']
    #allocation13 [shape = 'u8[512]{0}', space=vmem, size = 0x400, scoped, tag = 'input window, operand 6, single buffered']
    #allocation14 [shape = 'u8[262144]{0}', space=vmem, size = 0x40000, scoped, tag = 'input window, operand 7, single buffered']
    #allocation15 [shape = 's32[1]{0}', space=sflag, size = 0x4, scoped, tag = 'scoped memory for tpu_custom_call.1']
    #allocation16 [shape = 'u8[2048]{0}', space=vmem, size = 0x800, scoped, tag = 'input window, operand 8, single buffered']
    #allocation17 [shape = 'u8[2097152]{0}', space=vmem, size = 0x200000, scoped, tag = 'input window, operand 9, single buffered']
    #allocation18 [shape = 's32[1]{0}', space=sflag, size = 0x4, scoped, tag = 'scoped memory for tpu_custom_call.1']
    #allocation19 [shape = 'u8[4096]{0}', space=vmem, size = 0x1000, scoped, tag = 'input window, operand 10, single buffered']
    #allocation20 [shape = 'u8[1048576]{0}', space=vmem, size = 0x100000, scoped, tag = 'input window, operand 11, single buffered']
    #allocation21 [shape = 's32[1]{0}', space=sflag, size = 0x4, scoped, tag = 'scoped memory for tpu_custom_call.1']
    #allocation22 [shape = 'u8[1024]{0}', space=vmem, size = 0x400, scoped, tag = 'input window, operand 12, single buffered']
    #allocation23 [shape = 'u8[16384]{0}', space=vmem, size = 0x4000, scoped, tag = 'output window, operand 0, single buffered']
    #allocation24 [shape = 'u8[8192]{0}', space=vmem, size = 0x2000, scoped, tag = 'output window, operand 1, single buffered']
    #allocation25 [shape = 's32[1]{0}', space=sflag, size = 0x4, scoped, tag = 'scoped memory for tpu_custom_call.1']
    %20 = vsyncpa [#allocation3], 0
    %21 = vsyncpa [#allocation6], 0
    %22 = vsyncpa [#allocation9], 0
    %23 = vsyncpa [#allocation12], 0
    %24 = vsyncpa [#allocation15], 0
    %25 = vsyncpa [#allocation18], 0
    %26 = vsyncpa [#allocation21], 0
    %27 = vsyncpa [#allocation4], 0
    %28 = vsyncpa [#allocation25], 0
    // Predicated region
    $region2: #{tpu_custom_call.1} parent=1 // pred_check
      _
    $region3: #{tpu_custom_call.1} parent=1 // pred_check_branch
      %30 = sbr.rel (0) target = $region5
    $region4: #{tpu_custom_call.1} parent=1 // pred_region
      %s32 = ssub.s32 512, 512
      %33 = vsyncadd [#allocation3], %s32
      %s34 = sshll.u32 [#allocation2], 4
      %s35 = int_to_ptr.vmem [resolvable:$true] %s34
      %40 = dma.hbm_to_vmem [thread:$0]  %s0, 512, %s35, [#allocation3], 256, 256, 16
    $region5: #{tpu_custom_call.1} parent=1 // pred_fallthru
      _
    // Predicated region
    $region6: #{tpu_custom_call.1} parent=1 // pred_check
      _
    $region7: #{tpu_custom_call.1} parent=1 // pred_check_branch
      %42 = sbr.rel (0) target = $region9
    $region8: #{tpu_custom_call.1} parent=1 // pred_region
      %s44 = ssub.s32 32768, 32768
      %45 = vsyncadd [#allocation6], %s44
      %s46 = sshll.u32 [#allocation5], 4
      %s47 = int_to_ptr.vmem [resolvable:$true] %s46
      %52 = dma.hbm_to_vmem [thread:$0]  %s1, 32768, %s47, [#allocation6], 1024, 1024, 64
    $region9: #{tpu_custom_call.1} parent=1 // pred_fallthru
      _
    // Predicated region
    $region10: #{tpu_custom_call.1} parent=1 // pred_check
      _
    $region11: #{tpu_custom_call.1} parent=1 // pred_check_branch
      %54 = sbr.rel (0) target = $region13
    $region12: #{tpu_custom_call.1} parent=1 // pred_region
      %s56 = ssub.s32 128, 128
      %57 = vsyncadd [#allocation6], %s56
      %s59 = sshll.u32 [#allocation7], 4
      %s60 = int_to_ptr.vmem [resolvable:$true] %s59
      %62 = dma.hbm_to_vmem [thread:$0]  %s2, 128, %s60, [#allocation6]
    $region13: #{tpu_custom_call.1} parent=1 // pred_fallthru
      _
    // Predicated region
    $region14: #{tpu_custom_call.1} parent=1 // pred_check
      _
    $region15: #{tpu_custom_call.1} parent=1 // pred_check_branch
      %64 = sbr.rel (0) target = $region17
    $region16: #{tpu_custom_call.1} parent=1 // pred_region
      %s66 = ssub.s32 65536, 65536
      %67 = vsyncadd [#allocation9], %s66
      %s68 = sshll.u32 [#allocation8], 4
      %s69 = int_to_ptr.vmem [resolvable:$true] %s68
      %74 = dma.hbm_to_vmem [thread:$0]  %s3, 65536, %s69, [#allocation9], 512, 512, 32
    $region17: #{tpu_custom_call.1} parent=1 // pred_fallthru
      _
    // Predicated region
    $region18: #{tpu_custom_call.1} parent=1 // pred_check
      _
    $region19: #{tpu_custom_call.1} parent=1 // pred_check_branch
      %76 = sbr.rel (0) target = $region21
    $region20: #{tpu_custom_call.1} parent=1 // pred_region
      %s78 = ssub.s32 64, 64
      %79 = vsyncadd [#allocation9], %s78
      %s81 = sshll.u32 [#allocation10], 4
      %s82 = int_to_ptr.vmem [resolvable:$true] %s81
      %84 = dma.hbm_to_vmem [thread:$0]  %s4, 64, %s82, [#allocation9]
    $region21: #{tpu_custom_call.1} parent=1 // pred_fallthru
      _
    // Predicated region
    $region22: #{tpu_custom_call.1} parent=1 // pred_check
      _
    $region23: #{tpu_custom_call.1} parent=1 // pred_check_branch
      %86 = sbr.rel (0) target = $region25
    $region24: #{tpu_custom_call.1} parent=1 // pred_region
      %s88 = ssub.s32 8192, 8192
      %89 = vsyncadd [#allocation12], %s88
      %s90 = sshll.u32 [#allocation11], 4
      %s91 = int_to_ptr.vmem [resolvable:$true] %s90
      %96 = dma.hbm_to_vmem [thread:$0]  %s5, 8192, %s91, [#allocation12], 128, 128, 8
    $region25: #{tpu_custom_call.1} parent=1 // pred_fallthru
      _
    // Predicated region
    $region26: #{tpu_custom_call.1} parent=1 // pred_check
      _
    $region27: #{tpu_custom_call.1} parent=1 // pred_check_branch
      %98 = sbr.rel (0) target = $region29
    $region28: #{tpu_custom_call.1} parent=1 // pred_region
      %s100 = ssub.s32 16, 16
      %101 = vsyncadd [#allocation12], %s100
      %s103 = sshll.u32 [#allocation13], 4
      %s104 = int_to_ptr.vmem [resolvable:$true] %s103
      %106 = dma.hbm_to_vmem [thread:$0]  %s6, 16, %s104, [#allocation12]
    $region29: #{tpu_custom_call.1} parent=1 // pred_fallthru
      _
    // Predicated region
    $region30: #{tpu_custom_call.1} parent=1 // pred_check
      _
    $region31: #{tpu_custom_call.1} parent=1 // pred_check_branch
      %108 = sbr.rel (0) target = $region33
    $region32: #{tpu_custom_call.1} parent=1 // pred_region
      %s110 = ssub.s32 8192, 8192
      %111 = vsyncadd [#allocation15], %s110
      %s112 = sshll.u32 [#allocation14], 4
      %s113 = int_to_ptr.vmem [resolvable:$true] %s112
      %118 = dma.hbm_to_vmem [thread:$0]  %s7, 8192, %s113, [#allocation15], 512, 512, 32
    $region33: #{tpu_custom_call.1} parent=1 // pred_fallthru
      _
    // Predicated region
    $region34: #{tpu_custom_call.1} parent=1 // pred_check
      _
    $region35: #{tpu_custom_call.1} parent=1 // pred_check_branch
      %120 = sbr.rel (0) target = $region37
    $region36: #{tpu_custom_call.1} parent=1 // pred_region
      %s122 = ssub.s32 64, 64
      %123 = vsyncadd [#allocation15], %s122
      %s125 = sshll.u32 [#allocation16], 4
      %s126 = int_to_ptr.vmem [resolvable:$true] %s125
      %128 = dma.hbm_to_vmem [thread:$0]  %s8, 64, %s126, [#allocation15]
    $region37: #{tpu_custom_call.1} parent=1 // pred_fallthru
      _
    // Predicated region
    $region38: #{tpu_custom_call.1} parent=1 // pred_check
      _
    $region39: #{tpu_custom_call.1} parent=1 // pred_check_branch
      %130 = sbr.rel (0) target = $region41
    $region40: #{tpu_custom_call.1} parent=1 // pred_region
      %s132 = ssub.s32 65536, 65536
      %133 = vsyncadd [#allocation18], %s132
      %s134 = sshll.u32 [#allocation17], 4
      %s135 = int_to_ptr.vmem [resolvable:$true] %s134
      %140 = dma.hbm_to_vmem [thread:$0]  %s9, 65536, %s135, [#allocation18], 1024, 1024, 64
    $region41: #{tpu_custom_call.1} parent=1 // pred_fallthru
      _
    // Predicated region
    $region42: #{tpu_custom_call.1} parent=1 // pred_check
      _
    $region43: #{tpu_custom_call.1} parent=1 // pred_check_branch
      %142 = sbr.rel (0) target = $region45
    $region44: #{tpu_custom_call.1} parent=1 // pred_region
      %s144 = ssub.s32 128, 128
      %145 = vsyncadd [#allocation18], %s144
      %s147 = sshll.u32 [#allocation19], 4
      %s148 = int_to_ptr.vmem [resolvable:$true] %s147
      %150 = dma.hbm_to_vmem [thread:$0]  %s10, 128, %s148, [#allocation18]
    $region45: #{tpu_custom_call.1} parent=1 // pred_fallthru
      _
    // Predicated region
    $region46: #{tpu_custom_call.1} parent=1 // pred_check
      _
    $region47: #{tpu_custom_call.1} parent=1 // pred_check_branch
      %152 = sbr.rel (0) target = $region49
    $region48: #{tpu_custom_call.1} parent=1 // pred_region
      %s154 = ssub.s32 32768, 32768
      %155 = vsyncadd [#allocation21], %s154
      %s156 = sshll.u32 [#allocation20], 4
      %s157 = int_to_ptr.vmem [resolvable:$true] %s156
      %162 = dma.hbm_to_vmem [thread:$0]  %s11, 32768, %s157, [#allocation21], 256, 256, 16
    $region49: #{tpu_custom_call.1} parent=1 // pred_fallthru
      _
    // Predicated region
    $region50: #{tpu_custom_call.1} parent=1 // pred_check
      _
    $region51: #{tpu_custom_call.1} parent=1 // pred_check_branch
      %164 = sbr.rel (0) target = $region53
    $region52: #{tpu_custom_call.1} parent=1 // pred_region
      %s166 = ssub.s32 32, 32
      %167 = vsyncadd [#allocation21], %s166
      %s169 = sshll.u32 [#allocation22], 4
      %s170 = int_to_ptr.vmem [resolvable:$true] %s169
      %172 = dma.hbm_to_vmem [thread:$0]  %s12, 32, %s170, [#allocation21]
    $region53: #{tpu_custom_call.1} parent=1 // pred_fallthru
      _
    // Predicated region
    $region54: #{tpu_custom_call.1} parent=1 // pred_check
      _
    $region55: #{tpu_custom_call.1} parent=1 // pred_check_branch
      %174 = sbr.rel (0) target = $region57
    $region56: #{tpu_custom_call.1} parent=1 // pred_region
      %175 = dma.done [#allocation3], 512
    $region57: #{tpu_custom_call.1} parent=1 // pred_fallthru
      _
    // Predicated region
    $region58: #{tpu_custom_call.1} parent=1 // pred_check
      _
    $region59: #{tpu_custom_call.1} parent=1 // pred_check_branch
      %177 = sbr.rel (0) target = $region61
    $region60: #{tpu_custom_call.1} parent=1 // pred_region
      %178 = dma.done [#allocation6], 32768
    $region61: #{tpu_custom_call.1} parent=1 // pred_fallthru
      _
    // Predicated region
    $region62: #{tpu_custom_call.1} parent=1 // pred_check
      _
    $region63: #{tpu_custom_call.1} parent=1 // pred_check_branch
      %180 = sbr.rel (0) target = $region65
    $region64: #{tpu_custom_call.1} parent=1 // pred_region
      %181 = dma.done [#allocation6], 128
    $region65: #{tpu_custom_call.1} parent=1 // pred_fallthru
      _
    // Predicated region
    $region66: #{tpu_custom_call.1} parent=1 // pred_check
      _
    $region67: #{tpu_custom_call.1} parent=1 // pred_check_branch
      %183 = sbr.rel (0) target = $region69
    $region68: #{tpu_custom_call.1} parent=1 // pred_region
      %184 = dma.done [#allocation9], 65536
    $region69: #{tpu_custom_call.1} parent=1 // pred_fallthru
      _
    // Predicated region
    $region70: #{tpu_custom_call.1} parent=1 // pred_check
      _
    $region71: #{tpu_custom_call.1} parent=1 // pred_check_branch
      %186 = sbr.rel (0) target = $region73
    $region72: #{tpu_custom_call.1} parent=1 // pred_region
      %187 = dma.done [#allocation9], 64
    $region73: #{tpu_custom_call.1} parent=1 // pred_fallthru
      _
    // Predicated region
    $region74: #{tpu_custom_call.1} parent=1 // pred_check
      _
    $region75: #{tpu_custom_call.1} parent=1 // pred_check_branch
      %189 = sbr.rel (0) target = $region77
    $region76: #{tpu_custom_call.1} parent=1 // pred_region
      %190 = dma.done [#allocation12], 8192
    $region77: #{tpu_custom_call.1} parent=1 // pred_fallthru
      _
    // Predicated region
    $region78: #{tpu_custom_call.1} parent=1 // pred_check
      _
    $region79: #{tpu_custom_call.1} parent=1 // pred_check_branch
      %192 = sbr.rel (0) target = $region81
    $region80: #{tpu_custom_call.1} parent=1 // pred_region
      %193 = dma.done [#allocation12], 16
    $region81: #{tpu_custom_call.1} parent=1 // pred_fallthru
      _
    // Predicated region
    $region82: #{tpu_custom_call.1} parent=1 // pred_check
      _
    $region83: #{tpu_custom_call.1} parent=1 // pred_check_branch
      %195 = sbr.rel (0) target = $region85
    $region84: #{tpu_custom_call.1} parent=1 // pred_region
      %196 = dma.done [#allocation15], 8192
    $region85: #{tpu_custom_call.1} parent=1 // pred_fallthru
      _
    // Predicated region
    $region86: #{tpu_custom_call.1} parent=1 // pred_check
      _
    $region87: #{tpu_custom_call.1} parent=1 // pred_check_branch
      %198 = sbr.rel (0) target = $region89
    $region88: #{tpu_custom_call.1} parent=1 // pred_region
      %199 = dma.done [#allocation15], 64
    $region89: #{tpu_custom_call.1} parent=1 // pred_fallthru
      _
    // Predicated region
    $region90: #{tpu_custom_call.1} parent=1 // pred_check
      _
    $region91: #{tpu_custom_call.1} parent=1 // pred_check_branch
      %201 = sbr.rel (0) target = $region93
    $region92: #{tpu_custom_call.1} parent=1 // pred_region
      %202 = dma.done [#allocation18], 65536
    $region93: #{tpu_custom_call.1} parent=1 // pred_fallthru
      _
    // Predicated region
    $region94: #{tpu_custom_call.1} parent=1 // pred_check
      _
    $region95: #{tpu_custom_call.1} parent=1 // pred_check_branch
      %204 = sbr.rel (0) target = $region97
    $region96: #{tpu_custom_call.1} parent=1 // pred_region
      %205 = dma.done [#allocation18], 128
    $region97: #{tpu_custom_call.1} parent=1 // pred_fallthru
      _
    // Predicated region
    $region98: #{tpu_custom_call.1} parent=1 // pred_check
      _
    $region99: #{tpu_custom_call.1} parent=1 // pred_check_branch
      %207 = sbr.rel (0) target = $region101
    $region100: #{tpu_custom_call.1} parent=1 // pred_region
      %208 = dma.done [#allocation21], 32768
    $region101: #{tpu_custom_call.1} parent=1 // pred_fallthru
      _
    // Predicated region
    $region102: #{tpu_custom_call.1} parent=1 // pred_check
      _
    $region103: #{tpu_custom_call.1} parent=1 // pred_check_branch
      %210 = sbr.rel (0) target = $region105
    $region104: #{tpu_custom_call.1} parent=1 // pred_region
      %211 = dma.done [#allocation21], 32
    $region105: #{tpu_custom_call.1} parent=1 // pred_fallthru
      _
    %v212 = vld [vmem:[#allocation2] sm:$0xff]
    %v213 = vld [vmem:[#allocation2 + $0x8] sm:$0xff]
    %v214 = vld [vmem:[#allocation2 + $0x10] sm:$0xff]
    %v215 = vld [vmem:[#allocation2 + $0x18] sm:$0xff]
    %v216 = vld [vmem:[#allocation5] sm:$0xff]
    %v217 = vld [vmem:[#allocation5 + $0x8] sm:$0xff]
    %v218 = vld [vmem:[#allocation5 + $0x10] sm:$0xff]
    %v219 = vld [vmem:[#allocation5 + $0x18] sm:$0xff]
    %v220 = vld [vmem:[#allocation5 + $0x20] sm:$0xff]
    %v221 = vld [vmem:[#allocation5 + $0x28] sm:$0xff]
    %v222 = vld [vmem:[#allocation5 + $0x30] sm:$0xff]
    %v223 = vld [vmem:[#allocation5 + $0x38] sm:$0xff]
    %v224 = vld [vmem:[#allocation5 + $0x40] sm:$0xff]
    %v225 = vld [vmem:[#allocation5 + $0x48] sm:$0xff]
    %v226 = vld [vmem:[#allocation5 + $0x50] sm:$0xff]
    %v227 = vld [vmem:[#allocation5 + $0x58] sm:$0xff]
    %v228 = vld [vmem:[#allocation5 + $0x60] sm:$0xff]
    %v229 = vld [vmem:[#allocation5 + $0x68] sm:$0xff]
    %v230 = vld [vmem:[#allocation5 + $0x70] sm:$0xff]
    %v231 = vld [vmem:[#allocation5 + $0x78] sm:$0xff]
    %v232 = vld [vmem:[#allocation5 + $0x80] sm:$0xff]
    %v233 = vld [vmem:[#allocation5 + $0x88] sm:$0xff]
    %v234 = vld [vmem:[#allocation5 + $0x90] sm:$0xff]
    %v235 = vld [vmem:[#allocation5 + $0x98] sm:$0xff]
    %v236 = vld [vmem:[#allocation5 + $0xa0] sm:$0xff]
    %v237 = vld [vmem:[#allocation5 + $0xa8] sm:$0xff]
    %v238 = vld [vmem:[#allocation5 + $0xb0] sm:$0xff]
    %v239 = vld [vmem:[#allocation5 + $0xb8] sm:$0xff]
    %v240 = vld [vmem:[#allocation5 + $0xc0] sm:$0xff]
    %v241 = vld [vmem:[#allocation5 + $0xc8] sm:$0xff]
    %v242 = vld [vmem:[#allocation5 + $0xd0] sm:$0xff]
    %v243 = vld [vmem:[#allocation5 + $0xd8] sm:$0xff]
    %v244 = vld [vmem:[#allocation5 + $0xe0] sm:$0xff]
    %v245 = vld [vmem:[#allocation5 + $0xe8] sm:$0xff]
    %v246 = vld [vmem:[#allocation5 + $0xf0] sm:$0xff]
    %v247 = vld [vmem:[#allocation5 + $0xf8] sm:$0xff]
    %v248 = vld [vmem:[#allocation5 + $0x100] sm:$0xff]
    %v249 = vld [vmem:[#allocation5 + $0x108] sm:$0xff]
    %v250 = vld [vmem:[#allocation5 + $0x110] sm:$0xff]
    %v251 = vld [vmem:[#allocation5 + $0x118] sm:$0xff]
    %v252 = vld [vmem:[#allocation5 + $0x120] sm:$0xff]
    %v253 = vld [vmem:[#allocation5 + $0x128] sm:$0xff]
    %v254 = vld [vmem:[#allocation5 + $0x130] sm:$0xff]
    %v255 = vld [vmem:[#allocation5 + $0x138] sm:$0xff]
    %v256 = vld [vmem:[#allocation5 + $0x140] sm:$0xff]
    %v257 = vld [vmem:[#allocation5 + $0x148] sm:$0xff]
    %v258 = vld [vmem:[#allocation5 + $0x150] sm:$0xff]
    %v259 = vld [vmem:[#allocation5 + $0x158] sm:$0xff]
    %v260 = vld [vmem:[#allocation5 + $0x160] sm:$0xff]
    %v261 = vld [vmem:[#allocation5 + $0x168] sm:$0xff]
    %v262 = vld [vmem:[#allocation5 + $0x170] sm:$0xff]
    %v263 = vld [vmem:[#allocation5 + $0x178] sm:$0xff]
    %v264 = vld [vmem:[#allocation5 + $0x180] sm:$0xff]
    %v265 = vld [vmem:[#allocation5 + $0x188] sm:$0xff]
    %v266 = vld [vmem:[#allocation5 + $0x190] sm:$0xff]
    %v267 = vld [vmem:[#allocation5 + $0x198] sm:$0xff]
    %v268 = vld [vmem:[#allocation5 + $0x1a0] sm:$0xff]
    %v269 = vld [vmem:[#allocation5 + $0x1a8] sm:$0xff]
    %v270 = vld [vmem:[#allocation5 + $0x1b0] sm:$0xff]
    %v271 = vld [vmem:[#allocation5 + $0x1b8] sm:$0xff]
    %v272 = vld [vmem:[#allocation5 + $0x1c0] sm:$0xff]
    %v273 = vld [vmem:[#allocation5 + $0x1c8] sm:$0xff]
    %v274 = vld [vmem:[#allocation5 + $0x1d0] sm:$0xff]
    %v275 = vld [vmem:[#allocation5 + $0x1d8] sm:$0xff]
    %v276 = vld [vmem:[#allocation5 + $0x1e0] sm:$0xff]
    %v277 = vld [vmem:[#allocation5 + $0x1e8] sm:$0xff]
    %v278 = vld [vmem:[#allocation5 + $0x1f0] sm:$0xff]
    %v279 = vld [vmem:[#allocation5 + $0x1f8] sm:$0xff]
    %v280 = vld [vmem:[#allocation5 + $0x200] sm:$0xff]
    %v281 = vld [vmem:[#allocation5 + $0x208] sm:$0xff]
    %v282 = vld [vmem:[#allocation5 + $0x210] sm:$0xff]
    %v283 = vld [vmem:[#allocation5 + $0x218] sm:$0xff]
    %v284 = vld [vmem:[#allocation5 + $0x220] sm:$0xff]
    %v285 = vld [vmem:[#allocation5 + $0x228] sm:$0xff]
    %v286 = vld [vmem:[#allocation5 + $0x230] sm:$0xff]
    %v287 = vld [vmem:[#allocation5 + $0x238] sm:$0xff]
    %v288 = vld [vmem:[#allocation5 + $0x240] sm:$0xff]
    %v289 = vld [vmem:[#allocation5 + $0x248] sm:$0xff]
    %v290 = vld [vmem:[#allocation5 + $0x250] sm:$0xff]
    %v291 = vld [vmem:[#allocation5 + $0x258] sm:$0xff]
    %v292 = vld [vmem:[#allocation5 + $0x260] sm:$0xff]
    %v293 = vld [vmem:[#allocation5 + $0x268] sm:$0xff]
    %v294 = vld [vmem:[#allocation5 + $0x270] sm:$0xff]
    %v295 = vld [vmem:[#allocation5 + $0x278] sm:$0xff]
    %v296 = vld [vmem:[#allocation5 + $0x280] sm:$0xff]
    %v297 = vld [vmem:[#allocation5 + $0x288] sm:$0xff]
    %v298 = vld [vmem:[#allocation5 + $0x290] sm:$0xff]
    %v299 = vld [vmem:[#allocation5 + $0x298] sm:$0xff]
    %v300 = vld [vmem:[#allocation5 + $0x2a0] sm:$0xff]
    %v301 = vld [vmem:[#allocation5 + $0x2a8] sm:$0xff]
    %v302 = vld [vmem:[#allocation5 + $0x2b0] sm:$0xff]
    %v303 = vld [vmem:[#allocation5 + $0x2b8] sm:$0xff]
    %v304 = vld [vmem:[#allocation5 + $0x2c0] sm:$0xff]
    %v305 = vld [vmem:[#allocation5 + $0x2c8] sm:$0xff]
    %v306 = vld [vmem:[#allocation5 + $0x2d0] sm:$0xff]
    %v307 = vld [vmem:[#allocation5 + $0x2d8] sm:$0xff]
    %v308 = vld [vmem:[#allocation5 + $0x2e0] sm:$0xff]
    %v309 = vld [vmem:[#allocation5 + $0x2e8] sm:$0xff]
    %v310 = vld [vmem:[#allocation5 + $0x2f0] sm:$0xff]
    %v311 = vld [vmem:[#allocation5 + $0x2f8] sm:$0xff]
    %v312 = vld [vmem:[#allocation5 + $0x300] sm:$0xff]
    %v313 = vld [vmem:[#allocation5 + $0x308] sm:$0xff]
    %v314 = vld [vmem:[#allocation5 + $0x310] sm:$0xff]
    %v315 = vld [vmem:[#allocation5 + $0x318] sm:$0xff]
    %v316 = vld [vmem:[#allocation5 + $0x320] sm:$0xff]
    %v317 = vld [vmem:[#allocation5 + $0x328] sm:$0xff]
    %v318 = vld [vmem:[#allocation5 + $0x330] sm:$0xff]
    %v319 = vld [vmem:[#allocation5 + $0x338] sm:$0xff]
    %v320 = vld [vmem:[#allocation5 + $0x340] sm:$0xff]
    %v321 = vld [vmem:[#allocation5 + $0x348] sm:$0xff]
    %v322 = vld [vmem:[#allocation5 + $0x350] sm:$0xff]
    %v323 = vld [vmem:[#allocation5 + $0x358] sm:$0xff]
    %v324 = vld [vmem:[#allocation5 + $0x360] sm:$0xff]
    %v325 = vld [vmem:[#allocation5 + $0x368] sm:$0xff]
    %v326 = vld [vmem:[#allocation5 + $0x370] sm:$0xff]
    %v327 = vld [vmem:[#allocation5 + $0x378] sm:$0xff]
    %v328 = vld [vmem:[#allocation5 + $0x380] sm:$0xff]
    %v329 = vld [vmem:[#allocation5 + $0x388] sm:$0xff]
    %v330 = vld [vmem:[#allocation5 + $0x390] sm:$0xff]
    %v331 = vld [vmem:[#allocation5 + $0x398] sm:$0xff]
    %v332 = vld [vmem:[#allocation5 + $0x3a0] sm:$0xff]
    %v333 = vld [vmem:[#allocation5 + $0x3a8] sm:$0xff]
    %v334 = vld [vmem:[#allocation5 + $0x3b0] sm:$0xff]
    %v335 = vld [vmem:[#allocation5 + $0x3b8] sm:$0xff]
    %v336 = vld [vmem:[#allocation5 + $0x3c0] sm:$0xff]
    %v337 = vld [vmem:[#allocation5 + $0x3c8] sm:$0xff]
    %v338 = vld [vmem:[#allocation5 + $0x3d0] sm:$0xff]
    %v339 = vld [vmem:[#allocation5 + $0x3d8] sm:$0xff]
    %v340 = vld [vmem:[#allocation5 + $0x3e0] sm:$0xff]
    %v341 = vld [vmem:[#allocation5 + $0x3e8] sm:$0xff]
    %v342 = vld [vmem:[#allocation5 + $0x3f0] sm:$0xff]
    %v343 = vld [vmem:[#allocation5 + $0x3f8] sm:$0xff]
    %v344 = vld [vmem:[#allocation5 + $0x400] sm:$0xff]
    %v345 = vld [vmem:[#allocation5 + $0x408] sm:$0xff]
    %v346 = vld [vmem:[#allocation5 + $0x410] sm:$0xff]
    %v347 = vld [vmem:[#allocation5 + $0x418] sm:$0xff]
    %v348 = vld [vmem:[#allocation5 + $0x420] sm:$0xff]
    %v349 = vld [vmem:[#allocation5 + $0x428] sm:$0xff]
    %v350 = vld [vmem:[#allocation5 + $0x430] sm:$0xff]
    %v351 = vld [vmem:[#allocation5 + $0x438] sm:$0xff]
    %v352 = vld [vmem:[#allocation5 + $0x440] sm:$0xff]
    %v353 = vld [vmem:[#allocation5 + $0x448] sm:$0xff]
    %v354 = vld [vmem:[#allocation5 + $0x450] sm:$0xff]
    %v355 = vld [vmem:[#allocation5 + $0x458] sm:$0xff]
    %v356 = vld [vmem:[#allocation5 + $0x460] sm:$0xff]
    %v357 = vld [vmem:[#allocation5 + $0x468] sm:$0xff]
    %v358 = vld [vmem:[#allocation5 + $0x470] sm:$0xff]
    %v359 = vld [vmem:[#allocation5 + $0x478] sm:$0xff]
    %v360 = vld [vmem:[#allocation5 + $0x480] sm:$0xff]
    %v361 = vld [vmem:[#allocation5 + $0x488] sm:$0xff]
    %v362 = vld [vmem:[#allocation5 + $0x490] sm:$0xff]
    %v363 = vld [vmem:[#allocation5 + $0x498] sm:$0xff]
    %v364 = vld [vmem:[#allocation5 + $0x4a0] sm:$0xff]
    %v365 = vld [vmem:[#allocation5 + $0x4a8] sm:$0xff]
    %v366 = vld [vmem:[#allocation5 + $0x4b0] sm:$0xff]
    %v367 = vld [vmem:[#allocation5 + $0x4b8] sm:$0xff]
    %v368 = vld [vmem:[#allocation5 + $0x4c0] sm:$0xff]
    %v369 = vld [vmem:[#allocation5 + $0x4c8] sm:$0xff]
    %v370 = vld [vmem:[#allocation5 + $0x4d0] sm:$0xff]
    %v371 = vld [vmem:[#allocation5 + $0x4d8] sm:$0xff]
    %v372 = vld [vmem:[#allocation5 + $0x4e0] sm:$0xff]
    %v373 = vld [vmem:[#allocation5 + $0x4e8] sm:$0xff]
    %v374 = vld [vmem:[#allocation5 + $0x4f0] sm:$0xff]
    %v375 = vld [vmem:[#allocation5 + $0x4f8] sm:$0xff]
    %v376 = vld [vmem:[#allocation5 + $0x500] sm:$0xff]
    %v377 = vld [vmem:[#allocation5 + $0x508] sm:$0xff]
    %v378 = vld [vmem:[#allocation5 + $0x510] sm:$0xff]
    %v379 = vld [vmem:[#allocation5 + $0x518] sm:$0xff]
    %v380 = vld [vmem:[#allocation5 + $0x520] sm:$0xff]
    %v381 = vld [vmem:[#allocation5 + $0x528] sm:$0xff]
    %v382 = vld [vmem:[#allocation5 + $0x530] sm:$0xff]
    %v383 = vld [vmem:[#allocation5 + $0x538] sm:$0xff]
    %v384 = vld [vmem:[#allocation5 + $0x540] sm:$0xff]
    %v385 = vld [vmem:[#allocation5 + $0x548] sm:$0xff]
    %v386 = vld [vmem:[#allocation5 + $0x550] sm:$0xff]
    %v387 = vld [vmem:[#allocation5 + $0x558] sm:$0xff]
    %v388 = vld [vmem:[#allocation5 + $0x560] sm:$0xff]
    %v389 = vld [vmem:[#allocation5 + $0x568] sm:$0xff]
    %v390 = vld [vmem:[#allocation5 + $0x570] sm:$0xff]
    %v391 = vld [vmem:[#allocation5 + $0x578] sm:$0xff]
    %v392 = vld [vmem:[#allocation5 + $0x580] sm:$0xff]
    %v393 = vld [vmem:[#allocation5 + $0x588] sm:$0xff]
    %v394 = vld [vmem:[#allocation5 + $0x590] sm:$0xff]
    %v395 = vld [vmem:[#allocation5 + $0x598] sm:$0xff]
    %v396 = vld [vmem:[#allocation5 + $0x5a0] sm:$0xff]
    %v397 = vld [vmem:[#allocation5 + $0x5a8] sm:$0xff]
    %v398 = vld [vmem:[#allocation5 + $0x5b0] sm:$0xff]
    %v399 = vld [vmem:[#allocation5 + $0x5b8] sm:$0xff]
    %v400 = vld [vmem:[#allocation5 + $0x5c0] sm:$0xff]
    %v401 = vld [vmem:[#allocation5 + $0x5c8] sm:$0xff]
    %v402 = vld [vmem:[#allocation5 + $0x5d0] sm:$0xff]
    %v403 = vld [vmem:[#allocation5 + $0x5d8] sm:$0xff]
    %v404 = vld [vmem:[#allocation5 + $0x5e0] sm:$0xff]
    %v405 = vld [vmem:[#allocation5 + $0x5e8] sm:$0xff]
    %v406 = vld [vmem:[#allocation5 + $0x5f0] sm:$0xff]
    %v407 = vld [vmem:[#allocation5 + $0x5f8] sm:$0xff]
    %v408 = vld [vmem:[#allocation5 + $0x600] sm:$0xff]
    %v409 = vld [vmem:[#allocation5 + $0x608] sm:$0xff]
    %v410 = vld [vmem:[#allocation5 + $0x610] sm:$0xff]
    %v411 = vld [vmem:[#allocation5 + $0x618] sm:$0xff]
    %v412 = vld [vmem:[#allocation5 + $0x620] sm:$0xff]
    %v413 = vld [vmem:[#allocation5 + $0x628] sm:$0xff]
    %v414 = vld [vmem:[#allocation5 + $0x630] sm:$0xff]
    %v415 = vld [vmem:[#allocation5 + $0x638] sm:$0xff]
    %v416 = vld [vmem:[#allocation5 + $0x640] sm:$0xff]
    %v417 = vld [vmem:[#allocation5 + $0x648] sm:$0xff]
    %v418 = vld [vmem:[#allocation5 + $0x650] sm:$0xff]
    %v419 = vld [vmem:[#allocation5 + $0x658] sm:$0xff]
    %v420 = vld [vmem:[#allocation5 + $0x660] sm:$0xff]
    %v421 = vld [vmem:[#allocation5 + $0x668] sm:$0xff]
    %v422 = vld [vmem:[#allocation5 + $0x670] sm:$0xff]
    %v423 = vld [vmem:[#allocation5 + $0x678] sm:$0xff]
    %v424 = vld [vmem:[#allocation5 + $0x680] sm:$0xff]
    %v425 = vld [vmem:[#allocation5 + $0x688] sm:$0xff]
    %v426 = vld [vmem:[#allocation5 + $0x690] sm:$0xff]
    %v427 = vld [vmem:[#allocation5 + $0x698] sm:$0xff]
    %v428 = vld [vmem:[#allocation5 + $0x6a0] sm:$0xff]
    %v429 = vld [vmem:[#allocation5 + $0x6a8] sm:$0xff]
    %v430 = vld [vmem:[#allocation5 + $0x6b0] sm:$0xff]
    %v431 = vld [vmem:[#allocation5 + $0x6b8] sm:$0xff]
    %v432 = vld [vmem:[#allocation5 + $0x6c0] sm:$0xff]
    %v433 = vld [vmem:[#allocation5 + $0x6c8] sm:$0xff]
    %v434 = vld [vmem:[#allocation5 + $0x6d0] sm:$0xff]
    %v435 = vld [vmem:[#allocation5 + $0x6d8] sm:$0xff]
    %v436 = vld [vmem:[#allocation5 + $0x6e0] sm:$0xff]
    %v437 = vld [vmem:[#allocation5 + $0x6e8] sm:$0xff]
    %v438 = vld [vmem:[#allocation5 + $0x6f0] sm:$0xff]
    %v439 = vld [vmem:[#allocation5 + $0x6f8] sm:$0xff]
    %v440 = vld [vmem:[#allocation5 + $0x700] sm:$0xff]
    %v441 = vld [vmem:[#allocation5 + $0x708] sm:$0xff]
    %v442 = vld [vmem:[#allocation5 + $0x710] sm:$0xff]
    %v443 = vld [vmem:[#allocation5 + $0x718] sm:$0xff]
    %v444 = vld [vmem:[#allocation5 + $0x720] sm:$0xff]
    %v445 = vld [vmem:[#allocation5 + $0x728] sm:$0xff]
    %v446 = vld [vmem:[#allocation5 + $0x730] sm:$0xff]
    %v447 = vld [vmem:[#allocation5 + $0x738] sm:$0xff]
    %v448 = vld [vmem:[#allocation5 + $0x740] sm:$0xff]
    %v449 = vld [vmem:[#allocation5 + $0x748] sm:$0xff]
    %v450 = vld [vmem:[#allocation5 + $0x750] sm:$0xff]
    %v451 = vld [vmem:[#allocation5 + $0x758] sm:$0xff]
    %v452 = vld [vmem:[#allocation5 + $0x760] sm:$0xff]
    %v453 = vld [vmem:[#allocation5 + $0x768] sm:$0xff]
    %v454 = vld [vmem:[#allocation5 + $0x770] sm:$0xff]
    %v455 = vld [vmem:[#allocation5 + $0x778] sm:$0xff]
    %v456 = vld [vmem:[#allocation5 + $0x780] sm:$0xff]
    %v457 = vld [vmem:[#allocation5 + $0x788] sm:$0xff]
    %v458 = vld [vmem:[#allocation5 + $0x790] sm:$0xff]
    %v459 = vld [vmem:[#allocation5 + $0x798] sm:$0xff]
    %v460 = vld [vmem:[#allocation5 + $0x7a0] sm:$0xff]
    %v461 = vld [vmem:[#allocation5 + $0x7a8] sm:$0xff]
    %v462 = vld [vmem:[#allocation5 + $0x7b0] sm:$0xff]
    %v463 = vld [vmem:[#allocation5 + $0x7b8] sm:$0xff]
    %v464 = vld [vmem:[#allocation5 + $0x7c0] sm:$0xff]
    %v465 = vld [vmem:[#allocation5 + $0x7c8] sm:$0xff]
    %v466 = vld [vmem:[#allocation5 + $0x7d0] sm:$0xff]
    %v467 = vld [vmem:[#allocation5 + $0x7d8] sm:$0xff]
    %v468 = vld [vmem:[#allocation5 + $0x7e0] sm:$0xff]
    %v469 = vld [vmem:[#allocation5 + $0x7e8] sm:$0xff]
    %v470 = vld [vmem:[#allocation5 + $0x7f0] sm:$0xff]
    %v471 = vld [vmem:[#allocation5 + $0x7f8] sm:$0xff]
    %v472 = vld [vmem:[#allocation7] sm:$0xff]
    %v474 = vlaneseq
    %v475 = vshrl.u32 %v474, 7
    %v476 = vsub.s32 0, %v475
    %v477 = vrot.slane %v472, %v476
    %v478 = vlaneseq
    %v479 = vshrl.u32 %v478, 7
    %v480 = vsub.s32 1, %v479
    %v481 = vrot.slane %v472, %v480
    %v482 = vlaneseq
    %v483 = vshrl.u32 %v482, 7
    %v484 = vsub.s32 2, %v483
    %v485 = vrot.slane %v472, %v484
    %v486 = vlaneseq
    %v487 = vshrl.u32 %v486, 7
    %v488 = vsub.s32 3, %v487
    %v489 = vrot.slane %v472, %v488
    %v490 = vlaneseq
    %v491 = vshrl.u32 %v490, 7
    %v492 = vsub.s32 4, %v491
    %v493 = vrot.slane %v472, %v492
    %v494 = vlaneseq
    %v495 = vshrl.u32 %v494, 7
    %v496 = vsub.s32 5, %v495
    %v497 = vrot.slane %v472, %v496
    %v498 = vlaneseq
    %v499 = vshrl.u32 %v498, 7
    %v500 = vsub.s32 6, %v499
    %v501 = vrot.slane %v472, %v500
    %v502 = vlaneseq
    %v503 = vshrl.u32 %v502, 7
    %v504 = vsub.s32 7, %v503
    %v505 = vrot.slane %v472, %v504
    %514 = vmatprep.subr.mxu0 %v337
    %515 = vmatpush1.msra.mxu0 %v336
    %516 = vmatprep.subr.mxu0 %v329
    %517 = vmatpush1.msra.mxu0 %v328
    %518 = vmatprep.subr.mxu0 %v321
    %519 = vmatpush1.msra.mxu0 %v320
    %520 = vmatprep.subr.mxu0 %v313
    %521 = vmatpush1.msra.mxu0 %v312
    %522 = vmatprep.subr.mxu0 %v305
    %523 = vmatpush1.msra.mxu0 %v304
    %524 = vmatprep.subr.mxu0 %v297
    %525 = vmatpush1.msra.mxu0 %v296
    %526 = vmatprep.subr.mxu0 %v289
    %527 = vmatpush1.msra.mxu0 %v288
    %528 = vmatprep.subr.mxu0 %v281
    %529 = vmatpush1.msra.mxu0 %v280
    %530 = vmatprep.subr.mxu0 %v273
    %531 = vmatpush1.msra.mxu0 %v272
    %532 = vmatprep.subr.mxu0 %v265
    %533 = vmatpush1.msra.mxu0 %v264
    %534 = vmatprep.subr.mxu0 %v257
    %535 = vmatpush1.msra.mxu0 %v256
    %536 = vmatprep.subr.mxu0 %v249
    %537 = vmatpush1.msra.mxu0 %v248
    %538 = vmatprep.subr.mxu0 %v241
    %539 = vmatpush1.msra.mxu0 %v240
    %540 = vmatprep.subr.mxu0 %v233
    %541 = vmatpush1.msra.mxu0 %v232
    %542 = vmatprep.subr.mxu0 %v225
    %543 = vmatpush1.msra.mxu0 %v224
    %544 = vmatprep.subr.mxu0 %v217
    %545 = vmatpush1.msra.mxu0 %v216
    %546 = vmatprep.subr.mxu0 %v465
    %547 = vmatpush2.msra.mxu0 %v464
    %548 = vmatprep.subr.mxu0 %v457
    %549 = vmatpush2.msra.mxu0 %v456
    %550 = vmatprep.subr.mxu0 %v449
    %551 = vmatpush2.msra.mxu0 %v448
    %552 = vmatprep.subr.mxu0 %v441
    %553 = vmatpush2.msra.mxu0 %v440
    %554 = vmatprep.subr.mxu0 %v433
    %555 = vmatpush2.msra.mxu0 %v432
    %556 = vmatprep.subr.mxu0 %v425
    %557 = vmatpush2.msra.mxu0 %v424
    %558 = vmatprep.subr.mxu0 %v417
    %559 = vmatpush2.msra.mxu0 %v416
    %560 = vmatprep.subr.mxu0 %v409
    %561 = vmatpush2.msra.mxu0 %v408
    %562 = vmatprep.subr.mxu0 %v401
    %563 = vmatpush2.msra.mxu0 %v400
    %564 = vmatprep.subr.mxu0 %v393
    %565 = vmatpush2.msra.mxu0 %v392
    %566 = vmatprep.subr.mxu0 %v385
    %567 = vmatpush2.msra.mxu0 %v384
    %568 = vmatprep.subr.mxu0 %v377
    %569 = vmatpush2.msra.mxu0 %v376
    %570 = vmatprep.subr.mxu0 %v369
    %571 = vmatpush2.msra.mxu0 %v368
    %572 = vmatprep.subr.mxu0 %v361
    %573 = vmatpush2.msra.mxu0 %v360
    %574 = vmatprep.subr.mxu0 %v353
    %575 = vmatpush2.msra.mxu0 %v352
    %576 = vmatprep.subr.mxu0 %v345
    %577 = vmatpush2.msra.mxu0 %v344
    %578 = vmatprep.mubr.f32.mxu0 %v213
    %579 = vmatmul.mubr.f32.gmra.mxu0 %v212
    %v580 = vpop.f32.mrf.mxu0
    %v581 = vadd.f32 %v477, %v580
    %v582 = vpop.f32.mrf.mxu0
    %v583 = vadd.f32 %v481, %v582
    %584 = vmatprep.mubr.f32.mxu0 %v215
    %585 = vmatmul.mubr.f32.gmra.mxu0 %v214
    %v586 = vpop.f32.mrf.mxu0
    %v587 = vadd.f32 %v477, %v586
    %v588 = vpop.f32.mrf.mxu0
    %v589 = vadd.f32 %v481, %v588
    %590 = vdwg.mxu0
    %591 = vmatprep.subr.mxu0 %v339
    %592 = vmatpush1.msra.mxu0 %v338
    %593 = vmatprep.subr.mxu0 %v331
    %594 = vmatpush1.msra.mxu0 %v330
    %595 = vmatprep.subr.mxu0 %v323
    %596 = vmatpush1.msra.mxu0 %v322
    %597 = vmatprep.subr.mxu0 %v315
    %598 = vmatpush1.msra.mxu0 %v314
    %599 = vmatprep.subr.mxu0 %v307
    %600 = vmatpush1.msra.mxu0 %v306
    %601 = vmatprep.subr.mxu0 %v299
    %602 = vmatpush1.msra.mxu0 %v298
    %603 = vmatprep.subr.mxu0 %v291
    %604 = vmatpush1.msra.mxu0 %v290
    %605 = vmatprep.subr.mxu0 %v283
    %606 = vmatpush1.msra.mxu0 %v282
    %607 = vmatprep.subr.mxu0 %v275
    %608 = vmatpush1.msra.mxu0 %v274
    %609 = vmatprep.subr.mxu0 %v267
    %610 = vmatpush1.msra.mxu0 %v266
    %611 = vmatprep.subr.mxu0 %v259
    %612 = vmatpush1.msra.mxu0 %v258
    %613 = vmatprep.subr.mxu0 %v251
    %614 = vmatpush1.msra.mxu0 %v250
    %615 = vmatprep.subr.mxu0 %v243
    %616 = vmatpush1.msra.mxu0 %v242
    %617 = vmatprep.subr.mxu0 %v235
    %618 = vmatpush1.msra.mxu0 %v234
    %619 = vmatprep.subr.mxu0 %v227
    %620 = vmatpush1.msra.mxu0 %v226
    %621 = vmatprep.subr.mxu0 %v219
    %622 = vmatpush1.msra.mxu0 %v218
    %623 = vmatprep.subr.mxu0 %v467
    %624 = vmatpush2.msra.mxu0 %v466
    %625 = vmatprep.subr.mxu0 %v459
    %626 = vmatpush2.msra.mxu0 %v458
    %627 = vmatprep.subr.mxu0 %v451
    %628 = vmatpush2.msra.mxu0 %v450
    %629 = vmatprep.subr.mxu0 %v443
    %630 = vmatpush2.msra.mxu0 %v442
    %631 = vmatprep.subr.mxu0 %v435
    %632 = vmatpush2.msra.mxu0 %v434
    %633 = vmatprep.subr.mxu0 %v427
    %634 = vmatpush2.msra.mxu0 %v426
    %635 = vmatprep.subr.mxu0 %v419
    %636 = vmatpush2.msra.mxu0 %v418
    %637 = vmatprep.subr.mxu0 %v411
    %638 = vmatpush2.msra.mxu0 %v410
    %639 = vmatprep.subr.mxu0 %v403
    %640 = vmatpush2.msra.mxu0 %v402
    %641 = vmatprep.subr.mxu0 %v395
    %642 = vmatpush2.msra.mxu0 %v394
    %643 = vmatprep.subr.mxu0 %v387
    %644 = vmatpush2.msra.mxu0 %v386
    %645 = vmatprep.subr.mxu0 %v379
    %646 = vmatpush2.msra.mxu0 %v378
    %647 = vmatprep.subr.mxu0 %v371
    %648 = vmatpush2.msra.mxu0 %v370
    %649 = vmatprep.subr.mxu0 %v363
    %650 = vmatpush2.msra.mxu0 %v362
    %651 = vmatprep.subr.mxu0 %v355
    %652 = vmatpush2.msra.mxu0 %v354
    %653 = vmatprep.subr.mxu0 %v347
    %654 = vmatpush2.msra.mxu0 %v346
    %655 = vmatprep.mubr.f32.mxu0 %v213
    %656 = vmatmul.mubr.f32.gmra.mxu0 %v212
    %v657 = vpop.f32.mrf.mxu0
    %v658 = vadd.f32 %v485, %v657
    %v659 = vpop.f32.mrf.mxu0
    %v660 = vadd.f32 %v489, %v659
    %661 = vmatprep.mubr.f32.mxu0 %v215
    %662 = vmatmul.mubr.f32.gmra.mxu0 %v214
    %v663 = vpop.f32.mrf.mxu0
    %v664 = vadd.f32 %v485, %v663
    %v665 = vpop.f32.mrf.mxu0
    %v666 = vadd.f32 %v489, %v665
    %667 = vdwg.mxu0
    %668 = vmatprep.subr.mxu0 %v341
    %669 = vmatpush1.msra.mxu0 %v340
    %670 = vmatprep.subr.mxu0 %v333
    %671 = vmatpush1.msra.mxu0 %v332
    %672 = vmatprep.subr.mxu0 %v325
    %673 = vmatpush1.msra.mxu0 %v324
    %674 = vmatprep.subr.mxu0 %v317
    %675 = vmatpush1.msra.mxu0 %v316
    %676 = vmatprep.subr.mxu0 %v309
    %677 = vmatpush1.msra.mxu0 %v308
    %678 = vmatprep.subr.mxu0 %v301
    %679 = vmatpush1.msra.mxu0 %v300
    %680 = vmatprep.subr.mxu0 %v293
    %681 = vmatpush1.msra.mxu0 %v292
    %682 = vmatprep.subr.mxu0 %v285
    %683 = vmatpush1.msra.mxu0 %v284
    %684 = vmatprep.subr.mxu0 %v277
    %685 = vmatpush1.msra.mxu0 %v276
    %686 = vmatprep.subr.mxu0 %v269
    %687 = vmatpush1.msra.mxu0 %v268
    %688 = vmatprep.subr.mxu0 %v261
    %689 = vmatpush1.msra.mxu0 %v260
    %690 = vmatprep.subr.mxu0 %v253
    %691 = vmatpush1.msra.mxu0 %v252
    %692 = vmatprep.subr.mxu0 %v245
    %693 = vmatpush1.msra.mxu0 %v244
    %694 = vmatprep.subr.mxu0 %v237
    %695 = vmatpush1.msra.mxu0 %v236
    %696 = vmatprep.subr.mxu0 %v229
    %697 = vmatpush1.msra.mxu0 %v228
    %698 = vmatprep.subr.mxu0 %v221
    %699 = vmatpush1.msra.mxu0 %v220
    %700 = vmatprep.subr.mxu0 %v469
    %701 = vmatpush2.msra.mxu0 %v468
    %702 = vmatprep.subr.mxu0 %v461
    %703 = vmatpush2.msra.mxu0 %v460
    %704 = vmatprep.subr.mxu0 %v453
    %705 = vmatpush2.msra.mxu0 %v452
    %706 = vmatprep.subr.mxu0 %v445
    %707 = vmatpush2.msra.mxu0 %v444
    %708 = vmatprep.subr.mxu0 %v437
    %709 = vmatpush2.msra.mxu0 %v436
    %710 = vmatprep.subr.mxu0 %v429
    %711 = vmatpush2.msra.mxu0 %v428
    %712 = vmatprep.subr.mxu0 %v421
    %713 = vmatpush2.msra.mxu0 %v420
    %714 = vmatprep.subr.mxu0 %v413
    %715 = vmatpush2.msra.mxu0 %v412
    %716 = vmatprep.subr.mxu0 %v405
    %717 = vmatpush2.msra.mxu0 %v404
    %718 = vmatprep.subr.mxu0 %v397
    %719 = vmatpush2.msra.mxu0 %v396
    %720 = vmatprep.subr.mxu0 %v389
    %721 = vmatpush2.msra.mxu0 %v388
    %722 = vmatprep.subr.mxu0 %v381
    %723 = vmatpush2.msra.mxu0 %v380
    %724 = vmatprep.subr.mxu0 %v373
    %725 = vmatpush2.msra.mxu0 %v372
    %726 = vmatprep.subr.mxu0 %v365
    %727 = vmatpush2.msra.mxu0 %v364
    %728 = vmatprep.subr.mxu0 %v357
    %729 = vmatpush2.msra.mxu0 %v356
    %730 = vmatprep.subr.mxu0 %v349
    %731 = vmatpush2.msra.mxu0 %v348
    %732 = vmatprep.mubr.f32.mxu0 %v213
    %733 = vmatmul.mubr.f32.gmra.mxu0 %v212
    %v734 = vpop.f32.mrf.mxu0
    %v735 = vadd.f32 %v493, %v734
    %v736 = vpop.f32.mrf.mxu0
    %v737 = vadd.f32 %v497, %v736
    %738 = vmatprep.mubr.f32.mxu0 %v215
    %739 = vmatmul.mubr.f32.gmra.mxu0 %v214
    %v740 = vpop.f32.mrf.mxu0
    %v741 = vadd.f32 %v493, %v740
    %v742 = vpop.f32.mrf.mxu0
    %v743 = vadd.f32 %v497, %v742
    %744 = vdwg.mxu0
    %745 = vmatprep.subr.mxu0 %v343
    %746 = vmatpush1.msra.mxu0 %v342
    %747 = vmatprep.subr.mxu0 %v335
    %748 = vmatpush1.msra.mxu0 %v334
    %749 = vmatprep.subr.mxu0 %v327
    %750 = vmatpush1.msra.mxu0 %v326
    %751 = vmatprep.subr.mxu0 %v319
    %752 = vmatpush1.msra.mxu0 %v318
    %753 = vmatprep.subr.mxu0 %v311
    %754 = vmatpush1.msra.mxu0 %v310
    %755 = vmatprep.subr.mxu0 %v303
    %756 = vmatpush1.msra.mxu0 %v302
    %757 = vmatprep.subr.mxu0 %v295
    %758 = vmatpush1.msra.mxu0 %v294
    %759 = vmatprep.subr.mxu0 %v287
    %760 = vmatpush1.msra.mxu0 %v286
    %761 = vmatprep.subr.mxu0 %v279
    %762 = vmatpush1.msra.mxu0 %v278
    %763 = vmatprep.subr.mxu0 %v271
    %764 = vmatpush1.msra.mxu0 %v270
    %765 = vmatprep.subr.mxu0 %v263
    %766 = vmatpush1.msra.mxu0 %v262
    %767 = vmatprep.subr.mxu0 %v255
    %768 = vmatpush1.msra.mxu0 %v254
    %769 = vmatprep.subr.mxu0 %v247
    %770 = vmatpush1.msra.mxu0 %v246
    %771 = vmatprep.subr.mxu0 %v239
    %772 = vmatpush1.msra.mxu0 %v238
    %773 = vmatprep.subr.mxu0 %v231
    %774 = vmatpush1.msra.mxu0 %v230
    %775 = vmatprep.subr.mxu0 %v223
    %776 = vmatpush1.msra.mxu0 %v222
    %777 = vmatprep.subr.mxu0 %v471
    %778 = vmatpush2.msra.mxu0 %v470
    %779 = vmatprep.subr.mxu0 %v463
    %780 = vmatpush2.msra.mxu0 %v462
    %781 = vmatprep.subr.mxu0 %v455
    %782 = vmatpush2.msra.mxu0 %v454
    %783 = vmatprep.subr.mxu0 %v447
    %784 = vmatpush2.msra.mxu0 %v446
    %785 = vmatprep.subr.mxu0 %v439
    %786 = vmatpush2.msra.mxu0 %v438
    %787 = vmatprep.subr.mxu0 %v431
    %788 = vmatpush2.msra.mxu0 %v430
    %789 = vmatprep.subr.mxu0 %v423
    %790 = vmatpush2.msra.mxu0 %v422
    %791 = vmatprep.subr.mxu0 %v415
    %792 = vmatpush2.msra.mxu0 %v414
    %793 = vmatprep.subr.mxu0 %v407
    %794 = vmatpush2.msra.mxu0 %v406
    %795 = vmatprep.subr.mxu0 %v399
    %796 = vmatpush2.msra.mxu0 %v398
    %797 = vmatprep.subr.mxu0 %v391
    %798 = vmatpush2.msra.mxu0 %v390
    %799 = vmatprep.subr.mxu0 %v383
    %800 = vmatpush2.msra.mxu0 %v382
    %801 = vmatprep.subr.mxu0 %v375
    %802 = vmatpush2.msra.mxu0 %v374
    %803 = vmatprep.subr.mxu0 %v367
    %804 = vmatpush2.msra.mxu0 %v366
    %805 = vmatprep.subr.mxu0 %v359
    %806 = vmatpush2.msra.mxu0 %v358
    %807 = vmatprep.subr.mxu0 %v351
    %808 = vmatpush2.msra.mxu0 %v350
    %809 = vmatprep.mubr.f32.mxu0 %v213
    %810 = vmatmul.mubr.f32.gmra.mxu0 %v212
    %v811 = vpop.f32.mrf.mxu0
    %v812 = vadd.f32 %v501, %v811
    %v813 = vpop.f32.mrf.mxu0
    %v814 = vadd.f32 %v505, %v813
    %815 = vmatprep.mubr.f32.mxu0 %v215
    %816 = vmatmul.mubr.f32.gmra.mxu0 %v214
    %v817 = vpop.f32.mrf.mxu0
    %v818 = vadd.f32 %v501, %v817
    %v819 = vpop.f32.mrf.mxu0
    %v820 = vadd.f32 %v505, %v819
    %821 = vdwg.mxu0
    %v822 = vtanh.pop %v581
    %v823 = vtanh.pop %v583
    %v824 = vtanh.pop %v658
    %v825 = vtanh.pop %v660
    %v826 = vtanh.pop %v735
    %v827 = vtanh.pop %v737
    %v828 = vtanh.pop %v812
    %v829 = vtanh.pop %v814
    %v830 = vtanh.pop %v587
    %v831 = vtanh.pop %v589
    %v832 = vtanh.pop %v664
    %v833 = vtanh.pop %v666
    %v834 = vtanh.pop %v741
    %v835 = vtanh.pop %v743
    %v836 = vtanh.pop %v818
    %v837 = vtanh.pop %v820
    %v838 = vld [vmem:[#allocation8] sm:$0xff]
    %v839 = vld [vmem:[#allocation8 + $0x8] sm:$0xff]
    %v840 = vld [vmem:[#allocation8 + $0x10] sm:$0xff]
    %v841 = vld [vmem:[#allocation8 + $0x18] sm:$0xff]
    %v842 = vld [vmem:[#allocation8 + $0x20] sm:$0xff]
    %v843 = vld [vmem:[#allocation8 + $0x28] sm:$0xff]
    %v844 = vld [vmem:[#allocation8 + $0x30] sm:$0xff]
    %v845 = vld [vmem:[#allocation8 + $0x38] sm:$0xff]
    %v846 = vld [vmem:[#allocation8 + $0x40] sm:$0xff]
    %v847 = vld [vmem:[#allocation8 + $0x48] sm:$0xff]
    %v848 = vld [vmem:[#allocation8 + $0x50] sm:$0xff]
    %v849 = vld [vmem:[#allocation8 + $0x58] sm:$0xff]
    %v850 = vld [vmem:[#allocation8 + $0x60] sm:$0xff]
    %v851 = vld [vmem:[#allocation8 + $0x68] sm:$0xff]
    %v852 = vld [vmem:[#allocation8 + $0x70] sm:$0xff]
    %v853 = vld [vmem:[#allocation8 + $0x78] sm:$0xff]
    %v854 = vld [vmem:[#allocation8 + $0x80] sm:$0xff]
    %v855 = vld [vmem:[#allocation8 + $0x88] sm:$0xff]
    %v856 = vld [vmem:[#allocation8 + $0x90] sm:$0xff]
    %v857 = vld [vmem:[#allocation8 + $0x98] sm:$0xff]
    %v858 = vld [vmem:[#allocation8 + $0xa0] sm:$0xff]
    %v859 = vld [vmem:[#allocation8 + $0xa8] sm:$0xff]
    %v860 = vld [vmem:[#allocation8 + $0xb0] sm:$0xff]
    %v861 = vld [vmem:[#allocation8 + $0xb8] sm:$0xff]
    %v862 = vld [vmem:[#allocation8 + $0xc0] sm:$0xff]
    %v863 = vld [vmem:[#allocation8 + $0xc8] sm:$0xff]
    %v864 = vld [vmem:[#allocation8 + $0xd0] sm:$0xff]
    %v865 = vld [vmem:[#allocation8 + $0xd8] sm:$0xff]
    %v866 = vld [vmem:[#allocation8 + $0xe0] sm:$0xff]
    %v867 = vld [vmem:[#allocation8 + $0xe8] sm:$0xff]
    %v868 = vld [vmem:[#allocation8 + $0xf0] sm:$0xff]
    %v869 = vld [vmem:[#allocation8 + $0xf8] sm:$0xff]
    %v870 = vld [vmem:[#allocation8 + $0x100] sm:$0xff]
    %v871 = vld [vmem:[#allocation8 + $0x108] sm:$0xff]
    %v872 = vld [vmem:[#allocation8 + $0x110] sm:$0xff]
    %v873 = vld [vmem:[#allocation8 + $0x118] sm:$0xff]
    %v874 = vld [vmem:[#allocation8 + $0x120] sm:$0xff]
    %v875 = vld [vmem:[#allocation8 + $0x128] sm:$0xff]
    %v876 = vld [vmem:[#allocation8 + $0x130] sm:$0xff]
    %v877 = vld [vmem:[#allocation8 + $0x138] sm:$0xff]
    %v878 = vld [vmem:[#allocation8 + $0x140] sm:$0xff]
    %v879 = vld [vmem:[#allocation8 + $0x148] sm:$0xff]
    %v880 = vld [vmem:[#allocation8 + $0x150] sm:$0xff]
    %v881 = vld [vmem:[#allocation8 + $0x158] sm:$0xff]
    %v882 = vld [vmem:[#allocation8 + $0x160] sm:$0xff]
    %v883 = vld [vmem:[#allocation8 + $0x168] sm:$0xff]
    %v884 = vld [vmem:[#allocation8 + $0x170] sm:$0xff]
    %v885 = vld [vmem:[#allocation8 + $0x178] sm:$0xff]
    %v886 = vld [vmem:[#allocation8 + $0x180] sm:$0xff]
    %v887 = vld [vmem:[#allocation8 + $0x188] sm:$0xff]
    %v888 = vld [vmem:[#allocation8 + $0x190] sm:$0xff]
    %v889 = vld [vmem:[#allocation8 + $0x198] sm:$0xff]
    %v890 = vld [vmem:[#allocation8 + $0x1a0] sm:$0xff]
    %v891 = vld [vmem:[#allocation8 + $0x1a8] sm:$0xff]
    %v892 = vld [vmem:[#allocation8 + $0x1b0] sm:$0xff]
    %v893 = vld [vmem:[#allocation8 + $0x1b8] sm:$0xff]
    %v894 = vld [vmem:[#allocation8 + $0x1c0] sm:$0xff]
    %v895 = vld [vmem:[#allocation8 + $0x1c8] sm:$0xff]
    %v896 = vld [vmem:[#allocation8 + $0x1d0] sm:$0xff]
    %v897 = vld [vmem:[#allocation8 + $0x1d8] sm:$0xff]
    %v898 = vld [vmem:[#allocation8 + $0x1e0] sm:$0xff]
    %v899 = vld [vmem:[#allocation8 + $0x1e8] sm:$0xff]
    %v900 = vld [vmem:[#allocation8 + $0x1f0] sm:$0xff]
    %v901 = vld [vmem:[#allocation8 + $0x1f8] sm:$0xff]
    %v902 = vld [vmem:[#allocation8 + $0x200] sm:$0xff]
    %v903 = vld [vmem:[#allocation8 + $0x208] sm:$0xff]
    %v904 = vld [vmem:[#allocation8 + $0x210] sm:$0xff]
    %v905 = vld [vmem:[#allocation8 + $0x218] sm:$0xff]
    %v906 = vld [vmem:[#allocation8 + $0x220] sm:$0xff]
    %v907 = vld [vmem:[#allocation8 + $0x228] sm:$0xff]
    %v908 = vld [vmem:[#allocation8 + $0x230] sm:$0xff]
    %v909 = vld [vmem:[#allocation8 + $0x238] sm:$0xff]
    %v910 = vld [vmem:[#allocation8 + $0x240] sm:$0xff]
    %v911 = vld [vmem:[#allocation8 + $0x248] sm:$0xff]
    %v912 = vld [vmem:[#allocation8 + $0x250] sm:$0xff]
    %v913 = vld [vmem:[#allocation8 + $0x258] sm:$0xff]
    %v914 = vld [vmem:[#allocation8 + $0x260] sm:$0xff]
    %v915 = vld [vmem:[#allocation8 + $0x268] sm:$0xff]
    %v916 = vld [vmem:[#allocation8 + $0x270] sm:$0xff]
    %v917 = vld [vmem:[#allocation8 + $0x278] sm:$0xff]
    %v918 = vld [vmem:[#allocation8 + $0x280] sm:$0xff]
    %v919 = vld [vmem:[#allocation8 + $0x288] sm:$0xff]
    %v920 = vld [vmem:[#allocation8 + $0x290] sm:$0xff]
    %v921 = vld [vmem:[#allocation8 + $0x298] sm:$0xff]
    %v922 = vld [vmem:[#allocation8 + $0x2a0] sm:$0xff]
    %v923 = vld [vmem:[#allocation8 + $0x2a8] sm:$0xff]
    %v924 = vld [vmem:[#allocation8 + $0x2b0] sm:$0xff]
    %v925 = vld [vmem:[#allocation8 + $0x2b8] sm:$0xff]
    %v926 = vld [vmem:[#allocation8 + $0x2c0] sm:$0xff]
    %v927 = vld [vmem:[#allocation8 + $0x2c8] sm:$0xff]
    %v928 = vld [vmem:[#allocation8 + $0x2d0] sm:$0xff]
    %v929 = vld [vmem:[#allocation8 + $0x2d8] sm:$0xff]
    %v930 = vld [vmem:[#allocation8 + $0x2e0] sm:$0xff]
    %v931 = vld [vmem:[#allocation8 + $0x2e8] sm:$0xff]
    %v932 = vld [vmem:[#allocation8 + $0x2f0] sm:$0xff]
    %v933 = vld [vmem:[#allocation8 + $0x2f8] sm:$0xff]
    %v934 = vld [vmem:[#allocation8 + $0x300] sm:$0xff]
    %v935 = vld [vmem:[#allocation8 + $0x308] sm:$0xff]
    %v936 = vld [vmem:[#allocation8 + $0x310] sm:$0xff]
    %v937 = vld [vmem:[#allocation8 + $0x318] sm:$0xff]
    %v938 = vld [vmem:[#allocation8 + $0x320] sm:$0xff]
    %v939 = vld [vmem:[#allocation8 + $0x328] sm:$0xff]
    %v940 = vld [vmem:[#allocation8 + $0x330] sm:$0xff]
    %v941 = vld [vmem:[#allocation8 + $0x338] sm:$0xff]
    %v942 = vld [vmem:[#allocation8 + $0x340] sm:$0xff]
    %v943 = vld [vmem:[#allocation8 + $0x348] sm:$0xff]
    %v944 = vld [vmem:[#allocation8 + $0x350] sm:$0xff]
    %v945 = vld [vmem:[#allocation8 + $0x358] sm:$0xff]
    %v946 = vld [vmem:[#allocation8 + $0x360] sm:$0xff]
    %v947 = vld [vmem:[#allocation8 + $0x368] sm:$0xff]
    %v948 = vld [vmem:[#allocation8 + $0x370] sm:$0xff]
    %v949 = vld [vmem:[#allocation8 + $0x378] sm:$0xff]
    %v950 = vld [vmem:[#allocation8 + $0x380] sm:$0xff]
    %v951 = vld [vmem:[#allocation8 + $0x388] sm:$0xff]
    %v952 = vld [vmem:[#allocation8 + $0x390] sm:$0xff]
    %v953 = vld [vmem:[#allocation8 + $0x398] sm:$0xff]
    %v954 = vld [vmem:[#allocation8 + $0x3a0] sm:$0xff]
    %v955 = vld [vmem:[#allocation8 + $0x3a8] sm:$0xff]
    %v956 = vld [vmem:[#allocation8 + $0x3b0] sm:$0xff]
    %v957 = vld [vmem:[#allocation8 + $0x3b8] sm:$0xff]
    %v958 = vld [vmem:[#allocation8 + $0x3c0] sm:$0xff]
    %v959 = vld [vmem:[#allocation8 + $0x3c8] sm:$0xff]
    %v960 = vld [vmem:[#allocation8 + $0x3d0] sm:$0xff]
    %v961 = vld [vmem:[#allocation8 + $0x3d8] sm:$0xff]
    %v962 = vld [vmem:[#allocation8 + $0x3e0] sm:$0xff]
    %v963 = vld [vmem:[#allocation8 + $0x3e8] sm:$0xff]
    %v964 = vld [vmem:[#allocation8 + $0x3f0] sm:$0xff]
    %v965 = vld [vmem:[#allocation8 + $0x3f8] sm:$0xff]
    %v966 = vld [vmem:[#allocation8 + $0x400] sm:$0xff]
    %v967 = vld [vmem:[#allocation8 + $0x408] sm:$0xff]
    %v968 = vld [vmem:[#allocation8 + $0x410] sm:$0xff]
    %v969 = vld [vmem:[#allocation8 + $0x418] sm:$0xff]
    %v970 = vld [vmem:[#allocation8 + $0x420] sm:$0xff]
    %v971 = vld [vmem:[#allocation8 + $0x428] sm:$0xff]
    %v972 = vld [vmem:[#allocation8 + $0x430] sm:$0xff]
    %v973 = vld [vmem:[#allocation8 + $0x438] sm:$0xff]
    %v974 = vld [vmem:[#allocation8 + $0x440] sm:$0xff]
    %v975 = vld [vmem:[#allocation8 + $0x448] sm:$0xff]
    %v976 = vld [vmem:[#allocation8 + $0x450] sm:$0xff]
    %v977 = vld [vmem:[#allocation8 + $0x458] sm:$0xff]
    %v978 = vld [vmem:[#allocation8 + $0x460] sm:$0xff]
    %v979 = vld [vmem:[#allocation8 + $0x468] sm:$0xff]
    %v980 = vld [vmem:[#allocation8 + $0x470] sm:$0xff]
    %v981 = vld [vmem:[#allocation8 + $0x478] sm:$0xff]
    %v982 = vld [vmem:[#allocation8 + $0x480] sm:$0xff]
    %v983 = vld [vmem:[#allocation8 + $0x488] sm:$0xff]
    %v984 = vld [vmem:[#allocation8 + $0x490] sm:$0xff]
    %v985 = vld [vmem:[#allocation8 + $0x498] sm:$0xff]
    %v986 = vld [vmem:[#allocation8 + $0x4a0] sm:$0xff]
    %v987 = vld [vmem:[#allocation8 + $0x4a8] sm:$0xff]
    %v988 = vld [vmem:[#allocation8 + $0x4b0] sm:$0xff]
    %v989 = vld [vmem:[#allocation8 + $0x4b8] sm:$0xff]
    %v990 = vld [vmem:[#allocation8 + $0x4c0] sm:$0xff]
    %v991 = vld [vmem:[#allocation8 + $0x4c8] sm:$0xff]
    %v992 = vld [vmem:[#allocation8 + $0x4d0] sm:$0xff]
    %v993 = vld [vmem:[#allocation8 + $0x4d8] sm:$0xff]
    %v994 = vld [vmem:[#allocation8 + $0x4e0] sm:$0xff]
    %v995 = vld [vmem:[#allocation8 + $0x4e8] sm:$0xff]
    %v996 = vld [vmem:[#allocation8 + $0x4f0] sm:$0xff]
    %v997 = vld [vmem:[#allocation8 + $0x4f8] sm:$0xff]
    %v998 = vld [vmem:[#allocation8 + $0x500] sm:$0xff]
    %v999 = vld [vmem:[#allocation8 + $0x508] sm:$0xff]
    %v1000 = vld [vmem:[#allocation8 + $0x510] sm:$0xff]
    %v1001 = vld [vmem:[#allocation8 + $0x518] sm:$0xff]
    %v1002 = vld [vmem:[#allocation8 + $0x520] sm:$0xff]
    %v1003 = vld [vmem:[#allocation8 + $0x528] sm:$0xff]
    %v1004 = vld [vmem:[#allocation8 + $0x530] sm:$0xff]
    %v1005 = vld [vmem:[#allocation8 + $0x538] sm:$0xff]
    %v1006 = vld [vmem:[#allocation8 + $0x540] sm:$0xff]
    %v1007 = vld [vmem:[#allocation8 + $0x548] sm:$0xff]
    %v1008 = vld [vmem:[#allocation8 + $0x550] sm:$0xff]
    %v1009 = vld [vmem:[#allocation8 + $0x558] sm:$0xff]
    %v1010 = vld [vmem:[#allocation8 + $0x560] sm:$0xff]
    %v1011 = vld [vmem:[#allocation8 + $0x568] sm:$0xff]
    %v1012 = vld [vmem:[#allocation8 + $0x570] sm:$0xff]
    %v1013 = vld [vmem:[#allocation8 + $0x578] sm:$0xff]
    %v1014 = vld [vmem:[#allocation8 + $0x580] sm:$0xff]
    %v1015 = vld [vmem:[#allocation8 + $0x588] sm:$0xff]
    %v1016 = vld [vmem:[#allocation8 + $0x590] sm:$0xff]
    %v1017 = vld [vmem:[#allocation8 + $0x598] sm:$0xff]
    %v1018 = vld [vmem:[#allocation8 + $0x5a0] sm:$0xff]
    %v1019 = vld [vmem:[#allocation8 + $0x5a8] sm:$0xff]
    %v1020 = vld [vmem:[#allocation8 + $0x5b0] sm:$0xff]
    %v1021 = vld [vmem:[#allocation8 + $0x5b8] sm:$0xff]
    %v1022 = vld [vmem:[#allocation8 + $0x5c0] sm:$0xff]
    %v1023 = vld [vmem:[#allocation8 + $0x5c8] sm:$0xff]
    %v1024 = vld [vmem:[#allocation8 + $0x5d0] sm:$0xff]
    %v1025 = vld [vmem:[#allocation8 + $0x5d8] sm:$0xff]
    %v1026 = vld [vmem:[#allocation8 + $0x5e0] sm:$0xff]
    %v1027 = vld [vmem:[#allocation8 + $0x5e8] sm:$0xff]
    %v1028 = vld [vmem:[#allocation8 + $0x5f0] sm:$0xff]
    %v1029 = vld [vmem:[#allocation8 + $0x5f8] sm:$0xff]
    %v1030 = vld [vmem:[#allocation8 + $0x600] sm:$0xff]
    %v1031 = vld [vmem:[#allocation8 + $0x608] sm:$0xff]
    %v1032 = vld [vmem:[#allocation8 + $0x610] sm:$0xff]
    %v1033 = vld [vmem:[#allocation8 + $0x618] sm:$0xff]
    %v1034 = vld [vmem:[#allocation8 + $0x620] sm:$0xff]
    %v1035 = vld [vmem:[#allocation8 + $0x628] sm:$0xff]
    %v1036 = vld [vmem:[#allocation8 + $0x630] sm:$0xff]
    %v1037 = vld [vmem:[#allocation8 + $0x638] sm:$0xff]
    %v1038 = vld [vmem:[#allocation8 + $0x640] sm:$0xff]
    %v1039 = vld [vmem:[#allocation8 + $0x648] sm:$0xff]
    %v1040 = vld [vmem:[#allocation8 + $0x650] sm:$0xff]
    %v1041 = vld [vmem:[#allocation8 + $0x658] sm:$0xff]
    %v1042 = vld [vmem:[#allocation8 + $0x660] sm:$0xff]
    %v1043 = vld [vmem:[#allocation8 + $0x668] sm:$0xff]
    %v1044 = vld [vmem:[#allocation8 + $0x670] sm:$0xff]
    %v1045 = vld [vmem:[#allocation8 + $0x678] sm:$0xff]
    %v1046 = vld [vmem:[#allocation8 + $0x680] sm:$0xff]
    %v1047 = vld [vmem:[#allocation8 + $0x688] sm:$0xff]
    %v1048 = vld [vmem:[#allocation8 + $0x690] sm:$0xff]
    %v1049 = vld [vmem:[#allocation8 + $0x698] sm:$0xff]
    %v1050 = vld [vmem:[#allocation8 + $0x6a0] sm:$0xff]
    %v1051 = vld [vmem:[#allocation8 + $0x6a8] sm:$0xff]
    %v1052 = vld [vmem:[#allocation8 + $0x6b0] sm:$0xff]
    %v1053 = vld [vmem:[#allocation8 + $0x6b8] sm:$0xff]
    %v1054 = vld [vmem:[#allocation8 + $0x6c0] sm:$0xff]
    %v1055 = vld [vmem:[#allocation8 + $0x6c8] sm:$0xff]
    %v1056 = vld [vmem:[#allocation8 + $0x6d0] sm:$0xff]
    %v1057 = vld [vmem:[#allocation8 + $0x6d8] sm:$0xff]
    %v1058 = vld [vmem:[#allocation8 + $0x6e0] sm:$0xff]
    %v1059 = vld [vmem:[#allocation8 + $0x6e8] sm:$0xff]
    %v1060 = vld [vmem:[#allocation8 + $0x6f0] sm:$0xff]
    %v1061 = vld [vmem:[#allocation8 + $0x6f8] sm:$0xff]
    %v1062 = vld [vmem:[#allocation8 + $0x700] sm:$0xff]
    %v1063 = vld [vmem:[#allocation8 + $0x708] sm:$0xff]
    %v1064 = vld [vmem:[#allocation8 + $0x710] sm:$0xff]
    %v1065 = vld [vmem:[#allocation8 + $0x718] sm:$0xff]
    %v1066 = vld [vmem:[#allocation8 + $0x720] sm:$0xff]
    %v1067 = vld [vmem:[#allocation8 + $0x728] sm:$0xff]
    %v1068 = vld [vmem:[#allocation8 + $0x730] sm:$0xff]
    %v1069 = vld [vmem:[#allocation8 + $0x738] sm:$0xff]
    %v1070 = vld [vmem:[#allocation8 + $0x740] sm:$0xff]
    %v1071 = vld [vmem:[#allocation8 + $0x748] sm:$0xff]
    %v1072 = vld [vmem:[#allocation8 + $0x750] sm:$0xff]
    %v1073 = vld [vmem:[#allocation8 + $0x758] sm:$0xff]
    %v1074 = vld [vmem:[#allocation8 + $0x760] sm:$0xff]
    %v1075 = vld [vmem:[#allocation8 + $0x768] sm:$0xff]
    %v1076 = vld [vmem:[#allocation8 + $0x770] sm:$0xff]
    %v1077 = vld [vmem:[#allocation8 + $0x778] sm:$0xff]
    %v1078 = vld [vmem:[#allocation8 + $0x780] sm:$0xff]
    %v1079 = vld [vmem:[#allocation8 + $0x788] sm:$0xff]
    %v1080 = vld [vmem:[#allocation8 + $0x790] sm:$0xff]
    %v1081 = vld [vmem:[#allocation8 + $0x798] sm:$0xff]
    %v1082 = vld [vmem:[#allocation8 + $0x7a0] sm:$0xff]
    %v1083 = vld [vmem:[#allocation8 + $0x7a8] sm:$0xff]
    %v1084 = vld [vmem:[#allocation8 + $0x7b0] sm:$0xff]
    %v1085 = vld [vmem:[#allocation8 + $0x7b8] sm:$0xff]
    %v1086 = vld [vmem:[#allocation8 + $0x7c0] sm:$0xff]
    %v1087 = vld [vmem:[#allocation8 + $0x7c8] sm:$0xff]
    %v1088 = vld [vmem:[#allocation8 + $0x7d0] sm:$0xff]
    %v1089 = vld [vmem:[#allocation8 + $0x7d8] sm:$0xff]
    %v1090 = vld [vmem:[#allocation8 + $0x7e0] sm:$0xff]
    %v1091 = vld [vmem:[#allocation8 + $0x7e8] sm:$0xff]
    %v1092 = vld [vmem:[#allocation8 + $0x7f0] sm:$0xff]
    %v1093 = vld [vmem:[#allocation8 + $0x7f8] sm:$0xff]
    %v1094 = vld [vmem:[#allocation8 + $0x800] sm:$0xff]
    %v1095 = vld [vmem:[#allocation8 + $0x808] sm:$0xff]
    %v1096 = vld [vmem:[#allocation8 + $0x810] sm:$0xff]
    %v1097 = vld [vmem:[#allocation8 + $0x818] sm:$0xff]
    %v1098 = vld [vmem:[#allocation8 + $0x820] sm:$0xff]
    %v1099 = vld [vmem:[#allocation8 + $0x828] sm:$0xff]
    %v1100 = vld [vmem:[#allocation8 + $0x830] sm:$0xff]
    %v1101 = vld [vmem:[#allocation8 + $0x838] sm:$0xff]
    %v1102 = vld [vmem:[#allocation8 + $0x840] sm:$0xff]
    %v1103 = vld [vmem:[#allocation8 + $0x848] sm:$0xff]
    %v1104 = vld [vmem:[#allocation8 + $0x850] sm:$0xff]
    %v1105 = vld [vmem:[#allocation8 + $0x858] sm:$0xff]
    %v1106 = vld [vmem:[#allocation8 + $0x860] sm:$0xff]
    %v1107 = vld [vmem:[#allocation8 + $0x868] sm:$0xff]
    %v1108 = vld [vmem:[#allocation8 + $0x870] sm:$0xff]
    %v1109 = vld [vmem:[#allocation8 + $0x878] sm:$0xff]
    %v1110 = vld [vmem:[#allocation8 + $0x880] sm:$0xff]
    %v1111 = vld [vmem:[#allocation8 + $0x888] sm:$0xff]
    %v1112 = vld [vmem:[#allocation8 + $0x890] sm:$0xff]
    %v1113 = vld [vmem:[#allocation8 + $0x898] sm:$0xff]
    %v1114 = vld [vmem:[#allocation8 + $0x8a0] sm:$0xff]
    %v1115 = vld [vmem:[#allocation8 + $0x8a8] sm:$0xff]
    %v1116 = vld [vmem:[#allocation8 + $0x8b0] sm:$0xff]
    %v1117 = vld [vmem:[#allocation8 + $0x8b8] sm:$0xff]
    %v1118 = vld [vmem:[#allocation8 + $0x8c0] sm:$0xff]
    %v1119 = vld [vmem:[#allocation8 + $0x8c8] sm:$0xff]
    %v1120 = vld [vmem:[#allocation8 + $0x8d0] sm:$0xff]
    %v1121 = vld [vmem:[#allocation8 + $0x8d8] sm:$0xff]
    %v1122 = vld [vmem:[#allocation8 + $0x8e0] sm:$0xff]
    %v1123 = vld [vmem:[#allocation8 + $0x8e8] sm:$0xff]
    %v1124 = vld [vmem:[#allocation8 + $0x8f0] sm:$0xff]
    %v1125 = vld [vmem:[#allocation8 + $0x8f8] sm:$0xff]
    %v1126 = vld [vmem:[#allocation8 + $0x900] sm:$0xff]
    %v1127 = vld [vmem:[#allocation8 + $0x908] sm:$0xff]
    %v1128 = vld [vmem:[#allocation8 + $0x910] sm:$0xff]
    %v1129 = vld [vmem:[#allocation8 + $0x918] sm:$0xff]
    %v1130 = vld [vmem:[#allocation8 + $0x920] sm:$0xff]
    %v1131 = vld [vmem:[#allocation8 + $0x928] sm:$0xff]
    %v1132 = vld [vmem:[#allocation8 + $0x930] sm:$0xff]
    %v1133 = vld [vmem:[#allocation8 + $0x938] sm:$0xff]
    %v1134 = vld [vmem:[#allocation8 + $0x940] sm:$0xff]
    %v1135 = vld [vmem:[#allocation8 + $0x948] sm:$0xff]
    %v1136 = vld [vmem:[#allocation8 + $0x950] sm:$0xff]
    %v1137 = vld [vmem:[#allocation8 + $0x958] sm:$0xff]
    %v1138 = vld [vmem:[#allocation8 + $0x960] sm:$0xff]
    %v1139 = vld [vmem:[#allocation8 + $0x968] sm:$0xff]
    %v1140 = vld [vmem:[#allocation8 + $0x970] sm:$0xff]
    %v1141 = vld [vmem:[#allocation8 + $0x978] sm:$0xff]
    %v1142 = vld [vmem:[#allocation8 + $0x980] sm:$0xff]
    %v1143 = vld [vmem:[#allocation8 + $0x988] sm:$0xff]
    %v1144 = vld [vmem:[#allocation8 + $0x990] sm:$0xff]
    %v1145 = vld [vmem:[#allocation8 + $0x998] sm:$0xff]
    %v1146 = vld [vmem:[#allocation8 + $0x9a0] sm:$0xff]
    %v1147 = vld [vmem:[#allocation8 + $0x9a8] sm:$0xff]
    %v1148 = vld [vmem:[#allocation8 + $0x9b0] sm:$0xff]
    %v1149 = vld [vmem:[#allocation8 + $0x9b8] sm:$0xff]
    %v1150 = vld [vmem:[#allocation8 + $0x9c0] sm:$0xff]
    %v1151 = vld [vmem:[#allocation8 + $0x9c8] sm:$0xff]
    %v1152 = vld [vmem:[#allocation8 + $0x9d0] sm:$0xff]
    %v1153 = vld [vmem:[#allocation8 + $0x9d8] sm:$0xff]
    %v1154 = vld [vmem:[#allocation8 + $0x9e0] sm:$0xff]
    %v1155 = vld [vmem:[#allocation8 + $0x9e8] sm:$0xff]
    %v1156 = vld [vmem:[#allocation8 + $0x9f0] sm:$0xff]
    %v1157 = vld [vmem:[#allocation8 + $0x9f8] sm:$0xff]
    %v1158 = vld [vmem:[#allocation8 + $0xa00] sm:$0xff]
    %v1159 = vld [vmem:[#allocation8 + $0xa08] sm:$0xff]
    %v1160 = vld [vmem:[#allocation8 + $0xa10] sm:$0xff]
    %v1161 = vld [vmem:[#allocation8 + $0xa18] sm:$0xff]
    %v1162 = vld [vmem:[#allocation8 + $0xa20] sm:$0xff]
    %v1163 = vld [vmem:[#allocation8 + $0xa28] sm:$0xff]
    %v1164 = vld [vmem:[#allocation8 + $0xa30] sm:$0xff]
    %v1165 = vld [vmem:[#allocation8 + $0xa38] sm:$0xff]
    %v1166 = vld [vmem:[#allocation8 + $0xa40] sm:$0xff]
    %v1167 = vld [vmem:[#allocation8 + $0xa48] sm:$0xff]
    %v1168 = vld [vmem:[#allocation8 + $0xa50] sm:$0xff]
    %v1169 = vld [vmem:[#allocation8 + $0xa58] sm:$0xff]
    %v1170 = vld [vmem:[#allocation8 + $0xa60] sm:$0xff]
    %v1171 = vld [vmem:[#allocation8 + $0xa68] sm:$0xff]
    %v1172 = vld [vmem:[#allocation8 + $0xa70] sm:$0xff]
    %v1173 = vld [vmem:[#allocation8 + $0xa78] sm:$0xff]
    %v1174 = vld [vmem:[#allocation8 + $0xa80] sm:$0xff]
    %v1175 = vld [vmem:[#allocation8 + $0xa88] sm:$0xff]
    %v1176 = vld [vmem:[#allocation8 + $0xa90] sm:$0xff]
    %v1177 = vld [vmem:[#allocation8 + $0xa98] sm:$0xff]
    %v1178 = vld [vmem:[#allocation8 + $0xaa0] sm:$0xff]
    %v1179 = vld [vmem:[#allocation8 + $0xaa8] sm:$0xff]
    %v1180 = vld [vmem:[#allocation8 + $0xab0] sm:$0xff]
    %v1181 = vld [vmem:[#allocation8 + $0xab8] sm:$0xff]
    %v1182 = vld [vmem:[#allocation8 + $0xac0] sm:$0xff]
    %v1183 = vld [vmem:[#allocation8 + $0xac8] sm:$0xff]
    %v1184 = vld [vmem:[#allocation8 + $0xad0] sm:$0xff]
    %v1185 = vld [vmem:[#allocation8 + $0xad8] sm:$0xff]
    %v1186 = vld [vmem:[#allocation8 + $0xae0] sm:$0xff]
    %v1187 = vld [vmem:[#allocation8 + $0xae8] sm:$0xff]
    %v1188 = vld [vmem:[#allocation8 + $0xaf0] sm:$0xff]
    %v1189 = vld [vmem:[#allocation8 + $0xaf8] sm:$0xff]
    %v1190 = vld [vmem:[#allocation8 + $0xb00] sm:$0xff]
    %v1191 = vld [vmem:[#allocation8 + $0xb08] sm:$0xff]
    %v1192 = vld [vmem:[#allocation8 + $0xb10] sm:$0xff]
    %v1193 = vld [vmem:[#allocation8 + $0xb18] sm:$0xff]
    %v1194 = vld [vmem:[#allocation8 + $0xb20] sm:$0xff]
    %v1195 = vld [vmem:[#allocation8 + $0xb28] sm:$0xff]
    %v1196 = vld [vmem:[#allocation8 + $0xb30] sm:$0xff]
    %v1197 = vld [vmem:[#allocation8 + $0xb38] sm:$0xff]
    %v1198 = vld [vmem:[#allocation8 + $0xb40] sm:$0xff]
    %v1199 = vld [vmem:[#allocation8 + $0xb48] sm:$0xff]
    %v1200 = vld [vmem:[#allocation8 + $0xb50] sm:$0xff]
    %v1201 = vld [vmem:[#allocation8 + $0xb58] sm:$0xff]
    %v1202 = vld [vmem:[#allocation8 + $0xb60] sm:$0xff]
    %v1203 = vld [vmem:[#allocation8 + $0xb68] sm:$0xff]
    %v1204 = vld [vmem:[#allocation8 + $0xb70] sm:$0xff]
    %v1205 = vld [vmem:[#allocation8 + $0xb78] sm:$0xff]
    %v1206 = vld [vmem:[#allocation8 + $0xb80] sm:$0xff]
    %v1207 = vld [vmem:[#allocation8 + $0xb88] sm:$0xff]
    %v1208 = vld [vmem:[#allocation8 + $0xb90] sm:$0xff]
    %v1209 = vld [vmem:[#allocation8 + $0xb98] sm:$0xff]
    %v1210 = vld [vmem:[#allocation8 + $0xba0] sm:$0xff]
    %v1211 = vld [vmem:[#allocation8 + $0xba8] sm:$0xff]
    %v1212 = vld [vmem:[#allocation8 + $0xbb0] sm:$0xff]
    %v1213 = vld [vmem:[#allocation8 + $0xbb8] sm:$0xff]
    %v1214 = vld [vmem:[#allocation8 + $0xbc0] sm:$0xff]
    %v1215 = vld [vmem:[#allocation8 + $0xbc8] sm:$0xff]
    %v1216 = vld [vmem:[#allocation8 + $0xbd0] sm:$0xff]
    %v1217 = vld [vmem:[#allocation8 + $0xbd8] sm:$0xff]
    %v1218 = vld [vmem:[#allocation8 + $0xbe0] sm:$0xff]
    %v1219 = vld [vmem:[#allocation8 + $0xbe8] sm:$0xff]
    %v1220 = vld [vmem:[#allocation8 + $0xbf0] sm:$0xff]
    %v1221 = vld [vmem:[#allocation8 + $0xbf8] sm:$0xff]
    %v1222 = vld [vmem:[#allocation8 + $0xc00] sm:$0xff]
    %v1223 = vld [vmem:[#allocation8 + $0xc08] sm:$0xff]
    %v1224 = vld [vmem:[#allocation8 + $0xc10] sm:$0xff]
    %v1225 = vld [vmem:[#allocation8 + $0xc18] sm:$0xff]
    %v1226 = vld [vmem:[#allocation8 + $0xc20] sm:$0xff]
    %v1227 = vld [vmem:[#allocation8 + $0xc28] sm:$0xff]
    %v1228 = vld [vmem:[#allocation8 + $0xc30] sm:$0xff]
    %v1229 = vld [vmem:[#allocation8 + $0xc38] sm:$0xff]
    %v1230 = vld [vmem:[#allocation8 + $0xc40] sm:$0xff]
    %v1231 = vld [vmem:[#allocation8 + $0xc48] sm:$0xff]
    %v1232 = vld [vmem:[#allocation8 + $0xc50] sm:$0xff]
    %v1233 = vld [vmem:[#allocation8 + $0xc58] sm:$0xff]
    %v1234 = vld [vmem:[#allocation8 + $0xc60] sm:$0xff]
    %v1235 = vld [vmem:[#allocation8 + $0xc68] sm:$0xff]
    %v1236 = vld [vmem:[#allocation8 + $0xc70] sm:$0xff]
    %v1237 = vld [vmem:[#allocation8 + $0xc78] sm:$0xff]
    %v1238 = vld [vmem:[#allocation8 + $0xc80] sm:$0xff]
    %v1239 = vld [vmem:[#allocation8 + $0xc88] sm:$0xff]
    %v1240 = vld [vmem:[#allocation8 + $0xc90] sm:$0xff]
    %v1241 = vld [vmem:[#allocation8 + $0xc98] sm:$0xff]
    %v1242 = vld [vmem:[#allocation8 + $0xca0] sm:$0xff]
    %v1243 = vld [vmem:[#allocation8 + $0xca8] sm:$0xff]
    %v1244 = vld [vmem:[#allocation8 + $0xcb0] sm:$0xff]
    %v1245 = vld [vmem:[#allocation8 + $0xcb8] sm:$0xff]
    %v1246 = vld [vmem:[#allocation8 + $0xcc0] sm:$0xff]
    %v1247 = vld [vmem:[#allocation8 + $0xcc8] sm:$0xff]
    %v1248 = vld [vmem:[#allocation8 + $0xcd0] sm:$0xff]
    %v1249 = vld [vmem:[#allocation8 + $0xcd8] sm:$0xff]
    %v1250 = vld [vmem:[#allocation8 + $0xce0] sm:$0xff]
    %v1251 = vld [vmem:[#allocation8 + $0xce8] sm:$0xff]
    %v1252 = vld [vmem:[#allocation8 + $0xcf0] sm:$0xff]
    %v1253 = vld [vmem:[#allocation8 + $0xcf8] sm:$0xff]
    %v1254 = vld [vmem:[#allocation8 + $0xd00] sm:$0xff]
    %v1255 = vld [vmem:[#allocation8 + $0xd08] sm:$0xff]
    %v1256 = vld [vmem:[#allocation8 + $0xd10] sm:$0xff]
    %v1257 = vld [vmem:[#allocation8 + $0xd18] sm:$0xff]
    %v1258 = vld [vmem:[#allocation8 + $0xd20] sm:$0xff]
    %v1259 = vld [vmem:[#allocation8 + $0xd28] sm:$0xff]
    %v1260 = vld [vmem:[#allocation8 + $0xd30] sm:$0xff]
    %v1261 = vld [vmem:[#allocation8 + $0xd38] sm:$0xff]
    %v1262 = vld [vmem:[#allocation8 + $0xd40] sm:$0xff]
    %v1263 = vld [vmem:[#allocation8 + $0xd48] sm:$0xff]
    %v1264 = vld [vmem:[#allocation8 + $0xd50] sm:$0xff]
    %v1265 = vld [vmem:[#allocation8 + $0xd58] sm:$0xff]
    %v1266 = vld [vmem:[#allocation8 + $0xd60] sm:$0xff]
    %v1267 = vld [vmem:[#allocation8 + $0xd68] sm:$0xff]
    %v1268 = vld [vmem:[#allocation8 + $0xd70] sm:$0xff]
    %v1269 = vld [vmem:[#allocation8 + $0xd78] sm:$0xff]
    %v1270 = vld [vmem:[#allocation8 + $0xd80] sm:$0xff]
    %v1271 = vld [vmem:[#allocation8 + $0xd88] sm:$0xff]
    %v1272 = vld [vmem:[#allocation8 + $0xd90] sm:$0xff]
    %v1273 = vld [vmem:[#allocation8 + $0xd98] sm:$0xff]
    %v1274 = vld [vmem:[#allocation8 + $0xda0] sm:$0xff]
    %v1275 = vld [vmem:[#allocation8 + $0xda8] sm:$0xff]
    %v1276 = vld [vmem:[#allocation8 + $0xdb0] sm:$0xff]
    %v1277 = vld [vmem:[#allocation8 + $0xdb8] sm:$0xff]
    %v1278 = vld [vmem:[#allocation8 + $0xdc0] sm:$0xff]
    %v1279 = vld [vmem:[#allocation8 + $0xdc8] sm:$0xff]
    %v1280 = vld [vmem:[#allocation8 + $0xdd0] sm:$0xff]
    %v1281 = vld [vmem:[#allocation8 + $0xdd8] sm:$0xff]
    %v1282 = vld [vmem:[#allocation8 + $0xde0] sm:$0xff]
    %v1283 = vld [vmem:[#allocation8 + $0xde8] sm:$0xff]
    %v1284 = vld [vmem:[#allocation8 + $0xdf0] sm:$0xff]
    %v1285 = vld [vmem:[#allocation8 + $0xdf8] sm:$0xff]
    %v1286 = vld [vmem:[#allocation8 + $0xe00] sm:$0xff]
    %v1287 = vld [vmem:[#allocation8 + $0xe08] sm:$0xff]
    %v1288 = vld [vmem:[#allocation8 + $0xe10] sm:$0xff]
    %v1289 = vld [vmem:[#allocation8 + $0xe18] sm:$0xff]
    %v1290 = vld [vmem:[#allocation8 + $0xe20] sm:$0xff]
    %v1291 = vld [vmem:[#allocation8 + $0xe28] sm:$0xff]
    %v1292 = vld [vmem:[#allocation8 + $0xe30] sm:$0xff]
    %v1293 = vld [vmem:[#allocation8 + $0xe38] sm:$0xff]
    %v1294 = vld [vmem:[#allocation8 + $0xe40] sm:$0xff]
    %v1295 = vld [vmem:[#allocation8 + $0xe48] sm:$0xff]
    %v1296 = vld [vmem:[#allocation8 + $0xe50] sm:$0xff]
    %v1297 = vld [vmem:[#allocation8 + $0xe58] sm:$0xff]
    %v1298 = vld [vmem:[#allocation8 + $0xe60] sm:$0xff]
    %v1299 = vld [vmem:[#allocation8 + $0xe68] sm:$0xff]
    %v1300 = vld [vmem:[#allocation8 + $0xe70] sm:$0xff]
    %v1301 = vld [vmem:[#allocation8 + $0xe78] sm:$0xff]
    %v1302 = vld [vmem:[#allocation8 + $0xe80] sm:$0xff]
    %v1303 = vld [vmem:[#allocation8 + $0xe88] sm:$0xff]
    %v1304 = vld [vmem:[#allocation8 + $0xe90] sm:$0xff]
    %v1305 = vld [vmem:[#allocation8 + $0xe98] sm:$0xff]
    %v1306 = vld [vmem:[#allocation8 + $0xea0] sm:$0xff]
    %v1307 = vld [vmem:[#allocation8 + $0xea8] sm:$0xff]
    %v1308 = vld [vmem:[#allocation8 + $0xeb0] sm:$0xff]
    %v1309 = vld [vmem:[#allocation8 + $0xeb8] sm:$0xff]
    %v1310 = vld [vmem:[#allocation8 + $0xec0] sm:$0xff]
    %v1311 = vld [vmem:[#allocation8 + $0xec8] sm:$0xff]
    %v1312 = vld [vmem:[#allocation8 + $0xed0] sm:$0xff]
    %v1313 = vld [vmem:[#allocation8 + $0xed8] sm:$0xff]
    %v1314 = vld [vmem:[#allocation8 + $0xee0] sm:$0xff]
    %v1315 = vld [vmem:[#allocation8 + $0xee8] sm:$0xff]
    %v1316 = vld [vmem:[#allocation8 + $0xef0] sm:$0xff]
    %v1317 = vld [vmem:[#allocation8 + $0xef8] sm:$0xff]
    %v1318 = vld [vmem:[#allocation8 + $0xf00] sm:$0xff]
    %v1319 = vld [vmem:[#allocation8 + $0xf08] sm:$0xff]
    %v1320 = vld [vmem:[#allocation8 + $0xf10] sm:$0xff]
    %v1321 = vld [vmem:[#allocation8 + $0xf18] sm:$0xff]
    %v1322 = vld [vmem:[#allocation8 + $0xf20] sm:$0xff]
    %v1323 = vld [vmem:[#allocation8 + $0xf28] sm:$0xff]
    %v1324 = vld [vmem:[#allocation8 + $0xf30] sm:$0xff]
    %v1325 = vld [vmem:[#allocation8 + $0xf38] sm:$0xff]
    %v1326 = vld [vmem:[#allocation8 + $0xf40] sm:$0xff]
    %v1327 = vld [vmem:[#allocation8 + $0xf48] sm:$0xff]
    %v1328 = vld [vmem:[#allocation8 + $0xf50] sm:$0xff]
    %v1329 = vld [vmem:[#allocation8 + $0xf58] sm:$0xff]
    %v1330 = vld [vmem:[#allocation8 + $0xf60] sm:$0xff]
    %v1331 = vld [vmem:[#allocation8 + $0xf68] sm:$0xff]
    %v1332 = vld [vmem:[#allocation8 + $0xf70] sm:$0xff]
    %v1333 = vld [vmem:[#allocation8 + $0xf78] sm:$0xff]
    %v1334 = vld [vmem:[#allocation8 + $0xf80] sm:$0xff]
    %v1335 = vld [vmem:[#allocation8 + $0xf88] sm:$0xff]
    %v1336 = vld [vmem:[#allocation8 + $0xf90] sm:$0xff]
    %v1337 = vld [vmem:[#allocation8 + $0xf98] sm:$0xff]
    %v1338 = vld [vmem:[#allocation8 + $0xfa0] sm:$0xff]
    %v1339 = vld [vmem:[#allocation8 + $0xfa8] sm:$0xff]
    %v1340 = vld [vmem:[#allocation8 + $0xfb0] sm:$0xff]
    %v1341 = vld [vmem:[#allocation8 + $0xfb8] sm:$0xff]
    %v1342 = vld [vmem:[#allocation8 + $0xfc0] sm:$0xff]
    %v1343 = vld [vmem:[#allocation8 + $0xfc8] sm:$0xff]
    %v1344 = vld [vmem:[#allocation8 + $0xfd0] sm:$0xff]
    %v1345 = vld [vmem:[#allocation8 + $0xfd8] sm:$0xff]
    %v1346 = vld [vmem:[#allocation8 + $0xfe0] sm:$0xff]
    %v1347 = vld [vmem:[#allocation8 + $0xfe8] sm:$0xff]
    %v1348 = vld [vmem:[#allocation8 + $0xff0] sm:$0xff]
    %v1349 = vld [vmem:[#allocation8 + $0xff8] sm:$0xff]
    %v1350 = vld [vmem:[#allocation10] sm:$0xf]
    %v1352 = vlaneseq
    %v1353 = vshrl.u32 %v1352, 7
    %v1354 = vsub.s32 0, %v1353
    %v1355 = vrot.slane %v1350, %v1354
    %v1356 = vlaneseq
    %v1357 = vshrl.u32 %v1356, 7
    %v1358 = vsub.s32 1, %v1357
    %v1359 = vrot.slane %v1350, %v1358
    %v1360 = vlaneseq
    %v1361 = vshrl.u32 %v1360, 7
    %v1362 = vsub.s32 2, %v1361
    %v1363 = vrot.slane %v1350, %v1362
    %v1364 = vlaneseq
    %v1365 = vshrl.u32 %v1364, 7
    %v1366 = vsub.s32 3, %v1365
    %v1367 = vrot.slane %v1350, %v1366
    %1372 = vmatprep.subr.mxu0 %v899
    %1373 = vmatpush1.msra.mxu0 %v898
    %1374 = vmatprep.subr.mxu0 %v895
    %1375 = vmatpush1.msra.mxu0 %v894
    %1376 = vmatprep.subr.mxu0 %v891
    %1377 = vmatpush1.msra.mxu0 %v890
    %1378 = vmatprep.subr.mxu0 %v887
    %1379 = vmatpush1.msra.mxu0 %v886
    %1380 = vmatprep.subr.mxu0 %v883
    %1381 = vmatpush1.msra.mxu0 %v882
    %1382 = vmatprep.subr.mxu0 %v879
    %1383 = vmatpush1.msra.mxu0 %v878
    %1384 = vmatprep.subr.mxu0 %v875
    %1385 = vmatpush1.msra.mxu0 %v874
    %1386 = vmatprep.subr.mxu0 %v871
    %1387 = vmatpush1.msra.mxu0 %v870
    %1388 = vmatprep.subr.mxu0 %v867
    %1389 = vmatpush1.msra.mxu0 %v866
    %1390 = vmatprep.subr.mxu0 %v863
    %1391 = vmatpush1.msra.mxu0 %v862
    %1392 = vmatprep.subr.mxu0 %v859
    %1393 = vmatpush1.msra.mxu0 %v858
    %1394 = vmatprep.subr.mxu0 %v855
    %1395 = vmatpush1.msra.mxu0 %v854
    %1396 = vmatprep.subr.mxu0 %v851
    %1397 = vmatpush1.msra.mxu0 %v850
    %1398 = vmatprep.subr.mxu0 %v847
    %1399 = vmatpush1.msra.mxu0 %v846
    %1400 = vmatprep.subr.mxu0 %v843
    %1401 = vmatpush1.msra.mxu0 %v842
    %1402 = vmatprep.subr.mxu0 %v839
    %1403 = vmatpush1.msra.mxu0 %v838
    %1404 = vmatprep.subr.mxu0 %v963
    %1405 = vmatpush2.msra.mxu0 %v962
    %1406 = vmatprep.subr.mxu0 %v959
    %1407 = vmatpush2.msra.mxu0 %v958
    %1408 = vmatprep.subr.mxu0 %v955
    %1409 = vmatpush2.msra.mxu0 %v954
    %1410 = vmatprep.subr.mxu0 %v951
    %1411 = vmatpush2.msra.mxu0 %v950
    %1412 = vmatprep.subr.mxu0 %v947
    %1413 = vmatpush2.msra.mxu0 %v946
    %1414 = vmatprep.subr.mxu0 %v943
    %1415 = vmatpush2.msra.mxu0 %v942
    %1416 = vmatprep.subr.mxu0 %v939
    %1417 = vmatpush2.msra.mxu0 %v938
    %1418 = vmatprep.subr.mxu0 %v935
    %1419 = vmatpush2.msra.mxu0 %v934
    %1420 = vmatprep.subr.mxu0 %v931
    %1421 = vmatpush2.msra.mxu0 %v930
    %1422 = vmatprep.subr.mxu0 %v927
    %1423 = vmatpush2.msra.mxu0 %v926
    %1424 = vmatprep.subr.mxu0 %v923
    %1425 = vmatpush2.msra.mxu0 %v922
    %1426 = vmatprep.subr.mxu0 %v919
    %1427 = vmatpush2.msra.mxu0 %v918
    %1428 = vmatprep.subr.mxu0 %v915
    %1429 = vmatpush2.msra.mxu0 %v914
    %1430 = vmatprep.subr.mxu0 %v911
    %1431 = vmatpush2.msra.mxu0 %v910
    %1432 = vmatprep.subr.mxu0 %v907
    %1433 = vmatpush2.msra.mxu0 %v906
    %1434 = vmatprep.subr.mxu0 %v903
    %1435 = vmatpush2.msra.mxu0 %v902
    %1436 = vmatprep.mubr.f32.mxu0 %v823
    %1437 = vmatmul.mubr.f32.gmra.mxu0 %v822
    %v1438 = vpop.f32.mrf.mxu0
    %v1439 = vadd.f32 %v1355, %v1438
    %v1440 = vpop.f32.mrf.mxu0
    %v1441 = vadd.f32 %v1359, %v1440
    %1442 = vmatprep.mubr.f32.mxu0 %v831
    %1443 = vmatmul.mubr.f32.gmra.mxu0 %v830
    %v1444 = vpop.f32.mrf.mxu0
    %v1445 = vadd.f32 %v1355, %v1444
    %v1446 = vpop.f32.mrf.mxu0
    %v1447 = vadd.f32 %v1359, %v1446
    %1448 = vdwg.mxu0
    %1449 = vmatprep.subr.mxu0 %v1027
    %1450 = vmatpush1.msra.mxu0 %v1026
    %1451 = vmatprep.subr.mxu0 %v1023
    %1452 = vmatpush1.msra.mxu0 %v1022
    %1453 = vmatprep.subr.mxu0 %v1019
    %1454 = vmatpush1.msra.mxu0 %v1018
    %1455 = vmatprep.subr.mxu0 %v1015
    %1456 = vmatpush1.msra.mxu0 %v1014
    %1457 = vmatprep.subr.mxu0 %v1011
    %1458 = vmatpush1.msra.mxu0 %v1010
    %1459 = vmatprep.subr.mxu0 %v1007
    %1460 = vmatpush1.msra.mxu0 %v1006
    %1461 = vmatprep.subr.mxu0 %v1003
    %1462 = vmatpush1.msra.mxu0 %v1002
    %1463 = vmatprep.subr.mxu0 %v999
    %1464 = vmatpush1.msra.mxu0 %v998
    %1465 = vmatprep.subr.mxu0 %v995
    %1466 = vmatpush1.msra.mxu0 %v994
    %1467 = vmatprep.subr.mxu0 %v991
    %1468 = vmatpush1.msra.mxu0 %v990
    %1469 = vmatprep.subr.mxu0 %v987
    %1470 = vmatpush1.msra.mxu0 %v986
    %1471 = vmatprep.subr.mxu0 %v983
    %1472 = vmatpush1.msra.mxu0 %v982
    %1473 = vmatprep.subr.mxu0 %v979
    %1474 = vmatpush1.msra.mxu0 %v978
    %1475 = vmatprep.subr.mxu0 %v975
    %1476 = vmatpush1.msra.mxu0 %v974
    %1477 = vmatprep.subr.mxu0 %v971
    %1478 = vmatpush1.msra.mxu0 %v970
    %1479 = vmatprep.subr.mxu0 %v967
    %1480 = vmatpush1.msra.mxu0 %v966
    %1481 = vmatprep.subr.mxu0 %v1091
    %1482 = vmatpush2.msra.mxu0 %v1090
    %1483 = vmatprep.subr.mxu0 %v1087
    %1484 = vmatpush2.msra.mxu0 %v1086
    %1485 = vmatprep.subr.mxu0 %v1083
    %1486 = vmatpush2.msra.mxu0 %v1082
    %1487 = vmatprep.subr.mxu0 %v1079
    %1488 = vmatpush2.msra.mxu0 %v1078
    %1489 = vmatprep.subr.mxu0 %v1075
    %1490 = vmatpush2.msra.mxu0 %v1074
    %1491 = vmatprep.subr.mxu0 %v1071
    %1492 = vmatpush2.msra.mxu0 %v1070
    %1493 = vmatprep.subr.mxu0 %v1067
    %1494 = vmatpush2.msra.mxu0 %v1066
    %1495 = vmatprep.subr.mxu0 %v1063
    %1496 = vmatpush2.msra.mxu0 %v1062
    %1497 = vmatprep.subr.mxu0 %v1059
    %1498 = vmatpush2.msra.mxu0 %v1058
    %1499 = vmatprep.subr.mxu0 %v1055
    %1500 = vmatpush2.msra.mxu0 %v1054
    %1501 = vmatprep.subr.mxu0 %v1051
    %1502 = vmatpush2.msra.mxu0 %v1050
    %1503 = vmatprep.subr.mxu0 %v1047
    %1504 = vmatpush2.msra.mxu0 %v1046
    %1505 = vmatprep.subr.mxu0 %v1043
    %1506 = vmatpush2.msra.mxu0 %v1042
    %1507 = vmatprep.subr.mxu0 %v1039
    %1508 = vmatpush2.msra.mxu0 %v1038
    %1509 = vmatprep.subr.mxu0 %v1035
    %1510 = vmatpush2.msra.mxu0 %v1034
    %1511 = vmatprep.subr.mxu0 %v1031
    %1512 = vmatpush2.msra.mxu0 %v1030
    %1513 = vmatprep.mubr.f32.mxu0 %v825
    %1514 = vmatmul.mubr.f32.gmra.mxu0 %v824
    %v1515 = vpop.f32.mrf.mxu0
    %v1516 = vadd.f32 %v1439, %v1515
    %v1517 = vpop.f32.mrf.mxu0
    %v1518 = vadd.f32 %v1441, %v1517
    %1519 = vmatprep.mubr.f32.mxu0 %v833
    %1520 = vmatmul.mubr.f32.gmra.mxu0 %v832
    %v1521 = vpop.f32.mrf.mxu0
    %v1522 = vadd.f32 %v1445, %v1521
    %v1523 = vpop.f32.mrf.mxu0
    %v1524 = vadd.f32 %v1447, %v1523
    %1525 = vdwg.mxu0
    %1526 = vmatprep.subr.mxu0 %v1155
    %1527 = vmatpush1.msra.mxu0 %v1154
    %1528 = vmatprep.subr.mxu0 %v1151
    %1529 = vmatpush1.msra.mxu0 %v1150
    %1530 = vmatprep.subr.mxu0 %v1147
    %1531 = vmatpush1.msra.mxu0 %v1146
    %1532 = vmatprep.subr.mxu0 %v1143
    %1533 = vmatpush1.msra.mxu0 %v1142
    %1534 = vmatprep.subr.mxu0 %v1139
    %1535 = vmatpush1.msra.mxu0 %v1138
    %1536 = vmatprep.subr.mxu0 %v1135
    %1537 = vmatpush1.msra.mxu0 %v1134
    %1538 = vmatprep.subr.mxu0 %v1131
    %1539 = vmatpush1.msra.mxu0 %v1130
    %1540 = vmatprep.subr.mxu0 %v1127
    %1541 = vmatpush1.msra.mxu0 %v1126
    %1542 = vmatprep.subr.mxu0 %v1123
    %1543 = vmatpush1.msra.mxu0 %v1122
    %1544 = vmatprep.subr.mxu0 %v1119
    %1545 = vmatpush1.msra.mxu0 %v1118
    %1546 = vmatprep.subr.mxu0 %v1115
    %1547 = vmatpush1.msra.mxu0 %v1114
    %1548 = vmatprep.subr.mxu0 %v1111
    %1549 = vmatpush1.msra.mxu0 %v1110
    %1550 = vmatprep.subr.mxu0 %v1107
    %1551 = vmatpush1.msra.mxu0 %v1106
    %1552 = vmatprep.subr.mxu0 %v1103
    %1553 = vmatpush1.msra.mxu0 %v1102
    %1554 = vmatprep.subr.mxu0 %v1099
    %1555 = vmatpush1.msra.mxu0 %v1098
    %1556 = vmatprep.subr.mxu0 %v1095
    %1557 = vmatpush1.msra.mxu0 %v1094
    %1558 = vmatprep.subr.mxu0 %v1219
    %1559 = vmatpush2.msra.mxu0 %v1218
    %1560 = vmatprep.subr.mxu0 %v1215
    %1561 = vmatpush2.msra.mxu0 %v1214
    %1562 = vmatprep.subr.mxu0 %v1211
    %1563 = vmatpush2.msra.mxu0 %v1210
    %1564 = vmatprep.subr.mxu0 %v1207
    %1565 = vmatpush2.msra.mxu0 %v1206
    %1566 = vmatprep.subr.mxu0 %v1203
    %1567 = vmatpush2.msra.mxu0 %v1202
    %1568 = vmatprep.subr.mxu0 %v1199
    %1569 = vmatpush2.msra.mxu0 %v1198
    %1570 = vmatprep.subr.mxu0 %v1195
    %1571 = vmatpush2.msra.mxu0 %v1194
    %1572 = vmatprep.subr.mxu0 %v1191
    %1573 = vmatpush2.msra.mxu0 %v1190
    %1574 = vmatprep.subr.mxu0 %v1187
    %1575 = vmatpush2.msra.mxu0 %v1186
    %1576 = vmatprep.subr.mxu0 %v1183
    %1577 = vmatpush2.msra.mxu0 %v1182
    %1578 = vmatprep.subr.mxu0 %v1179
    %1579 = vmatpush2.msra.mxu0 %v1178
    %1580 = vmatprep.subr.mxu0 %v1175
    %1581 = vmatpush2.msra.mxu0 %v1174
    %1582 = vmatprep.subr.mxu0 %v1171
    %1583 = vmatpush2.msra.mxu0 %v1170
    %1584 = vmatprep.subr.mxu0 %v1167
    %1585 = vmatpush2.msra.mxu0 %v1166
    %1586 = vmatprep.subr.mxu0 %v1163
    %1587 = vmatpush2.msra.mxu0 %v1162
    %1588 = vmatprep.subr.mxu0 %v1159
    %1589 = vmatpush2.msra.mxu0 %v1158
    %1590 = vmatprep.mubr.f32.mxu0 %v827
    %1591 = vmatmul.mubr.f32.gmra.mxu0 %v826
    %v1592 = vpop.f32.mrf.mxu0
    %v1593 = vadd.f32 %v1516, %v1592
    %v1594 = vpop.f32.mrf.mxu0
    %v1595 = vadd.f32 %v1518, %v1594
    %1596 = vmatprep.mubr.f32.mxu0 %v835
    %1597 = vmatmul.mubr.f32.gmra.mxu0 %v834
    %v1598 = vpop.f32.mrf.mxu0
    %v1599 = vadd.f32 %v1522, %v1598
    %v1600 = vpop.f32.mrf.mxu0
    %v1601 = vadd.f32 %v1524, %v1600
    %1602 = vdwg.mxu0
    %1603 = vmatprep.subr.mxu0 %v1283
    %1604 = vmatpush1.msra.mxu0 %v1282
    %1605 = vmatprep.subr.mxu0 %v1279
    %1606 = vmatpush1.msra.mxu0 %v1278
    %1607 = vmatprep.subr.mxu0 %v1275
    %1608 = vmatpush1.msra.mxu0 %v1274
    %1609 = vmatprep.subr.mxu0 %v1271
    %1610 = vmatpush1.msra.mxu0 %v1270
    %1611 = vmatprep.subr.mxu0 %v1267
    %1612 = vmatpush1.msra.mxu0 %v1266
    %1613 = vmatprep.subr.mxu0 %v1263
    %1614 = vmatpush1.msra.mxu0 %v1262
    %1615 = vmatprep.subr.mxu0 %v1259
    %1616 = vmatpush1.msra.mxu0 %v1258
    %1617 = vmatprep.subr.mxu0 %v1255
    %1618 = vmatpush1.msra.mxu0 %v1254
    %1619 = vmatprep.subr.mxu0 %v1251
    %1620 = vmatpush1.msra.mxu0 %v1250
    %1621 = vmatprep.subr.mxu0 %v1247
    %1622 = vmatpush1.msra.mxu0 %v1246
    %1623 = vmatprep.subr.mxu0 %v1243
    %1624 = vmatpush1.msra.mxu0 %v1242
    %1625 = vmatprep.subr.mxu0 %v1239
    %1626 = vmatpush1.msra.mxu0 %v1238
    %1627 = vmatprep.subr.mxu0 %v1235
    %1628 = vmatpush1.msra.mxu0 %v1234
    %1629 = vmatprep.subr.mxu0 %v1231
    %1630 = vmatpush1.msra.mxu0 %v1230
    %1631 = vmatprep.subr.mxu0 %v1227
    %1632 = vmatpush1.msra.mxu0 %v1226
    %1633 = vmatprep.subr.mxu0 %v1223
    %1634 = vmatpush1.msra.mxu0 %v1222
    %1635 = vmatprep.subr.mxu0 %v1347
    %1636 = vmatpush2.msra.mxu0 %v1346
    %1637 = vmatprep.subr.mxu0 %v1343
    %1638 = vmatpush2.msra.mxu0 %v1342
    %1639 = vmatprep.subr.mxu0 %v1339
    %1640 = vmatpush2.msra.mxu0 %v1338
    %1641 = vmatprep.subr.mxu0 %v1335
    %1642 = vmatpush2.msra.mxu0 %v1334
    %1643 = vmatprep.subr.mxu0 %v1331
    %1644 = vmatpush2.msra.mxu0 %v1330
    %1645 = vmatprep.subr.mxu0 %v1327
    %1646 = vmatpush2.msra.mxu0 %v1326
    %1647 = vmatprep.subr.mxu0 %v1323
    %1648 = vmatpush2.msra.mxu0 %v1322
    %1649 = vmatprep.subr.mxu0 %v1319
    %1650 = vmatpush2.msra.mxu0 %v1318
    %1651 = vmatprep.subr.mxu0 %v1315
    %1652 = vmatpush2.msra.mxu0 %v1314
    %1653 = vmatprep.subr.mxu0 %v1311
    %1654 = vmatpush2.msra.mxu0 %v1310
    %1655 = vmatprep.subr.mxu0 %v1307
    %1656 = vmatpush2.msra.mxu0 %v1306
    %1657 = vmatprep.subr.mxu0 %v1303
    %1658 = vmatpush2.msra.mxu0 %v1302
    %1659 = vmatprep.subr.mxu0 %v1299
    %1660 = vmatpush2.msra.mxu0 %v1298
    %1661 = vmatprep.subr.mxu0 %v1295
    %1662 = vmatpush2.msra.mxu0 %v1294
    %1663 = vmatprep.subr.mxu0 %v1291
    %1664 = vmatpush2.msra.mxu0 %v1290
    %1665 = vmatprep.subr.mxu0 %v1287
    %1666 = vmatpush2.msra.mxu0 %v1286
    %1667 = vmatprep.mubr.f32.mxu0 %v829
    %1668 = vmatmul.mubr.f32.gmra.mxu0 %v828
    %v1669 = vpop.f32.mrf.mxu0
    %v1670 = vadd.f32 %v1593, %v1669
    %v1671 = vpop.f32.mrf.mxu0
    %v1672 = vadd.f32 %v1595, %v1671
    %1673 = vmatprep.mubr.f32.mxu0 %v837
    %1674 = vmatmul.mubr.f32.gmra.mxu0 %v836
    %v1675 = vpop.f32.mrf.mxu0
    %v1676 = vadd.f32 %v1599, %v1675
    %v1677 = vpop.f32.mrf.mxu0
    %v1678 = vadd.f32 %v1601, %v1677
    %1679 = vdwg.mxu0
    %1680 = vmatprep.subr.mxu0 %v901
    %1681 = vmatpush1.msra.mxu0 %v900
    %1682 = vmatprep.subr.mxu0 %v897
    %1683 = vmatpush1.msra.mxu0 %v896
    %1684 = vmatprep.subr.mxu0 %v893
    %1685 = vmatpush1.msra.mxu0 %v892
    %1686 = vmatprep.subr.mxu0 %v889
    %1687 = vmatpush1.msra.mxu0 %v888
    %1688 = vmatprep.subr.mxu0 %v885
    %1689 = vmatpush1.msra.mxu0 %v884
    %1690 = vmatprep.subr.mxu0 %v881
    %1691 = vmatpush1.msra.mxu0 %v880
    %1692 = vmatprep.subr.mxu0 %v877
    %1693 = vmatpush1.msra.mxu0 %v876
    %1694 = vmatprep.subr.mxu0 %v873
    %1695 = vmatpush1.msra.mxu0 %v872
    %1696 = vmatprep.subr.mxu0 %v869
    %1697 = vmatpush1.msra.mxu0 %v868
    %1698 = vmatprep.subr.mxu0 %v865
    %1699 = vmatpush1.msra.mxu0 %v864
    %1700 = vmatprep.subr.mxu0 %v861
    %1701 = vmatpush1.msra.mxu0 %v860
    %1702 = vmatprep.subr.mxu0 %v857
    %1703 = vmatpush1.msra.mxu0 %v856
    %1704 = vmatprep.subr.mxu0 %v853
    %1705 = vmatpush1.msra.mxu0 %v852
    %1706 = vmatprep.subr.mxu0 %v849
    %1707 = vmatpush1.msra.mxu0 %v848
    %1708 = vmatprep.subr.mxu0 %v845
    %1709 = vmatpush1.msra.mxu0 %v844
    %1710 = vmatprep.subr.mxu0 %v841
    %1711 = vmatpush1.msra.mxu0 %v840
    %1712 = vmatprep.subr.mxu0 %v965
    %1713 = vmatpush2.msra.mxu0 %v964
    %1714 = vmatprep.subr.mxu0 %v961
    %1715 = vmatpush2.msra.mxu0 %v960
    %1716 = vmatprep.subr.mxu0 %v957
    %1717 = vmatpush2.msra.mxu0 %v956
    %1718 = vmatprep.subr.mxu0 %v953
    %1719 = vmatpush2.msra.mxu0 %v952
    %1720 = vmatprep.subr.mxu0 %v949
    %1721 = vmatpush2.msra.mxu0 %v948
    %1722 = vmatprep.subr.mxu0 %v945
    %1723 = vmatpush2.msra.mxu0 %v944
    %1724 = vmatprep.subr.mxu0 %v941
    %1725 = vmatpush2.msra.mxu0 %v940
    %1726 = vmatprep.subr.mxu0 %v937
    %1727 = vmatpush2.msra.mxu0 %v936
    %1728 = vmatprep.subr.mxu0 %v933
    %1729 = vmatpush2.msra.mxu0 %v932
    %1730 = vmatprep.subr.mxu0 %v929
    %1731 = vmatpush2.msra.mxu0 %v928
    %1732 = vmatprep.subr.mxu0 %v925
    %1733 = vmatpush2.msra.mxu0 %v924
    %1734 = vmatprep.subr.mxu0 %v921
    %1735 = vmatpush2.msra.mxu0 %v920
    %1736 = vmatprep.subr.mxu0 %v917
    %1737 = vmatpush2.msra.mxu0 %v916
    %1738 = vmatprep.subr.mxu0 %v913
    %1739 = vmatpush2.msra.mxu0 %v912
    %1740 = vmatprep.subr.mxu0 %v909
    %1741 = vmatpush2.msra.mxu0 %v908
    %1742 = vmatprep.subr.mxu0 %v905
    %1743 = vmatpush2.msra.mxu0 %v904
    %1744 = vmatprep.mubr.f32.mxu0 %v823
    %1745 = vmatmul.mubr.f32.gmra.mxu0 %v822
    %v1746 = vpop.f32.mrf.mxu0
    %v1747 = vadd.f32 %v1363, %v1746
    %v1748 = vpop.f32.mrf.mxu0
    %v1749 = vadd.f32 %v1367, %v1748
    %1750 = vmatprep.mubr.f32.mxu0 %v831
    %1751 = vmatmul.mubr.f32.gmra.mxu0 %v830
    %v1752 = vpop.f32.mrf.mxu0
    %v1753 = vadd.f32 %v1363, %v1752
    %v1754 = vpop.f32.mrf.mxu0
    %v1755 = vadd.f32 %v1367, %v1754
    %1756 = vdwg.mxu0
    %1757 = vmatprep.subr.mxu0 %v1029
    %1758 = vmatpush1.msra.mxu0 %v1028
    %1759 = vmatprep.subr.mxu0 %v1025
    %1760 = vmatpush1.msra.mxu0 %v1024
    %1761 = vmatprep.subr.mxu0 %v1021
    %1762 = vmatpush1.msra.mxu0 %v1020
    %1763 = vmatprep.subr.mxu0 %v1017
    %1764 = vmatpush1.msra.mxu0 %v1016
    %1765 = vmatprep.subr.mxu0 %v1013
    %1766 = vmatpush1.msra.mxu0 %v1012
    %1767 = vmatprep.subr.mxu0 %v1009
    %1768 = vmatpush1.msra.mxu0 %v1008
    %1769 = vmatprep.subr.mxu0 %v1005
    %1770 = vmatpush1.msra.mxu0 %v1004
    %1771 = vmatprep.subr.mxu0 %v1001
    %1772 = vmatpush1.msra.mxu0 %v1000
    %1773 = vmatprep.subr.mxu0 %v997
    %1774 = vmatpush1.msra.mxu0 %v996
    %1775 = vmatprep.subr.mxu0 %v993
    %1776 = vmatpush1.msra.mxu0 %v992
    %1777 = vmatprep.subr.mxu0 %v989
    %1778 = vmatpush1.msra.mxu0 %v988
    %1779 = vmatprep.subr.mxu0 %v985
    %1780 = vmatpush1.msra.mxu0 %v984
    %1781 = vmatprep.subr.mxu0 %v981
    %1782 = vmatpush1.msra.mxu0 %v980
    %1783 = vmatprep.subr.mxu0 %v977
    %1784 = vmatpush1.msra.mxu0 %v976
    %1785 = vmatprep.subr.mxu0 %v973
    %1786 = vmatpush1.msra.mxu0 %v972
    %1787 = vmatprep.subr.mxu0 %v969
    %1788 = vmatpush1.msra.mxu0 %v968
    %1789 = vmatprep.subr.mxu0 %v1093
    %1790 = vmatpush2.msra.mxu0 %v1092
    %1791 = vmatprep.subr.mxu0 %v1089
    %1792 = vmatpush2.msra.mxu0 %v1088
    %1793 = vmatprep.subr.mxu0 %v1085
    %1794 = vmatpush2.msra.mxu0 %v1084
    %1795 = vmatprep.subr.mxu0 %v1081
    %1796 = vmatpush2.msra.mxu0 %v1080
    %1797 = vmatprep.subr.mxu0 %v1077
    %1798 = vmatpush2.msra.mxu0 %v1076
    %1799 = vmatprep.subr.mxu0 %v1073
    %1800 = vmatpush2.msra.mxu0 %v1072
    %1801 = vmatprep.subr.mxu0 %v1069
    %1802 = vmatpush2.msra.mxu0 %v1068
    %1803 = vmatprep.subr.mxu0 %v1065
    %1804 = vmatpush2.msra.mxu0 %v1064
    %1805 = vmatprep.subr.mxu0 %v1061
    %1806 = vmatpush2.msra.mxu0 %v1060
    %1807 = vmatprep.subr.mxu0 %v1057
    %1808 = vmatpush2.msra.mxu0 %v1056
    %1809 = vmatprep.subr.mxu0 %v1053
    %1810 = vmatpush2.msra.mxu0 %v1052
    %1811 = vmatprep.subr.mxu0 %v1049
    %1812 = vmatpush2.msra.mxu0 %v1048
    %1813 = vmatprep.subr.mxu0 %v1045
    %1814 = vmatpush2.msra.mxu0 %v1044
    %1815 = vmatprep.subr.mxu0 %v1041
    %1816 = vmatpush2.msra.mxu0 %v1040
    %1817 = vmatprep.subr.mxu0 %v1037
    %1818 = vmatpush2.msra.mxu0 %v1036
    %1819 = vmatprep.subr.mxu0 %v1033
    %1820 = vmatpush2.msra.mxu0 %v1032
    %1821 = vmatprep.mubr.f32.mxu0 %v825
    %1822 = vmatmul.mubr.f32.gmra.mxu0 %v824
    %v1823 = vpop.f32.mrf.mxu0
    %v1824 = vadd.f32 %v1747, %v1823
    %v1825 = vpop.f32.mrf.mxu0
    %v1826 = vadd.f32 %v1749, %v1825
    %1827 = vmatprep.mubr.f32.mxu0 %v833
    %1828 = vmatmul.mubr.f32.gmra.mxu0 %v832
    %v1829 = vpop.f32.mrf.mxu0
    %v1830 = vadd.f32 %v1753, %v1829
    %v1831 = vpop.f32.mrf.mxu0
    %v1832 = vadd.f32 %v1755, %v1831
    %1833 = vdwg.mxu0
    %1834 = vmatprep.subr.mxu0 %v1157
    %1835 = vmatpush1.msra.mxu0 %v1156
    %1836 = vmatprep.subr.mxu0 %v1153
    %1837 = vmatpush1.msra.mxu0 %v1152
    %1838 = vmatprep.subr.mxu0 %v1149
    %1839 = vmatpush1.msra.mxu0 %v1148
    %1840 = vmatprep.subr.mxu0 %v1145
    %1841 = vmatpush1.msra.mxu0 %v1144
    %1842 = vmatprep.subr.mxu0 %v1141
    %1843 = vmatpush1.msra.mxu0 %v1140
    %1844 = vmatprep.subr.mxu0 %v1137
    %1845 = vmatpush1.msra.mxu0 %v1136
    %1846 = vmatprep.subr.mxu0 %v1133
    %1847 = vmatpush1.msra.mxu0 %v1132
    %1848 = vmatprep.subr.mxu0 %v1129
    %1849 = vmatpush1.msra.mxu0 %v1128
    %1850 = vmatprep.subr.mxu0 %v1125
    %1851 = vmatpush1.msra.mxu0 %v1124
    %1852 = vmatprep.subr.mxu0 %v1121
    %1853 = vmatpush1.msra.mxu0 %v1120
    %1854 = vmatprep.subr.mxu0 %v1117
    %1855 = vmatpush1.msra.mxu0 %v1116
    %1856 = vmatprep.subr.mxu0 %v1113
    %1857 = vmatpush1.msra.mxu0 %v1112
    %1858 = vmatprep.subr.mxu0 %v1109
    %1859 = vmatpush1.msra.mxu0 %v1108
    %1860 = vmatprep.subr.mxu0 %v1105
    %1861 = vmatpush1.msra.mxu0 %v1104
    %1862 = vmatprep.subr.mxu0 %v1101
    %1863 = vmatpush1.msra.mxu0 %v1100
    %1864 = vmatprep.subr.mxu0 %v1097
    %1865 = vmatpush1.msra.mxu0 %v1096
    %1866 = vmatprep.subr.mxu0 %v1221
    %1867 = vmatpush2.msra.mxu0 %v1220
    %1868 = vmatprep.subr.mxu0 %v1217
    %1869 = vmatpush2.msra.mxu0 %v1216
    %1870 = vmatprep.subr.mxu0 %v1213
    %1871 = vmatpush2.msra.mxu0 %v1212
    %1872 = vmatprep.subr.mxu0 %v1209
    %1873 = vmatpush2.msra.mxu0 %v1208
    %1874 = vmatprep.subr.mxu0 %v1205
    %1875 = vmatpush2.msra.mxu0 %v1204
    %1876 = vmatprep.subr.mxu0 %v1201
    %1877 = vmatpush2.msra.mxu0 %v1200
    %1878 = vmatprep.subr.mxu0 %v1197
    %1879 = vmatpush2.msra.mxu0 %v1196
    %1880 = vmatprep.subr.mxu0 %v1193
    %1881 = vmatpush2.msra.mxu0 %v1192
    %1882 = vmatprep.subr.mxu0 %v1189
    %1883 = vmatpush2.msra.mxu0 %v1188
    %1884 = vmatprep.subr.mxu0 %v1185
    %1885 = vmatpush2.msra.mxu0 %v1184
    %1886 = vmatprep.subr.mxu0 %v1181
    %1887 = vmatpush2.msra.mxu0 %v1180
    %1888 = vmatprep.subr.mxu0 %v1177
    %1889 = vmatpush2.msra.mxu0 %v1176
    %1890 = vmatprep.subr.mxu0 %v1173
    %1891 = vmatpush2.msra.mxu0 %v1172
    %1892 = vmatprep.subr.mxu0 %v1169
    %1893 = vmatpush2.msra.mxu0 %v1168
    %1894 = vmatprep.subr.mxu0 %v1165
    %1895 = vmatpush2.msra.mxu0 %v1164
    %1896 = vmatprep.subr.mxu0 %v1161
    %1897 = vmatpush2.msra.mxu0 %v1160
    %1898 = vmatprep.mubr.f32.mxu0 %v827
    %1899 = vmatmul.mubr.f32.gmra.mxu0 %v826
    %v1900 = vpop.f32.mrf.mxu0
    %v1901 = vadd.f32 %v1824, %v1900
    %v1902 = vpop.f32.mrf.mxu0
    %v1903 = vadd.f32 %v1826, %v1902
    %1904 = vmatprep.mubr.f32.mxu0 %v835
    %1905 = vmatmul.mubr.f32.gmra.mxu0 %v834
    %v1906 = vpop.f32.mrf.mxu0
    %v1907 = vadd.f32 %v1830, %v1906
    %v1908 = vpop.f32.mrf.mxu0
    %v1909 = vadd.f32 %v1832, %v1908
    %1910 = vdwg.mxu0
    %1911 = vmatprep.subr.mxu0 %v1285
    %1912 = vmatpush1.msra.mxu0 %v1284
    %1913 = vmatprep.subr.mxu0 %v1281
    %1914 = vmatpush1.msra.mxu0 %v1280
    %1915 = vmatprep.subr.mxu0 %v1277
    %1916 = vmatpush1.msra.mxu0 %v1276
    %1917 = vmatprep.subr.mxu0 %v1273
    %1918 = vmatpush1.msra.mxu0 %v1272
    %1919 = vmatprep.subr.mxu0 %v1269
    %1920 = vmatpush1.msra.mxu0 %v1268
    %1921 = vmatprep.subr.mxu0 %v1265
    %1922 = vmatpush1.msra.mxu0 %v1264
    %1923 = vmatprep.subr.mxu0 %v1261
    %1924 = vmatpush1.msra.mxu0 %v1260
    %1925 = vmatprep.subr.mxu0 %v1257
    %1926 = vmatpush1.msra.mxu0 %v1256
    %1927 = vmatprep.subr.mxu0 %v1253
    %1928 = vmatpush1.msra.mxu0 %v1252
    %1929 = vmatprep.subr.mxu0 %v1249
    %1930 = vmatpush1.msra.mxu0 %v1248
    %1931 = vmatprep.subr.mxu0 %v1245
    %1932 = vmatpush1.msra.mxu0 %v1244
    %1933 = vmatprep.subr.mxu0 %v1241
    %1934 = vmatpush1.msra.mxu0 %v1240
    %1935 = vmatprep.subr.mxu0 %v1237
    %1936 = vmatpush1.msra.mxu0 %v1236
    %1937 = vmatprep.subr.mxu0 %v1233
    %1938 = vmatpush1.msra.mxu0 %v1232
    %1939 = vmatprep.subr.mxu0 %v1229
    %1940 = vmatpush1.msra.mxu0 %v1228
    %1941 = vmatprep.subr.mxu0 %v1225
    %1942 = vmatpush1.msra.mxu0 %v1224
    %1943 = vmatprep.subr.mxu0 %v1349
    %1944 = vmatpush2.msra.mxu0 %v1348
    %1945 = vmatprep.subr.mxu0 %v1345
    %1946 = vmatpush2.msra.mxu0 %v1344
    %1947 = vmatprep.subr.mxu0 %v1341
    %1948 = vmatpush2.msra.mxu0 %v1340
    %1949 = vmatprep.subr.mxu0 %v1337
    %1950 = vmatpush2.msra.mxu0 %v1336
    %1951 = vmatprep.subr.mxu0 %v1333
    %1952 = vmatpush2.msra.mxu0 %v1332
    %1953 = vmatprep.subr.mxu0 %v1329
    %1954 = vmatpush2.msra.mxu0 %v1328
    %1955 = vmatprep.subr.mxu0 %v1325
    %1956 = vmatpush2.msra.mxu0 %v1324
    %1957 = vmatprep.subr.mxu0 %v1321
    %1958 = vmatpush2.msra.mxu0 %v1320
    %1959 = vmatprep.subr.mxu0 %v1317
    %1960 = vmatpush2.msra.mxu0 %v1316
    %1961 = vmatprep.subr.mxu0 %v1313
    %1962 = vmatpush2.msra.mxu0 %v1312
    %1963 = vmatprep.subr.mxu0 %v1309
    %1964 = vmatpush2.msra.mxu0 %v1308
    %1965 = vmatprep.subr.mxu0 %v1305
    %1966 = vmatpush2.msra.mxu0 %v1304
    %1967 = vmatprep.subr.mxu0 %v1301
    %1968 = vmatpush2.msra.mxu0 %v1300
    %1969 = vmatprep.subr.mxu0 %v1297
    %1970 = vmatpush2.msra.mxu0 %v1296
    %1971 = vmatprep.subr.mxu0 %v1293
    %1972 = vmatpush2.msra.mxu0 %v1292
    %1973 = vmatprep.subr.mxu0 %v1289
    %1974 = vmatpush2.msra.mxu0 %v1288
    %1975 = vmatprep.mubr.f32.mxu0 %v829
    %1976 = vmatmul.mubr.f32.gmra.mxu0 %v828
    %v1977 = vpop.f32.mrf.mxu0
    %v1978 = vadd.f32 %v1901, %v1977
    %v1979 = vpop.f32.mrf.mxu0
    %v1980 = vadd.f32 %v1903, %v1979
    %1981 = vmatprep.mubr.f32.mxu0 %v837
    %1982 = vmatmul.mubr.f32.gmra.mxu0 %v836
    %v1983 = vpop.f32.mrf.mxu0
    %v1984 = vadd.f32 %v1907, %v1983
    %v1985 = vpop.f32.mrf.mxu0
    %v1986 = vadd.f32 %v1909, %v1985
    %1987 = vdwg.mxu0
    %v1988 = vtanh.pop %v1670
    %v1989 = vtanh.pop %v1672
    %v1990 = vtanh.pop %v1978
    %v1991 = vtanh.pop %v1980
    %v1992 = vtanh.pop %v1676
    %v1993 = vtanh.pop %v1678
    %v1994 = vtanh.pop %v1984
    %v1995 = vtanh.pop %v1986
    %v1996 = vld [vmem:[#allocation11] sm:$0xff]
    %v1997 = vld [vmem:[#allocation11 + $0x8] sm:$0xff]
    %v1998 = vld [vmem:[#allocation11 + $0x10] sm:$0xff]
    %v1999 = vld [vmem:[#allocation11 + $0x18] sm:$0xff]
    %v2000 = vld [vmem:[#allocation11 + $0x20] sm:$0xff]
    %v2001 = vld [vmem:[#allocation11 + $0x28] sm:$0xff]
    %v2002 = vld [vmem:[#allocation11 + $0x30] sm:$0xff]
    %v2003 = vld [vmem:[#allocation11 + $0x38] sm:$0xff]
    %v2004 = vld [vmem:[#allocation11 + $0x40] sm:$0xff]
    %v2005 = vld [vmem:[#allocation11 + $0x48] sm:$0xff]
    %v2006 = vld [vmem:[#allocation11 + $0x50] sm:$0xff]
    %v2007 = vld [vmem:[#allocation11 + $0x58] sm:$0xff]
    %v2008 = vld [vmem:[#allocation11 + $0x60] sm:$0xff]
    %v2009 = vld [vmem:[#allocation11 + $0x68] sm:$0xff]
    %v2010 = vld [vmem:[#allocation11 + $0x70] sm:$0xff]
    %v2011 = vld [vmem:[#allocation11 + $0x78] sm:$0xff]
    %v2012 = vld [vmem:[#allocation11 + $0x80] sm:$0xff]
    %v2013 = vld [vmem:[#allocation11 + $0x88] sm:$0xff]
    %v2014 = vld [vmem:[#allocation11 + $0x90] sm:$0xff]
    %v2015 = vld [vmem:[#allocation11 + $0x98] sm:$0xff]
    %v2016 = vld [vmem:[#allocation11 + $0xa0] sm:$0xff]
    %v2017 = vld [vmem:[#allocation11 + $0xa8] sm:$0xff]
    %v2018 = vld [vmem:[#allocation11 + $0xb0] sm:$0xff]
    %v2019 = vld [vmem:[#allocation11 + $0xb8] sm:$0xff]
    %v2020 = vld [vmem:[#allocation11 + $0xc0] sm:$0xff]
    %v2021 = vld [vmem:[#allocation11 + $0xc8] sm:$0xff]
    %v2022 = vld [vmem:[#allocation11 + $0xd0] sm:$0xff]
    %v2023 = vld [vmem:[#allocation11 + $0xd8] sm:$0xff]
    %v2024 = vld [vmem:[#allocation11 + $0xe0] sm:$0xff]
    %v2025 = vld [vmem:[#allocation11 + $0xe8] sm:$0xff]
    %v2026 = vld [vmem:[#allocation11 + $0xf0] sm:$0xff]
    %v2027 = vld [vmem:[#allocation11 + $0xf8] sm:$0xff]
    %v2028 = vld [vmem:[#allocation11 + $0x100] sm:$0xff]
    %v2029 = vld [vmem:[#allocation11 + $0x108] sm:$0xff]
    %v2030 = vld [vmem:[#allocation11 + $0x110] sm:$0xff]
    %v2031 = vld [vmem:[#allocation11 + $0x118] sm:$0xff]
    %v2032 = vld [vmem:[#allocation11 + $0x120] sm:$0xff]
    %v2033 = vld [vmem:[#allocation11 + $0x128] sm:$0xff]
    %v2034 = vld [vmem:[#allocation11 + $0x130] sm:$0xff]
    %v2035 = vld [vmem:[#allocation11 + $0x138] sm:$0xff]
    %v2036 = vld [vmem:[#allocation11 + $0x140] sm:$0xff]
    %v2037 = vld [vmem:[#allocation11 + $0x148] sm:$0xff]
    %v2038 = vld [vmem:[#allocation11 + $0x150] sm:$0xff]
    %v2039 = vld [vmem:[#allocation11 + $0x158] sm:$0xff]
    %v2040 = vld [vmem:[#allocation11 + $0x160] sm:$0xff]
    %v2041 = vld [vmem:[#allocation11 + $0x168] sm:$0xff]
    %v2042 = vld [vmem:[#allocation11 + $0x170] sm:$0xff]
    %v2043 = vld [vmem:[#allocation11 + $0x178] sm:$0xff]
    %v2044 = vld [vmem:[#allocation11 + $0x180] sm:$0xff]
    %v2045 = vld [vmem:[#allocation11 + $0x188] sm:$0xff]
    %v2046 = vld [vmem:[#allocation11 + $0x190] sm:$0xff]
    %v2047 = vld [vmem:[#allocation11 + $0x198] sm:$0xff]
    %v2048 = vld [vmem:[#allocation11 + $0x1a0] sm:$0xff]
    %v2049 = vld [vmem:[#allocation11 + $0x1a8] sm:$0xff]
    %v2050 = vld [vmem:[#allocation11 + $0x1b0] sm:$0xff]
    %v2051 = vld [vmem:[#allocation11 + $0x1b8] sm:$0xff]
    %v2052 = vld [vmem:[#allocation11 + $0x1c0] sm:$0xff]
    %v2053 = vld [vmem:[#allocation11 + $0x1c8] sm:$0xff]
    %v2054 = vld [vmem:[#allocation11 + $0x1d0] sm:$0xff]
    %v2055 = vld [vmem:[#allocation11 + $0x1d8] sm:$0xff]
    %v2056 = vld [vmem:[#allocation11 + $0x1e0] sm:$0xff]
    %v2057 = vld [vmem:[#allocation11 + $0x1e8] sm:$0xff]
    %v2058 = vld [vmem:[#allocation11 + $0x1f0] sm:$0xff]
    %v2059 = vld [vmem:[#allocation11 + $0x1f8] sm:$0xff]
    %v2060 = vld [vmem:[#allocation13] sm:$0x1]
    %v2062 = vlaneseq
    %v2063 = vshrl.u32 %v2062, 7
    %v2064 = vsub.s32 0, %v2063
    %v2065 = vrot.slane %v2060, %v2064
    %2067 = vmatprep.subr.mxu0 0.0
    %2068 = vmatpush1.msra.mxu0 %v2011
    %2069 = vmatprep.subr.mxu0 0.0
    %2070 = vmatpush1.msra.mxu0 %v2010
    %2071 = vmatprep.subr.mxu0 0.0
    %2072 = vmatpush1.msra.mxu0 %v2009
    %2073 = vmatprep.subr.mxu0 0.0
    %2074 = vmatpush1.msra.mxu0 %v2008
    %2075 = vmatprep.subr.mxu0 0.0
    %2076 = vmatpush1.msra.mxu0 %v2007
    %2077 = vmatprep.subr.mxu0 0.0
    %2078 = vmatpush1.msra.mxu0 %v2006
    %2079 = vmatprep.subr.mxu0 0.0
    %2080 = vmatpush1.msra.mxu0 %v2005
    %2081 = vmatprep.subr.mxu0 0.0
    %2082 = vmatpush1.msra.mxu0 %v2004
    %2083 = vmatprep.subr.mxu0 0.0
    %2084 = vmatpush1.msra.mxu0 %v2003
    %2085 = vmatprep.subr.mxu0 0.0
    %2086 = vmatpush1.msra.mxu0 %v2002
    %2087 = vmatprep.subr.mxu0 0.0
    %2088 = vmatpush1.msra.mxu0 %v2001
    %2089 = vmatprep.subr.mxu0 0.0
    %2090 = vmatpush1.msra.mxu0 %v2000
    %2091 = vmatprep.subr.mxu0 0.0
    %2092 = vmatpush1.msra.mxu0 %v1999
    %2093 = vmatprep.subr.mxu0 0.0
    %2094 = vmatpush1.msra.mxu0 %v1998
    %2095 = vmatprep.subr.mxu0 0.0
    %2096 = vmatpush1.msra.mxu0 %v1997
    %2097 = vmatprep.subr.mxu0 0.0
    %2098 = vmatpush1.msra.mxu0 %v1996
    %2099 = vmatprep.subr.mxu0 0.0
    %2100 = vmatpush2.msra.mxu0 %v2027
    %2101 = vmatprep.subr.mxu0 0.0
    %2102 = vmatpush2.msra.mxu0 %v2026
    %2103 = vmatprep.subr.mxu0 0.0
    %2104 = vmatpush2.msra.mxu0 %v2025
    %2105 = vmatprep.subr.mxu0 0.0
    %2106 = vmatpush2.msra.mxu0 %v2024
    %2107 = vmatprep.subr.mxu0 0.0
    %2108 = vmatpush2.msra.mxu0 %v2023
    %2109 = vmatprep.subr.mxu0 0.0
    %2110 = vmatpush2.msra.mxu0 %v2022
    %2111 = vmatprep.subr.mxu0 0.0
    %2112 = vmatpush2.msra.mxu0 %v2021
    %2113 = vmatprep.subr.mxu0 0.0
    %2114 = vmatpush2.msra.mxu0 %v2020
    %2115 = vmatprep.subr.mxu0 0.0
    %2116 = vmatpush2.msra.mxu0 %v2019
    %2117 = vmatprep.subr.mxu0 0.0
    %2118 = vmatpush2.msra.mxu0 %v2018
    %2119 = vmatprep.subr.mxu0 0.0
    %2120 = vmatpush2.msra.mxu0 %v2017
    %2121 = vmatprep.subr.mxu0 0.0
    %2122 = vmatpush2.msra.mxu0 %v2016
    %2123 = vmatprep.subr.mxu0 0.0
    %2124 = vmatpush2.msra.mxu0 %v2015
    %2125 = vmatprep.subr.mxu0 0.0
    %2126 = vmatpush2.msra.mxu0 %v2014
    %2127 = vmatprep.subr.mxu0 0.0
    %2128 = vmatpush2.msra.mxu0 %v2013
    %2129 = vmatprep.subr.mxu0 0.0
    %2130 = vmatpush2.msra.mxu0 %v2012
    %2131 = vmatprep.mubr.f32.mxu0 %v1989
    %2132 = vmatmul.mubr.f32.gmra.mxu0 %v1988
    %v2133 = vpop.f32.mrf.mxu0
    %v2134 = vadd.f32 %v2065, %v2133
    %v2135 = vpop.f32.mrf.mxu0
    %2136 = vmatprep.mubr.f32.mxu0 %v1993
    %2137 = vmatmul.mubr.f32.gmra.mxu0 %v1992
    %v2138 = vpop.f32.mrf.mxu0
    %v2139 = vadd.f32 %v2065, %v2138
    %v2140 = vpop.f32.mrf.mxu0
    %2141 = vdwg.mxu0
    %2142 = vmatprep.subr.mxu0 0.0
    %2143 = vmatpush1.msra.mxu0 %v2043
    %2144 = vmatprep.subr.mxu0 0.0
    %2145 = vmatpush1.msra.mxu0 %v2042
    %2146 = vmatprep.subr.mxu0 0.0
    %2147 = vmatpush1.msra.mxu0 %v2041
    %2148 = vmatprep.subr.mxu0 0.0
    %2149 = vmatpush1.msra.mxu0 %v2040
    %2150 = vmatprep.subr.mxu0 0.0
    %2151 = vmatpush1.msra.mxu0 %v2039
    %2152 = vmatprep.subr.mxu0 0.0
    %2153 = vmatpush1.msra.mxu0 %v2038
    %2154 = vmatprep.subr.mxu0 0.0
    %2155 = vmatpush1.msra.mxu0 %v2037
    %2156 = vmatprep.subr.mxu0 0.0
    %2157 = vmatpush1.msra.mxu0 %v2036
    %2158 = vmatprep.subr.mxu0 0.0
    %2159 = vmatpush1.msra.mxu0 %v2035
    %2160 = vmatprep.subr.mxu0 0.0
    %2161 = vmatpush1.msra.mxu0 %v2034
    %2162 = vmatprep.subr.mxu0 0.0
    %2163 = vmatpush1.msra.mxu0 %v2033
    %2164 = vmatprep.subr.mxu0 0.0
    %2165 = vmatpush1.msra.mxu0 %v2032
    %2166 = vmatprep.subr.mxu0 0.0
    %2167 = vmatpush1.msra.mxu0 %v2031
    %2168 = vmatprep.subr.mxu0 0.0
    %2169 = vmatpush1.msra.mxu0 %v2030
    %2170 = vmatprep.subr.mxu0 0.0
    %2171 = vmatpush1.msra.mxu0 %v2029
    %2172 = vmatprep.subr.mxu0 0.0
    %2173 = vmatpush1.msra.mxu0 %v2028
    %2174 = vmatprep.subr.mxu0 0.0
    %2175 = vmatpush2.msra.mxu0 %v2059
    %2176 = vmatprep.subr.mxu0 0.0
    %2177 = vmatpush2.msra.mxu0 %v2058
    %2178 = vmatprep.subr.mxu0 0.0
    %2179 = vmatpush2.msra.mxu0 %v2057
    %2180 = vmatprep.subr.mxu0 0.0
    %2181 = vmatpush2.msra.mxu0 %v2056
    %2182 = vmatprep.subr.mxu0 0.0
    %2183 = vmatpush2.msra.mxu0 %v2055
    %2184 = vmatprep.subr.mxu0 0.0
    %2185 = vmatpush2.msra.mxu0 %v2054
    %2186 = vmatprep.subr.mxu0 0.0
    %2187 = vmatpush2.msra.mxu0 %v2053
    %2188 = vmatprep.subr.mxu0 0.0
    %2189 = vmatpush2.msra.mxu0 %v2052
    %2190 = vmatprep.subr.mxu0 0.0
    %2191 = vmatpush2.msra.mxu0 %v2051
    %2192 = vmatprep.subr.mxu0 0.0
    %2193 = vmatpush2.msra.mxu0 %v2050
    %2194 = vmatprep.subr.mxu0 0.0
    %2195 = vmatpush2.msra.mxu0 %v2049
    %2196 = vmatprep.subr.mxu0 0.0
    %2197 = vmatpush2.msra.mxu0 %v2048
    %2198 = vmatprep.subr.mxu0 0.0
    %2199 = vmatpush2.msra.mxu0 %v2047
    %2200 = vmatprep.subr.mxu0 0.0
    %2201 = vmatpush2.msra.mxu0 %v2046
    %2202 = vmatprep.subr.mxu0 0.0
    %2203 = vmatpush2.msra.mxu0 %v2045
    %2204 = vmatprep.subr.mxu0 0.0
    %2205 = vmatpush2.msra.mxu0 %v2044
    %2206 = vmatprep.mubr.f32.mxu0 %v1991
    %2207 = vmatmul.mubr.f32.gmra.mxu0 %v1990
    %v2208 = vpop.f32.mrf.mxu0
    %v2209 = vadd.f32 %v2134, %v2208
    %v2210 = vpop.f32.mrf.mxu0
    %2211 = vmatprep.mubr.f32.mxu0 %v1995
    %2212 = vmatmul.mubr.f32.gmra.mxu0 %v1994
    %v2213 = vpop.f32.mrf.mxu0
    %v2214 = vadd.f32 %v2139, %v2213
    %v2215 = vpop.f32.mrf.mxu0
    %2216 = vdwg.mxu0
    %v2217 = vtanh.pop %v2209
    %v2218 = vtanh.pop %v2214
    %2219 = vst [vmem:[#allocation24] sm:$0xff] %v2217
    %2220 = vst [vmem:[#allocation24 + $0x8] sm:$0xff] %v2218
    %v2221 = vld [vmem:[#allocation14] sm:$0xff]
    %v2222 = vld [vmem:[#allocation14 + $0x8] sm:$0xff]
    %v2223 = vld [vmem:[#allocation14 + $0x10] sm:$0xff]
    %v2224 = vld [vmem:[#allocation14 + $0x18] sm:$0xff]
    %v2225 = vld [vmem:[#allocation14 + $0x20] sm:$0xff]
    %v2226 = vld [vmem:[#allocation14 + $0x28] sm:$0xff]
    %v2227 = vld [vmem:[#allocation14 + $0x30] sm:$0xff]
    %v2228 = vld [vmem:[#allocation14 + $0x38] sm:$0xff]
    %v2229 = vld [vmem:[#allocation14 + $0x40] sm:$0xff]
    %v2230 = vld [vmem:[#allocation14 + $0x48] sm:$0xff]
    %v2231 = vld [vmem:[#allocation14 + $0x50] sm:$0xff]
    %v2232 = vld [vmem:[#allocation14 + $0x58] sm:$0xff]
    %v2233 = vld [vmem:[#allocation14 + $0x60] sm:$0xff]
    %v2234 = vld [vmem:[#allocation14 + $0x68] sm:$0xff]
    %v2235 = vld [vmem:[#allocation14 + $0x70] sm:$0xff]
    %v2236 = vld [vmem:[#allocation14 + $0x78] sm:$0xff]
    %v2237 = vld [vmem:[#allocation14 + $0x80] sm:$0xff]
    %v2238 = vld [vmem:[#allocation14 + $0x88] sm:$0xff]
    %v2239 = vld [vmem:[#allocation14 + $0x90] sm:$0xff]
    %v2240 = vld [vmem:[#allocation14 + $0x98] sm:$0xff]
    %v2241 = vld [vmem:[#allocation14 + $0xa0] sm:$0xff]
    %v2242 = vld [vmem:[#allocation14 + $0xa8] sm:$0xff]
    %v2243 = vld [vmem:[#allocation14 + $0xb0] sm:$0xff]
    %v2244 = vld [vmem:[#allocation14 + $0xb8] sm:$0xff]
    %v2245 = vld [vmem:[#allocation14 + $0xc0] sm:$0xff]
    %v2246 = vld [vmem:[#allocation14 + $0xc8] sm:$0xff]
    %v2247 = vld [vmem:[#allocation14 + $0xd0] sm:$0xff]
    %v2248 = vld [vmem:[#allocation14 + $0xd8] sm:$0xff]
    %v2249 = vld [vmem:[#allocation14 + $0xe0] sm:$0xff]
    %v2250 = vld [vmem:[#allocation14 + $0xe8] sm:$0xff]
    %v2251 = vld [vmem:[#allocation14 + $0xf0] sm:$0xff]
    %v2252 = vld [vmem:[#allocation14 + $0xf8] sm:$0xff]
    %v2253 = vld [vmem:[#allocation14 + $0x100] sm:$0xff]
    %v2254 = vld [vmem:[#allocation14 + $0x108] sm:$0xff]
    %v2255 = vld [vmem:[#allocation14 + $0x110] sm:$0xff]
    %v2256 = vld [vmem:[#allocation14 + $0x118] sm:$0xff]
    %v2257 = vld [vmem:[#allocation14 + $0x120] sm:$0xff]
    %v2258 = vld [vmem:[#allocation14 + $0x128] sm:$0xff]
    %v2259 = vld [vmem:[#allocation14 + $0x130] sm:$0xff]
    %v2260 = vld [vmem:[#allocation14 + $0x138] sm:$0xff]
    %v2261 = vld [vmem:[#allocation14 + $0x140] sm:$0xff]
    %v2262 = vld [vmem:[#allocation14 + $0x148] sm:$0xff]
    %v2263 = vld [vmem:[#allocation14 + $0x150] sm:$0xff]
    %v2264 = vld [vmem:[#allocation14 + $0x158] sm:$0xff]
    %v2265 = vld [vmem:[#allocation14 + $0x160] sm:$0xff]
    %v2266 = vld [vmem:[#allocation14 + $0x168] sm:$0xff]
    %v2267 = vld [vmem:[#allocation14 + $0x170] sm:$0xff]
    %v2268 = vld [vmem:[#allocation14 + $0x178] sm:$0xff]
    %v2269 = vld [vmem:[#allocation14 + $0x180] sm:$0xff]
    %v2270 = vld [vmem:[#allocation14 + $0x188] sm:$0xff]
    %v2271 = vld [vmem:[#allocation14 + $0x190] sm:$0xff]
    %v2272 = vld [vmem:[#allocation14 + $0x198] sm:$0xff]
    %v2273 = vld [vmem:[#allocation14 + $0x1a0] sm:$0xff]
    %v2274 = vld [vmem:[#allocation14 + $0x1a8] sm:$0xff]
    %v2275 = vld [vmem:[#allocation14 + $0x1b0] sm:$0xff]
    %v2276 = vld [vmem:[#allocation14 + $0x1b8] sm:$0xff]
    %v2277 = vld [vmem:[#allocation14 + $0x1c0] sm:$0xff]
    %v2278 = vld [vmem:[#allocation14 + $0x1c8] sm:$0xff]
    %v2279 = vld [vmem:[#allocation14 + $0x1d0] sm:$0xff]
    %v2280 = vld [vmem:[#allocation14 + $0x1d8] sm:$0xff]
    %v2281 = vld [vmem:[#allocation14 + $0x1e0] sm:$0xff]
    %v2282 = vld [vmem:[#allocation14 + $0x1e8] sm:$0xff]
    %v2283 = vld [vmem:[#allocation14 + $0x1f0] sm:$0xff]
    %v2284 = vld [vmem:[#allocation14 + $0x1f8] sm:$0xff]
    %v2285 = vld [vmem:[#allocation16] sm:$0xf]
    %v2287 = vlaneseq
    %v2288 = vshrl.u32 %v2287, 7
    %v2289 = vsub.s32 0, %v2288
    %v2290 = vrot.slane %v2285, %v2289
    %v2291 = vlaneseq
    %v2292 = vshrl.u32 %v2291, 7
    %v2293 = vsub.s32 1, %v2292
    %v2294 = vrot.slane %v2285, %v2293
    %v2295 = vlaneseq
    %v2296 = vshrl.u32 %v2295, 7
    %v2297 = vsub.s32 2, %v2296
    %v2298 = vrot.slane %v2285, %v2297
    %v2299 = vlaneseq
    %v2300 = vshrl.u32 %v2299, 7
    %v2301 = vsub.s32 3, %v2300
    %v2302 = vrot.slane %v2285, %v2301
    %2307 = vmatprep.subr.mxu0 %v2282
    %2308 = vmatpush1.msra.mxu0 %v2281
    %2309 = vmatprep.subr.mxu0 %v2278
    %2310 = vmatpush1.msra.mxu0 %v2277
    %2311 = vmatprep.subr.mxu0 %v2274
    %2312 = vmatpush1.msra.mxu0 %v2273
    %2313 = vmatprep.subr.mxu0 %v2270
    %2314 = vmatpush1.msra.mxu0 %v2269
    %2315 = vmatprep.subr.mxu0 %v2266
    %2316 = vmatpush1.msra.mxu0 %v2265
    %2317 = vmatprep.subr.mxu0 %v2262
    %2318 = vmatpush1.msra.mxu0 %v2261
    %2319 = vmatprep.subr.mxu0 %v2258
    %2320 = vmatpush1.msra.mxu0 %v2257
    %2321 = vmatprep.subr.mxu0 %v2254
    %2322 = vmatpush1.msra.mxu0 %v2253
    %2323 = vmatprep.subr.mxu0 %v2250
    %2324 = vmatpush1.msra.mxu0 %v2249
    %2325 = vmatprep.subr.mxu0 %v2246
    %2326 = vmatpush1.msra.mxu0 %v2245
    %2327 = vmatprep.subr.mxu0 %v2242
    %2328 = vmatpush1.msra.mxu0 %v2241
    %2329 = vmatprep.subr.mxu0 %v2238
    %2330 = vmatpush1.msra.mxu0 %v2237
    %2331 = vmatprep.subr.mxu0 %v2234
    %2332 = vmatpush1.msra.mxu0 %v2233
    %2333 = vmatprep.subr.mxu0 %v2230
    %2334 = vmatpush1.msra.mxu0 %v2229
    %2335 = vmatprep.subr.mxu0 %v2226
    %2336 = vmatpush1.msra.mxu0 %v2225
    %2337 = vmatprep.subr.mxu0 %v2222
    %2338 = vmatpush1.msra.mxu0 %v2221
    %2339 = vmatprep.subr.mxu0 0.0
    %2340 = vmatpush2.msra.mxu0 0.0
    %2341 = vmatprep.subr.mxu0 0.0
    %2342 = vmatpush2.msra.mxu0 0.0
    %2343 = vmatprep.subr.mxu0 0.0
    %2344 = vmatpush2.msra.mxu0 0.0
    %2345 = vmatprep.subr.mxu0 0.0
    %2346 = vmatpush2.msra.mxu0 0.0
    %2347 = vmatprep.subr.mxu0 0.0
    %2348 = vmatpush2.msra.mxu0 0.0
    %2349 = vmatprep.subr.mxu0 0.0
    %2350 = vmatpush2.msra.mxu0 0.0
    %2351 = vmatprep.subr.mxu0 0.0
    %2352 = vmatpush2.msra.mxu0 0.0
    %2353 = vmatprep.subr.mxu0 0.0
    %2354 = vmatpush2.msra.mxu0 0.0
    %2355 = vmatprep.subr.mxu0 0.0
    %2356 = vmatpush2.msra.mxu0 0.0
    %2357 = vmatprep.subr.mxu0 0.0
    %2358 = vmatpush2.msra.mxu0 0.0
    %2359 = vmatprep.subr.mxu0 0.0
    %2360 = vmatpush2.msra.mxu0 0.0
    %2361 = vmatprep.subr.mxu0 0.0
    %2362 = vmatpush2.msra.mxu0 0.0
    %2363 = vmatprep.subr.mxu0 0.0
    %2364 = vmatpush2.msra.mxu0 0.0
    %2365 = vmatprep.subr.mxu0 0.0
    %2366 = vmatpush2.msra.mxu0 0.0
    %2367 = vmatprep.subr.mxu0 0.0
    %2368 = vmatpush2.msra.mxu0 0.0
    %2369 = vmatprep.subr.mxu0 0.0
    %2370 = vmatpush2.msra.mxu0 0.0
    %2371 = vmatprep.mubr.f32.mxu0 0.0
    %2372 = vmatmul.mubr.f32.gmra.mxu0 %v2217
    %v2373 = vpop.f32.mrf.mxu0
    %v2374 = vadd.f32 %v2290, %v2373
    %v2375 = vpop.f32.mrf.mxu0
    %v2376 = vadd.f32 %v2294, %v2375
    %2377 = vmatprep.mubr.f32.mxu0 0.0
    %2378 = vmatmul.mubr.f32.gmra.mxu0 %v2218
    %v2379 = vpop.f32.mrf.mxu0
    %v2380 = vadd.f32 %v2290, %v2379
    %v2381 = vpop.f32.mrf.mxu0
    %v2382 = vadd.f32 %v2294, %v2381
    %2383 = vdwg.mxu0
    %2384 = vmatprep.subr.mxu0 %v2284
    %2385 = vmatpush1.msra.mxu0 %v2283
    %2386 = vmatprep.subr.mxu0 %v2280
    %2387 = vmatpush1.msra.mxu0 %v2279
    %2388 = vmatprep.subr.mxu0 %v2276
    %2389 = vmatpush1.msra.mxu0 %v2275
    %2390 = vmatprep.subr.mxu0 %v2272
    %2391 = vmatpush1.msra.mxu0 %v2271
    %2392 = vmatprep.subr.mxu0 %v2268
    %2393 = vmatpush1.msra.mxu0 %v2267
    %2394 = vmatprep.subr.mxu0 %v2264
    %2395 = vmatpush1.msra.mxu0 %v2263
    %2396 = vmatprep.subr.mxu0 %v2260
    %2397 = vmatpush1.msra.mxu0 %v2259
    %2398 = vmatprep.subr.mxu0 %v2256
    %2399 = vmatpush1.msra.mxu0 %v2255
    %2400 = vmatprep.subr.mxu0 %v2252
    %2401 = vmatpush1.msra.mxu0 %v2251
    %2402 = vmatprep.subr.mxu0 %v2248
    %2403 = vmatpush1.msra.mxu0 %v2247
    %2404 = vmatprep.subr.mxu0 %v2244
    %2405 = vmatpush1.msra.mxu0 %v2243
    %2406 = vmatprep.subr.mxu0 %v2240
    %2407 = vmatpush1.msra.mxu0 %v2239
    %2408 = vmatprep.subr.mxu0 %v2236
    %2409 = vmatpush1.msra.mxu0 %v2235
    %2410 = vmatprep.subr.mxu0 %v2232
    %2411 = vmatpush1.msra.mxu0 %v2231
    %2412 = vmatprep.subr.mxu0 %v2228
    %2413 = vmatpush1.msra.mxu0 %v2227
    %2414 = vmatprep.subr.mxu0 %v2224
    %2415 = vmatpush1.msra.mxu0 %v2223
    %2416 = vmatprep.subr.mxu0 0.0
    %2417 = vmatpush2.msra.mxu0 0.0
    %2418 = vmatprep.subr.mxu0 0.0
    %2419 = vmatpush2.msra.mxu0 0.0
    %2420 = vmatprep.subr.mxu0 0.0
    %2421 = vmatpush2.msra.mxu0 0.0
    %2422 = vmatprep.subr.mxu0 0.0
    %2423 = vmatpush2.msra.mxu0 0.0
    %2424 = vmatprep.subr.mxu0 0.0
    %2425 = vmatpush2.msra.mxu0 0.0
    %2426 = vmatprep.subr.mxu0 0.0
    %2427 = vmatpush2.msra.mxu0 0.0
    %2428 = vmatprep.subr.mxu0 0.0
    %2429 = vmatpush2.msra.mxu0 0.0
    %2430 = vmatprep.subr.mxu0 0.0
    %2431 = vmatpush2.msra.mxu0 0.0
    %2432 = vmatprep.subr.mxu0 0.0
    %2433 = vmatpush2.msra.mxu0 0.0
    %2434 = vmatprep.subr.mxu0 0.0
    %2435 = vmatpush2.msra.mxu0 0.0
    %2436 = vmatprep.subr.mxu0 0.0
    %2437 = vmatpush2.msra.mxu0 0.0
    %2438 = vmatprep.subr.mxu0 0.0
    %2439 = vmatpush2.msra.mxu0 0.0
    %2440 = vmatprep.subr.mxu0 0.0
    %2441 = vmatpush2.msra.mxu0 0.0
    %2442 = vmatprep.subr.mxu0 0.0
    %2443 = vmatpush2.msra.mxu0 0.0
    %2444 = vmatprep.subr.mxu0 0.0
    %2445 = vmatpush2.msra.mxu0 0.0
    %2446 = vmatprep.subr.mxu0 0.0
    %2447 = vmatpush2.msra.mxu0 0.0
    %2448 = vmatprep.mubr.f32.mxu0 0.0
    %2449 = vmatmul.mubr.f32.gmra.mxu0 %v2217
    %v2450 = vpop.f32.mrf.mxu0
    %v2451 = vadd.f32 %v2298, %v2450
    %v2452 = vpop.f32.mrf.mxu0
    %v2453 = vadd.f32 %v2302, %v2452
    %2454 = vmatprep.mubr.f32.mxu0 0.0
    %2455 = vmatmul.mubr.f32.gmra.mxu0 %v2218
    %v2456 = vpop.f32.mrf.mxu0
    %v2457 = vadd.f32 %v2298, %v2456
    %v2458 = vpop.f32.mrf.mxu0
    %v2459 = vadd.f32 %v2302, %v2458
    %2460 = vdwg.mxu0
    %v2461 = vtanh.pop %v2374
    %v2462 = vtanh.pop %v2376
    %v2463 = vtanh.pop %v2451
    %v2464 = vtanh.pop %v2453
    %v2465 = vtanh.pop %v2380
    %v2466 = vtanh.pop %v2382
    %v2467 = vtanh.pop %v2457
    %v2468 = vtanh.pop %v2459
    %v2469 = vld [vmem:[#allocation17] sm:$0xff]
    %v2470 = vld [vmem:[#allocation17 + $0x8] sm:$0xff]
    %v2471 = vld [vmem:[#allocation17 + $0x10] sm:$0xff]
    %v2472 = vld [vmem:[#allocation17 + $0x18] sm:$0xff]
    %v2473 = vld [vmem:[#allocation17 + $0x20] sm:$0xff]
    %v2474 = vld [vmem:[#allocation17 + $0x28] sm:$0xff]
    %v2475 = vld [vmem:[#allocation17 + $0x30] sm:$0xff]
    %v2476 = vld [vmem:[#allocation17 + $0x38] sm:$0xff]
    %v2477 = vld [vmem:[#allocation17 + $0x40] sm:$0xff]
    %v2478 = vld [vmem:[#allocation17 + $0x48] sm:$0xff]
    %v2479 = vld [vmem:[#allocation17 + $0x50] sm:$0xff]
    %v2480 = vld [vmem:[#allocation17 + $0x58] sm:$0xff]
    %v2481 = vld [vmem:[#allocation17 + $0x60] sm:$0xff]
    %v2482 = vld [vmem:[#allocation17 + $0x68] sm:$0xff]
    %v2483 = vld [vmem:[#allocation17 + $0x70] sm:$0xff]
    %v2484 = vld [vmem:[#allocation17 + $0x78] sm:$0xff]
    %v2485 = vld [vmem:[#allocation17 + $0x80] sm:$0xff]
    %v2486 = vld [vmem:[#allocation17 + $0x88] sm:$0xff]
    %v2487 = vld [vmem:[#allocation17 + $0x90] sm:$0xff]
    %v2488 = vld [vmem:[#allocation17 + $0x98] sm:$0xff]
    %v2489 = vld [vmem:[#allocation17 + $0xa0] sm:$0xff]
    %v2490 = vld [vmem:[#allocation17 + $0xa8] sm:$0xff]
    %v2491 = vld [vmem:[#allocation17 + $0xb0] sm:$0xff]
    %v2492 = vld [vmem:[#allocation17 + $0xb8] sm:$0xff]
    %v2493 = vld [vmem:[#allocation17 + $0xc0] sm:$0xff]
    %v2494 = vld [vmem:[#allocation17 + $0xc8] sm:$0xff]
    %v2495 = vld [vmem:[#allocation17 + $0xd0] sm:$0xff]
    %v2496 = vld [vmem:[#allocation17 + $0xd8] sm:$0xff]
    %v2497 = vld [vmem:[#allocation17 + $0xe0] sm:$0xff]
    %v2498 = vld [vmem:[#allocation17 + $0xe8] sm:$0xff]
    %v2499 = vld [vmem:[#allocation17 + $0xf0] sm:$0xff]
    %v2500 = vld [vmem:[#allocation17 + $0xf8] sm:$0xff]
    %v2501 = vld [vmem:[#allocation17 + $0x100] sm:$0xff]
    %v2502 = vld [vmem:[#allocation17 + $0x108] sm:$0xff]
    %v2503 = vld [vmem:[#allocation17 + $0x110] sm:$0xff]
    %v2504 = vld [vmem:[#allocation17 + $0x118] sm:$0xff]
    %v2505 = vld [vmem:[#allocation17 + $0x120] sm:$0xff]
    %v2506 = vld [vmem:[#allocation17 + $0x128] sm:$0xff]
    %v2507 = vld [vmem:[#allocation17 + $0x130] sm:$0xff]
    %v2508 = vld [vmem:[#allocation17 + $0x138] sm:$0xff]
    %v2509 = vld [vmem:[#allocation17 + $0x140] sm:$0xff]
    %v2510 = vld [vmem:[#allocation17 + $0x148] sm:$0xff]
    %v2511 = vld [vmem:[#allocation17 + $0x150] sm:$0xff]
    %v2512 = vld [vmem:[#allocation17 + $0x158] sm:$0xff]
    %v2513 = vld [vmem:[#allocation17 + $0x160] sm:$0xff]
    %v2514 = vld [vmem:[#allocation17 + $0x168] sm:$0xff]
    %v2515 = vld [vmem:[#allocation17 + $0x170] sm:$0xff]
    %v2516 = vld [vmem:[#allocation17 + $0x178] sm:$0xff]
    %v2517 = vld [vmem:[#allocation17 + $0x180] sm:$0xff]
    %v2518 = vld [vmem:[#allocation17 + $0x188] sm:$0xff]
    %v2519 = vld [vmem:[#allocation17 + $0x190] sm:$0xff]
    %v2520 = vld [vmem:[#allocation17 + $0x198] sm:$0xff]
    %v2521 = vld [vmem:[#allocation17 + $0x1a0] sm:$0xff]
    %v2522 = vld [vmem:[#allocation17 + $0x1a8] sm:$0xff]
    %v2523 = vld [vmem:[#allocation17 + $0x1b0] sm:$0xff]
    %v2524 = vld [vmem:[#allocation17 + $0x1b8] sm:$0xff]
    %v2525 = vld [vmem:[#allocation17 + $0x1c0] sm:$0xff]
    %v2526 = vld [vmem:[#allocation17 + $0x1c8] sm:$0xff]
    %v2527 = vld [vmem:[#allocation17 + $0x1d0] sm:$0xff]
    %v2528 = vld [vmem:[#allocation17 + $0x1d8] sm:$0xff]
    %v2529 = vld [vmem:[#allocation17 + $0x1e0] sm:$0xff]
    %v2530 = vld [vmem:[#allocation17 + $0x1e8] sm:$0xff]
    %v2531 = vld [vmem:[#allocation17 + $0x1f0] sm:$0xff]
    %v2532 = vld [vmem:[#allocation17 + $0x1f8] sm:$0xff]
    %v2533 = vld [vmem:[#allocation17 + $0x200] sm:$0xff]
    %v2534 = vld [vmem:[#allocation17 + $0x208] sm:$0xff]
    %v2535 = vld [vmem:[#allocation17 + $0x210] sm:$0xff]
    %v2536 = vld [vmem:[#allocation17 + $0x218] sm:$0xff]
    %v2537 = vld [vmem:[#allocation17 + $0x220] sm:$0xff]
    %v2538 = vld [vmem:[#allocation17 + $0x228] sm:$0xff]
    %v2539 = vld [vmem:[#allocation17 + $0x230] sm:$0xff]
    %v2540 = vld [vmem:[#allocation17 + $0x238] sm:$0xff]
    %v2541 = vld [vmem:[#allocation17 + $0x240] sm:$0xff]
    %v2542 = vld [vmem:[#allocation17 + $0x248] sm:$0xff]
    %v2543 = vld [vmem:[#allocation17 + $0x250] sm:$0xff]
    %v2544 = vld [vmem:[#allocation17 + $0x258] sm:$0xff]
    %v2545 = vld [vmem:[#allocation17 + $0x260] sm:$0xff]
    %v2546 = vld [vmem:[#allocation17 + $0x268] sm:$0xff]
    %v2547 = vld [vmem:[#allocation17 + $0x270] sm:$0xff]
    %v2548 = vld [vmem:[#allocation17 + $0x278] sm:$0xff]
    %v2549 = vld [vmem:[#allocation17 + $0x280] sm:$0xff]
    %v2550 = vld [vmem:[#allocation17 + $0x288] sm:$0xff]
    %v2551 = vld [vmem:[#allocation17 + $0x290] sm:$0xff]
    %v2552 = vld [vmem:[#allocation17 + $0x298] sm:$0xff]
    %v2553 = vld [vmem:[#allocation17 + $0x2a0] sm:$0xff]
    %v2554 = vld [vmem:[#allocation17 + $0x2a8] sm:$0xff]
    %v2555 = vld [vmem:[#allocation17 + $0x2b0] sm:$0xff]
    %v2556 = vld [vmem:[#allocation17 + $0x2b8] sm:$0xff]
    %v2557 = vld [vmem:[#allocation17 + $0x2c0] sm:$0xff]
    %v2558 = vld [vmem:[#allocation17 + $0x2c8] sm:$0xff]
    %v2559 = vld [vmem:[#allocation17 + $0x2d0] sm:$0xff]
    %v2560 = vld [vmem:[#allocation17 + $0x2d8] sm:$0xff]
    %v2561 = vld [vmem:[#allocation17 + $0x2e0] sm:$0xff]
    %v2562 = vld [vmem:[#allocation17 + $0x2e8] sm:$0xff]
    %v2563 = vld [vmem:[#allocation17 + $0x2f0] sm:$0xff]
    %v2564 = vld [vmem:[#allocation17 + $0x2f8] sm:$0xff]
    %v2565 = vld [vmem:[#allocation17 + $0x300] sm:$0xff]
    %v2566 = vld [vmem:[#allocation17 + $0x308] sm:$0xff]
    %v2567 = vld [vmem:[#allocation17 + $0x310] sm:$0xff]
    %v2568 = vld [vmem:[#allocation17 + $0x318] sm:$0xff]
    %v2569 = vld [vmem:[#allocation17 + $0x320] sm:$0xff]
    %v2570 = vld [vmem:[#allocation17 + $0x328] sm:$0xff]
    %v2571 = vld [vmem:[#allocation17 + $0x330] sm:$0xff]
    %v2572 = vld [vmem:[#allocation17 + $0x338] sm:$0xff]
    %v2573 = vld [vmem:[#allocation17 + $0x340] sm:$0xff]
    %v2574 = vld [vmem:[#allocation17 + $0x348] sm:$0xff]
    %v2575 = vld [vmem:[#allocation17 + $0x350] sm:$0xff]
    %v2576 = vld [vmem:[#allocation17 + $0x358] sm:$0xff]
    %v2577 = vld [vmem:[#allocation17 + $0x360] sm:$0xff]
    %v2578 = vld [vmem:[#allocation17 + $0x368] sm:$0xff]
    %v2579 = vld [vmem:[#allocation17 + $0x370] sm:$0xff]
    %v2580 = vld [vmem:[#allocation17 + $0x378] sm:$0xff]
    %v2581 = vld [vmem:[#allocation17 + $0x380] sm:$0xff]
    %v2582 = vld [vmem:[#allocation17 + $0x388] sm:$0xff]
    %v2583 = vld [vmem:[#allocation17 + $0x390] sm:$0xff]
    %v2584 = vld [vmem:[#allocation17 + $0x398] sm:$0xff]
    %v2585 = vld [vmem:[#allocation17 + $0x3a0] sm:$0xff]
    %v2586 = vld [vmem:[#allocation17 + $0x3a8] sm:$0xff]
    %v2587 = vld [vmem:[#allocation17 + $0x3b0] sm:$0xff]
    %v2588 = vld [vmem:[#allocation17 + $0x3b8] sm:$0xff]
    %v2589 = vld [vmem:[#allocation17 + $0x3c0] sm:$0xff]
    %v2590 = vld [vmem:[#allocation17 + $0x3c8] sm:$0xff]
    %v2591 = vld [vmem:[#allocation17 + $0x3d0] sm:$0xff]
    %v2592 = vld [vmem:[#allocation17 + $0x3d8] sm:$0xff]
    %v2593 = vld [vmem:[#allocation17 + $0x3e0] sm:$0xff]
    %v2594 = vld [vmem:[#allocation17 + $0x3e8] sm:$0xff]
    %v2595 = vld [vmem:[#allocation17 + $0x3f0] sm:$0xff]
    %v2596 = vld [vmem:[#allocation17 + $0x3f8] sm:$0xff]
    %v2597 = vld [vmem:[#allocation17 + $0x400] sm:$0xff]
    %v2598 = vld [vmem:[#allocation17 + $0x408] sm:$0xff]
    %v2599 = vld [vmem:[#allocation17 + $0x410] sm:$0xff]
    %v2600 = vld [vmem:[#allocation17 + $0x418] sm:$0xff]
    %v2601 = vld [vmem:[#allocation17 + $0x420] sm:$0xff]
    %v2602 = vld [vmem:[#allocation17 + $0x428] sm:$0xff]
    %v2603 = vld [vmem:[#allocation17 + $0x430] sm:$0xff]
    %v2604 = vld [vmem:[#allocation17 + $0x438] sm:$0xff]
    %v2605 = vld [vmem:[#allocation17 + $0x440] sm:$0xff]
    %v2606 = vld [vmem:[#allocation17 + $0x448] sm:$0xff]
    %v2607 = vld [vmem:[#allocation17 + $0x450] sm:$0xff]
    %v2608 = vld [vmem:[#allocation17 + $0x458] sm:$0xff]
    %v2609 = vld [vmem:[#allocation17 + $0x460] sm:$0xff]
    %v2610 = vld [vmem:[#allocation17 + $0x468] sm:$0xff]
    %v2611 = vld [vmem:[#allocation17 + $0x470] sm:$0xff]
    %v2612 = vld [vmem:[#allocation17 + $0x478] sm:$0xff]
    %v2613 = vld [vmem:[#allocation17 + $0x480] sm:$0xff]
    %v2614 = vld [vmem:[#allocation17 + $0x488] sm:$0xff]
    %v2615 = vld [vmem:[#allocation17 + $0x490] sm:$0xff]
    %v2616 = vld [vmem:[#allocation17 + $0x498] sm:$0xff]
    %v2617 = vld [vmem:[#allocation17 + $0x4a0] sm:$0xff]
    %v2618 = vld [vmem:[#allocation17 + $0x4a8] sm:$0xff]
    %v2619 = vld [vmem:[#allocation17 + $0x4b0] sm:$0xff]
    %v2620 = vld [vmem:[#allocation17 + $0x4b8] sm:$0xff]
    %v2621 = vld [vmem:[#allocation17 + $0x4c0] sm:$0xff]
    %v2622 = vld [vmem:[#allocation17 + $0x4c8] sm:$0xff]
    %v2623 = vld [vmem:[#allocation17 + $0x4d0] sm:$0xff]
    %v2624 = vld [vmem:[#allocation17 + $0x4d8] sm:$0xff]
    %v2625 = vld [vmem:[#allocation17 + $0x4e0] sm:$0xff]
    %v2626 = vld [vmem:[#allocation17 + $0x4e8] sm:$0xff]
    %v2627 = vld [vmem:[#allocation17 + $0x4f0] sm:$0xff]
    %v2628 = vld [vmem:[#allocation17 + $0x4f8] sm:$0xff]
    %v2629 = vld [vmem:[#allocation17 + $0x500] sm:$0xff]
    %v2630 = vld [vmem:[#allocation17 + $0x508] sm:$0xff]
    %v2631 = vld [vmem:[#allocation17 + $0x510] sm:$0xff]
    %v2632 = vld [vmem:[#allocation17 + $0x518] sm:$0xff]
    %v2633 = vld [vmem:[#allocation17 + $0x520] sm:$0xff]
    %v2634 = vld [vmem:[#allocation17 + $0x528] sm:$0xff]
    %v2635 = vld [vmem:[#allocation17 + $0x530] sm:$0xff]
    %v2636 = vld [vmem:[#allocation17 + $0x538] sm:$0xff]
    %v2637 = vld [vmem:[#allocation17 + $0x540] sm:$0xff]
    %v2638 = vld [vmem:[#allocation17 + $0x548] sm:$0xff]
    %v2639 = vld [vmem:[#allocation17 + $0x550] sm:$0xff]
    %v2640 = vld [vmem:[#allocation17 + $0x558] sm:$0xff]
    %v2641 = vld [vmem:[#allocation17 + $0x560] sm:$0xff]
    %v2642 = vld [vmem:[#allocation17 + $0x568] sm:$0xff]
    %v2643 = vld [vmem:[#allocation17 + $0x570] sm:$0xff]
    %v2644 = vld [vmem:[#allocation17 + $0x578] sm:$0xff]
    %v2645 = vld [vmem:[#allocation17 + $0x580] sm:$0xff]
    %v2646 = vld [vmem:[#allocation17 + $0x588] sm:$0xff]
    %v2647 = vld [vmem:[#allocation17 + $0x590] sm:$0xff]
    %v2648 = vld [vmem:[#allocation17 + $0x598] sm:$0xff]
    %v2649 = vld [vmem:[#allocation17 + $0x5a0] sm:$0xff]
    %v2650 = vld [vmem:[#allocation17 + $0x5a8] sm:$0xff]
    %v2651 = vld [vmem:[#allocation17 + $0x5b0] sm:$0xff]
    %v2652 = vld [vmem:[#allocation17 + $0x5b8] sm:$0xff]
    %v2653 = vld [vmem:[#allocation17 + $0x5c0] sm:$0xff]
    %v2654 = vld [vmem:[#allocation17 + $0x5c8] sm:$0xff]
    %v2655 = vld [vmem:[#allocation17 + $0x5d0] sm:$0xff]
    %v2656 = vld [vmem:[#allocation17 + $0x5d8] sm:$0xff]
    %v2657 = vld [vmem:[#allocation17 + $0x5e0] sm:$0xff]
    %v2658 = vld [vmem:[#allocation17 + $0x5e8] sm:$0xff]
    %v2659 = vld [vmem:[#allocation17 + $0x5f0] sm:$0xff]
    %v2660 = vld [vmem:[#allocation17 + $0x5f8] sm:$0xff]
    %v2661 = vld [vmem:[#allocation17 + $0x600] sm:$0xff]
    %v2662 = vld [vmem:[#allocation17 + $0x608] sm:$0xff]
    %v2663 = vld [vmem:[#allocation17 + $0x610] sm:$0xff]
    %v2664 = vld [vmem:[#allocation17 + $0x618] sm:$0xff]
    %v2665 = vld [vmem:[#allocation17 + $0x620] sm:$0xff]
    %v2666 = vld [vmem:[#allocation17 + $0x628] sm:$0xff]
    %v2667 = vld [vmem:[#allocation17 + $0x630] sm:$0xff]
    %v2668 = vld [vmem:[#allocation17 + $0x638] sm:$0xff]
    %v2669 = vld [vmem:[#allocation17 + $0x640] sm:$0xff]
    %v2670 = vld [vmem:[#allocation17 + $0x648] sm:$0xff]
    %v2671 = vld [vmem:[#allocation17 + $0x650] sm:$0xff]
    %v2672 = vld [vmem:[#allocation17 + $0x658] sm:$0xff]
    %v2673 = vld [vmem:[#allocation17 + $0x660] sm:$0xff]
    %v2674 = vld [vmem:[#allocation17 + $0x668] sm:$0xff]
    %v2675 = vld [vmem:[#allocation17 + $0x670] sm:$0xff]
    %v2676 = vld [vmem:[#allocation17 + $0x678] sm:$0xff]
    %v2677 = vld [vmem:[#allocation17 + $0x680] sm:$0xff]
    %v2678 = vld [vmem:[#allocation17 + $0x688] sm:$0xff]
    %v2679 = vld [vmem:[#allocation17 + $0x690] sm:$0xff]
    %v2680 = vld [vmem:[#allocation17 + $0x698] sm:$0xff]
    %v2681 = vld [vmem:[#allocation17 + $0x6a0] sm:$0xff]
    %v2682 = vld [vmem:[#allocation17 + $0x6a8] sm:$0xff]
    %v2683 = vld [vmem:[#allocation17 + $0x6b0] sm:$0xff]
    %v2684 = vld [vmem:[#allocation17 + $0x6b8] sm:$0xff]
    %v2685 = vld [vmem:[#allocation17 + $0x6c0] sm:$0xff]
    %v2686 = vld [vmem:[#allocation17 + $0x6c8] sm:$0xff]
    %v2687 = vld [vmem:[#allocation17 + $0x6d0] sm:$0xff]
    %v2688 = vld [vmem:[#allocation17 + $0x6d8] sm:$0xff]
    %v2689 = vld [vmem:[#allocation17 + $0x6e0] sm:$0xff]
    %v2690 = vld [vmem:[#allocation17 + $0x6e8] sm:$0xff]
    %v2691 = vld [vmem:[#allocation17 + $0x6f0] sm:$0xff]
    %v2692 = vld [vmem:[#allocation17 + $0x6f8] sm:$0xff]
    %v2693 = vld [vmem:[#allocation17 + $0x700] sm:$0xff]
    %v2694 = vld [vmem:[#allocation17 + $0x708] sm:$0xff]
    %v2695 = vld [vmem:[#allocation17 + $0x710] sm:$0xff]
    %v2696 = vld [vmem:[#allocation17 + $0x718] sm:$0xff]
    %v2697 = vld [vmem:[#allocation17 + $0x720] sm:$0xff]
    %v2698 = vld [vmem:[#allocation17 + $0x728] sm:$0xff]
    %v2699 = vld [vmem:[#allocation17 + $0x730] sm:$0xff]
    %v2700 = vld [vmem:[#allocation17 + $0x738] sm:$0xff]
    %v2701 = vld [vmem:[#allocation17 + $0x740] sm:$0xff]
    %v2702 = vld [vmem:[#allocation17 + $0x748] sm:$0xff]
    %v2703 = vld [vmem:[#allocation17 + $0x750] sm:$0xff]
    %v2704 = vld [vmem:[#allocation17 + $0x758] sm:$0xff]
    %v2705 = vld [vmem:[#allocation17 + $0x760] sm:$0xff]
    %v2706 = vld [vmem:[#allocation17 + $0x768] sm:$0xff]
    %v2707 = vld [vmem:[#allocation17 + $0x770] sm:$0xff]
    %v2708 = vld [vmem:[#allocation17 + $0x778] sm:$0xff]
    %v2709 = vld [vmem:[#allocation17 + $0x780] sm:$0xff]
    %v2710 = vld [vmem:[#allocation17 + $0x788] sm:$0xff]
    %v2711 = vld [vmem:[#allocation17 + $0x790] sm:$0xff]
    %v2712 = vld [vmem:[#allocation17 + $0x798] sm:$0xff]
    %v2713 = vld [vmem:[#allocation17 + $0x7a0] sm:$0xff]
    %v2714 = vld [vmem:[#allocation17 + $0x7a8] sm:$0xff]
    %v2715 = vld [vmem:[#allocation17 + $0x7b0] sm:$0xff]
    %v2716 = vld [vmem:[#allocation17 + $0x7b8] sm:$0xff]
    %v2717 = vld [vmem:[#allocation17 + $0x7c0] sm:$0xff]
    %v2718 = vld [vmem:[#allocation17 + $0x7c8] sm:$0xff]
    %v2719 = vld [vmem:[#allocation17 + $0x7d0] sm:$0xff]
    %v2720 = vld [vmem:[#allocation17 + $0x7d8] sm:$0xff]
    %v2721 = vld [vmem:[#allocation17 + $0x7e0] sm:$0xff]
    %v2722 = vld [vmem:[#allocation17 + $0x7e8] sm:$0xff]
    %v2723 = vld [vmem:[#allocation17 + $0x7f0] sm:$0xff]
    %v2724 = vld [vmem:[#allocation17 + $0x7f8] sm:$0xff]
    %v2725 = vld [vmem:[#allocation17 + $0x800] sm:$0xff]
    %v2726 = vld [vmem:[#allocation17 + $0x808] sm:$0xff]
    %v2727 = vld [vmem:[#allocation17 + $0x810] sm:$0xff]
    %v2728 = vld [vmem:[#allocation17 + $0x818] sm:$0xff]
    %v2729 = vld [vmem:[#allocation17 + $0x820] sm:$0xff]
    %v2730 = vld [vmem:[#allocation17 + $0x828] sm:$0xff]
    %v2731 = vld [vmem:[#allocation17 + $0x830] sm:$0xff]
    %v2732 = vld [vmem:[#allocation17 + $0x838] sm:$0xff]
    %v2733 = vld [vmem:[#allocation17 + $0x840] sm:$0xff]
    %v2734 = vld [vmem:[#allocation17 + $0x848] sm:$0xff]
    %v2735 = vld [vmem:[#allocation17 + $0x850] sm:$0xff]
    %v2736 = vld [vmem:[#allocation17 + $0x858] sm:$0xff]
    %v2737 = vld [vmem:[#allocation17 + $0x860] sm:$0xff]
    %v2738 = vld [vmem:[#allocation17 + $0x868] sm:$0xff]
    %v2739 = vld [vmem:[#allocation17 + $0x870] sm:$0xff]
    %v2740 = vld [vmem:[#allocation17 + $0x878] sm:$0xff]
    %v2741 = vld [vmem:[#allocation17 + $0x880] sm:$0xff]
    %v2742 = vld [vmem:[#allocation17 + $0x888] sm:$0xff]
    %v2743 = vld [vmem:[#allocation17 + $0x890] sm:$0xff]
    %v2744 = vld [vmem:[#allocation17 + $0x898] sm:$0xff]
    %v2745 = vld [vmem:[#allocation17 + $0x8a0] sm:$0xff]
    %v2746 = vld [vmem:[#allocation17 + $0x8a8] sm:$0xff]
    %v2747 = vld [vmem:[#allocation17 + $0x8b0] sm:$0xff]
    %v2748 = vld [vmem:[#allocation17 + $0x8b8] sm:$0xff]
    %v2749 = vld [vmem:[#allocation17 + $0x8c0] sm:$0xff]
    %v2750 = vld [vmem:[#allocation17 + $0x8c8] sm:$0xff]
    %v2751 = vld [vmem:[#allocation17 + $0x8d0] sm:$0xff]
    %v2752 = vld [vmem:[#allocation17 + $0x8d8] sm:$0xff]
    %v2753 = vld [vmem:[#allocation17 + $0x8e0] sm:$0xff]
    %v2754 = vld [vmem:[#allocation17 + $0x8e8] sm:$0xff]
    %v2755 = vld [vmem:[#allocation17 + $0x8f0] sm:$0xff]
    %v2756 = vld [vmem:[#allocation17 + $0x8f8] sm:$0xff]
    %v2757 = vld [vmem:[#allocation17 + $0x900] sm:$0xff]
    %v2758 = vld [vmem:[#allocation17 + $0x908] sm:$0xff]
    %v2759 = vld [vmem:[#allocation17 + $0x910] sm:$0xff]
    %v2760 = vld [vmem:[#allocation17 + $0x918] sm:$0xff]
    %v2761 = vld [vmem:[#allocation17 + $0x920] sm:$0xff]
    %v2762 = vld [vmem:[#allocation17 + $0x928] sm:$0xff]
    %v2763 = vld [vmem:[#allocation17 + $0x930] sm:$0xff]
    %v2764 = vld [vmem:[#allocation17 + $0x938] sm:$0xff]
    %v2765 = vld [vmem:[#allocation17 + $0x940] sm:$0xff]
    %v2766 = vld [vmem:[#allocation17 + $0x948] sm:$0xff]
    %v2767 = vld [vmem:[#allocation17 + $0x950] sm:$0xff]
    %v2768 = vld [vmem:[#allocation17 + $0x958] sm:$0xff]
    %v2769 = vld [vmem:[#allocation17 + $0x960] sm:$0xff]
    %v2770 = vld [vmem:[#allocation17 + $0x968] sm:$0xff]
    %v2771 = vld [vmem:[#allocation17 + $0x970] sm:$0xff]
    %v2772 = vld [vmem:[#allocation17 + $0x978] sm:$0xff]
    %v2773 = vld [vmem:[#allocation17 + $0x980] sm:$0xff]
    %v2774 = vld [vmem:[#allocation17 + $0x988] sm:$0xff]
    %v2775 = vld [vmem:[#allocation17 + $0x990] sm:$0xff]
    %v2776 = vld [vmem:[#allocation17 + $0x998] sm:$0xff]
    %v2777 = vld [vmem:[#allocation17 + $0x9a0] sm:$0xff]
    %v2778 = vld [vmem:[#allocation17 + $0x9a8] sm:$0xff]
    %v2779 = vld [vmem:[#allocation17 + $0x9b0] sm:$0xff]
    %v2780 = vld [vmem:[#allocation17 + $0x9b8] sm:$0xff]
    %v2781 = vld [vmem:[#allocation17 + $0x9c0] sm:$0xff]
    %v2782 = vld [vmem:[#allocation17 + $0x9c8] sm:$0xff]
    %v2783 = vld [vmem:[#allocation17 + $0x9d0] sm:$0xff]
    %v2784 = vld [vmem:[#allocation17 + $0x9d8] sm:$0xff]
    %v2785 = vld [vmem:[#allocation17 + $0x9e0] sm:$0xff]
    %v2786 = vld [vmem:[#allocation17 + $0x9e8] sm:$0xff]
    %v2787 = vld [vmem:[#allocation17 + $0x9f0] sm:$0xff]
    %v2788 = vld [vmem:[#allocation17 + $0x9f8] sm:$0xff]
    %v2789 = vld [vmem:[#allocation17 + $0xa00] sm:$0xff]
    %v2790 = vld [vmem:[#allocation17 + $0xa08] sm:$0xff]
    %v2791 = vld [vmem:[#allocation17 + $0xa10] sm:$0xff]
    %v2792 = vld [vmem:[#allocation17 + $0xa18] sm:$0xff]
    %v2793 = vld [vmem:[#allocation17 + $0xa20] sm:$0xff]
    %v2794 = vld [vmem:[#allocation17 + $0xa28] sm:$0xff]
    %v2795 = vld [vmem:[#allocation17 + $0xa30] sm:$0xff]
    %v2796 = vld [vmem:[#allocation17 + $0xa38] sm:$0xff]
    %v2797 = vld [vmem:[#allocation17 + $0xa40] sm:$0xff]
    %v2798 = vld [vmem:[#allocation17 + $0xa48] sm:$0xff]
    %v2799 = vld [vmem:[#allocation17 + $0xa50] sm:$0xff]
    %v2800 = vld [vmem:[#allocation17 + $0xa58] sm:$0xff]
    %v2801 = vld [vmem:[#allocation17 + $0xa60] sm:$0xff]
    %v2802 = vld [vmem:[#allocation17 + $0xa68] sm:$0xff]
    %v2803 = vld [vmem:[#allocation17 + $0xa70] sm:$0xff]
    %v2804 = vld [vmem:[#allocation17 + $0xa78] sm:$0xff]
    %v2805 = vld [vmem:[#allocation17 + $0xa80] sm:$0xff]
    %v2806 = vld [vmem:[#allocation17 + $0xa88] sm:$0xff]
    %v2807 = vld [vmem:[#allocation17 + $0xa90] sm:$0xff]
    %v2808 = vld [vmem:[#allocation17 + $0xa98] sm:$0xff]
    %v2809 = vld [vmem:[#allocation17 + $0xaa0] sm:$0xff]
    %v2810 = vld [vmem:[#allocation17 + $0xaa8] sm:$0xff]
    %v2811 = vld [vmem:[#allocation17 + $0xab0] sm:$0xff]
    %v2812 = vld [vmem:[#allocation17 + $0xab8] sm:$0xff]
    %v2813 = vld [vmem:[#allocation17 + $0xac0] sm:$0xff]
    %v2814 = vld [vmem:[#allocation17 + $0xac8] sm:$0xff]
    %v2815 = vld [vmem:[#allocation17 + $0xad0] sm:$0xff]
    %v2816 = vld [vmem:[#allocation17 + $0xad8] sm:$0xff]
    %v2817 = vld [vmem:[#allocation17 + $0xae0] sm:$0xff]
    %v2818 = vld [vmem:[#allocation17 + $0xae8] sm:$0xff]
    %v2819 = vld [vmem:[#allocation17 + $0xaf0] sm:$0xff]
    %v2820 = vld [vmem:[#allocation17 + $0xaf8] sm:$0xff]
    %v2821 = vld [vmem:[#allocation17 + $0xb00] sm:$0xff]
    %v2822 = vld [vmem:[#allocation17 + $0xb08] sm:$0xff]
    %v2823 = vld [vmem:[#allocation17 + $0xb10] sm:$0xff]
    %v2824 = vld [vmem:[#allocation17 + $0xb18] sm:$0xff]
    %v2825 = vld [vmem:[#allocation17 + $0xb20] sm:$0xff]
    %v2826 = vld [vmem:[#allocation17 + $0xb28] sm:$0xff]
    %v2827 = vld [vmem:[#allocation17 + $0xb30] sm:$0xff]
    %v2828 = vld [vmem:[#allocation17 + $0xb38] sm:$0xff]
    %v2829 = vld [vmem:[#allocation17 + $0xb40] sm:$0xff]
    %v2830 = vld [vmem:[#allocation17 + $0xb48] sm:$0xff]
    %v2831 = vld [vmem:[#allocation17 + $0xb50] sm:$0xff]
    %v2832 = vld [vmem:[#allocation17 + $0xb58] sm:$0xff]
    %v2833 = vld [vmem:[#allocation17 + $0xb60] sm:$0xff]
    %v2834 = vld [vmem:[#allocation17 + $0xb68] sm:$0xff]
    %v2835 = vld [vmem:[#allocation17 + $0xb70] sm:$0xff]
    %v2836 = vld [vmem:[#allocation17 + $0xb78] sm:$0xff]
    %v2837 = vld [vmem:[#allocation17 + $0xb80] sm:$0xff]
    %v2838 = vld [vmem:[#allocation17 + $0xb88] sm:$0xff]
    %v2839 = vld [vmem:[#allocation17 + $0xb90] sm:$0xff]
    %v2840 = vld [vmem:[#allocation17 + $0xb98] sm:$0xff]
    %v2841 = vld [vmem:[#allocation17 + $0xba0] sm:$0xff]
    %v2842 = vld [vmem:[#allocation17 + $0xba8] sm:$0xff]
    %v2843 = vld [vmem:[#allocation17 + $0xbb0] sm:$0xff]
    %v2844 = vld [vmem:[#allocation17 + $0xbb8] sm:$0xff]
    %v2845 = vld [vmem:[#allocation17 + $0xbc0] sm:$0xff]
    %v2846 = vld [vmem:[#allocation17 + $0xbc8] sm:$0xff]
    %v2847 = vld [vmem:[#allocation17 + $0xbd0] sm:$0xff]
    %v2848 = vld [vmem:[#allocation17 + $0xbd8] sm:$0xff]
    %v2849 = vld [vmem:[#allocation17 + $0xbe0] sm:$0xff]
    %v2850 = vld [vmem:[#allocation17 + $0xbe8] sm:$0xff]
    %v2851 = vld [vmem:[#allocation17 + $0xbf0] sm:$0xff]
    %v2852 = vld [vmem:[#allocation17 + $0xbf8] sm:$0xff]
    %v2853 = vld [vmem:[#allocation17 + $0xc00] sm:$0xff]
    %v2854 = vld [vmem:[#allocation17 + $0xc08] sm:$0xff]
    %v2855 = vld [vmem:[#allocation17 + $0xc10] sm:$0xff]
    %v2856 = vld [vmem:[#allocation17 + $0xc18] sm:$0xff]
    %v2857 = vld [vmem:[#allocation17 + $0xc20] sm:$0xff]
    %v2858 = vld [vmem:[#allocation17 + $0xc28] sm:$0xff]
    %v2859 = vld [vmem:[#allocation17 + $0xc30] sm:$0xff]
    %v2860 = vld [vmem:[#allocation17 + $0xc38] sm:$0xff]
    %v2861 = vld [vmem:[#allocation17 + $0xc40] sm:$0xff]
    %v2862 = vld [vmem:[#allocation17 + $0xc48] sm:$0xff]
    %v2863 = vld [vmem:[#allocation17 + $0xc50] sm:$0xff]
    %v2864 = vld [vmem:[#allocation17 + $0xc58] sm:$0xff]
    %v2865 = vld [vmem:[#allocation17 + $0xc60] sm:$0xff]
    %v2866 = vld [vmem:[#allocation17 + $0xc68] sm:$0xff]
    %v2867 = vld [vmem:[#allocation17 + $0xc70] sm:$0xff]
    %v2868 = vld [vmem:[#allocation17 + $0xc78] sm:$0xff]
    %v2869 = vld [vmem:[#allocation17 + $0xc80] sm:$0xff]
    %v2870 = vld [vmem:[#allocation17 + $0xc88] sm:$0xff]
    %v2871 = vld [vmem:[#allocation17 + $0xc90] sm:$0xff]
    %v2872 = vld [vmem:[#allocation17 + $0xc98] sm:$0xff]
    %v2873 = vld [vmem:[#allocation17 + $0xca0] sm:$0xff]
    %v2874 = vld [vmem:[#allocation17 + $0xca8] sm:$0xff]
    %v2875 = vld [vmem:[#allocation17 + $0xcb0] sm:$0xff]
    %v2876 = vld [vmem:[#allocation17 + $0xcb8] sm:$0xff]
    %v2877 = vld [vmem:[#allocation17 + $0xcc0] sm:$0xff]
    %v2878 = vld [vmem:[#allocation17 + $0xcc8] sm:$0xff]
    %v2879 = vld [vmem:[#allocation17 + $0xcd0] sm:$0xff]
    %v2880 = vld [vmem:[#allocation17 + $0xcd8] sm:$0xff]
    %v2881 = vld [vmem:[#allocation17 + $0xce0] sm:$0xff]
    %v2882 = vld [vmem:[#allocation17 + $0xce8] sm:$0xff]
    %v2883 = vld [vmem:[#allocation17 + $0xcf0] sm:$0xff]
    %v2884 = vld [vmem:[#allocation17 + $0xcf8] sm:$0xff]
    %v2885 = vld [vmem:[#allocation17 + $0xd00] sm:$0xff]
    %v2886 = vld [vmem:[#allocation17 + $0xd08] sm:$0xff]
    %v2887 = vld [vmem:[#allocation17 + $0xd10] sm:$0xff]
    %v2888 = vld [vmem:[#allocation17 + $0xd18] sm:$0xff]
    %v2889 = vld [vmem:[#allocation17 + $0xd20] sm:$0xff]
    %v2890 = vld [vmem:[#allocation17 + $0xd28] sm:$0xff]
    %v2891 = vld [vmem:[#allocation17 + $0xd30] sm:$0xff]
    %v2892 = vld [vmem:[#allocation17 + $0xd38] sm:$0xff]
    %v2893 = vld [vmem:[#allocation17 + $0xd40] sm:$0xff]
    %v2894 = vld [vmem:[#allocation17 + $0xd48] sm:$0xff]
    %v2895 = vld [vmem:[#allocation17 + $0xd50] sm:$0xff]
    %v2896 = vld [vmem:[#allocation17 + $0xd58] sm:$0xff]
    %v2897 = vld [vmem:[#allocation17 + $0xd60] sm:$0xff]
    %v2898 = vld [vmem:[#allocation17 + $0xd68] sm:$0xff]
    %v2899 = vld [vmem:[#allocation17 + $0xd70] sm:$0xff]
    %v2900 = vld [vmem:[#allocation17 + $0xd78] sm:$0xff]
    %v2901 = vld [vmem:[#allocation17 + $0xd80] sm:$0xff]
    %v2902 = vld [vmem:[#allocation17 + $0xd88] sm:$0xff]
    %v2903 = vld [vmem:[#allocation17 + $0xd90] sm:$0xff]
    %v2904 = vld [vmem:[#allocation17 + $0xd98] sm:$0xff]
    %v2905 = vld [vmem:[#allocation17 + $0xda0] sm:$0xff]
    %v2906 = vld [vmem:[#allocation17 + $0xda8] sm:$0xff]
    %v2907 = vld [vmem:[#allocation17 + $0xdb0] sm:$0xff]
    %v2908 = vld [vmem:[#allocation17 + $0xdb8] sm:$0xff]
    %v2909 = vld [vmem:[#allocation17 + $0xdc0] sm:$0xff]
    %v2910 = vld [vmem:[#allocation17 + $0xdc8] sm:$0xff]
    %v2911 = vld [vmem:[#allocation17 + $0xdd0] sm:$0xff]
    %v2912 = vld [vmem:[#allocation17 + $0xdd8] sm:$0xff]
    %v2913 = vld [vmem:[#allocation17 + $0xde0] sm:$0xff]
    %v2914 = vld [vmem:[#allocation17 + $0xde8] sm:$0xff]
    %v2915 = vld [vmem:[#allocation17 + $0xdf0] sm:$0xff]
    %v2916 = vld [vmem:[#allocation17 + $0xdf8] sm:$0xff]
    %v2917 = vld [vmem:[#allocation17 + $0xe00] sm:$0xff]
    %v2918 = vld [vmem:[#allocation17 + $0xe08] sm:$0xff]
    %v2919 = vld [vmem:[#allocation17 + $0xe10] sm:$0xff]
    %v2920 = vld [vmem:[#allocation17 + $0xe18] sm:$0xff]
    %v2921 = vld [vmem:[#allocation17 + $0xe20] sm:$0xff]
    %v2922 = vld [vmem:[#allocation17 + $0xe28] sm:$0xff]
    %v2923 = vld [vmem:[#allocation17 + $0xe30] sm:$0xff]
    %v2924 = vld [vmem:[#allocation17 + $0xe38] sm:$0xff]
    %v2925 = vld [vmem:[#allocation17 + $0xe40] sm:$0xff]
    %v2926 = vld [vmem:[#allocation17 + $0xe48] sm:$0xff]
    %v2927 = vld [vmem:[#allocation17 + $0xe50] sm:$0xff]
    %v2928 = vld [vmem:[#allocation17 + $0xe58] sm:$0xff]
    %v2929 = vld [vmem:[#allocation17 + $0xe60] sm:$0xff]
    %v2930 = vld [vmem:[#allocation17 + $0xe68] sm:$0xff]
    %v2931 = vld [vmem:[#allocation17 + $0xe70] sm:$0xff]
    %v2932 = vld [vmem:[#allocation17 + $0xe78] sm:$0xff]
    %v2933 = vld [vmem:[#allocation17 + $0xe80] sm:$0xff]
    %v2934 = vld [vmem:[#allocation17 + $0xe88] sm:$0xff]
    %v2935 = vld [vmem:[#allocation17 + $0xe90] sm:$0xff]
    %v2936 = vld [vmem:[#allocation17 + $0xe98] sm:$0xff]
    %v2937 = vld [vmem:[#allocation17 + $0xea0] sm:$0xff]
    %v2938 = vld [vmem:[#allocation17 + $0xea8] sm:$0xff]
    %v2939 = vld [vmem:[#allocation17 + $0xeb0] sm:$0xff]
    %v2940 = vld [vmem:[#allocation17 + $0xeb8] sm:$0xff]
    %v2941 = vld [vmem:[#allocation17 + $0xec0] sm:$0xff]
    %v2942 = vld [vmem:[#allocation17 + $0xec8] sm:$0xff]
    %v2943 = vld [vmem:[#allocation17 + $0xed0] sm:$0xff]
    %v2944 = vld [vmem:[#allocation17 + $0xed8] sm:$0xff]
    %v2945 = vld [vmem:[#allocation17 + $0xee0] sm:$0xff]
    %v2946 = vld [vmem:[#allocation17 + $0xee8] sm:$0xff]
    %v2947 = vld [vmem:[#allocation17 + $0xef0] sm:$0xff]
    %v2948 = vld [vmem:[#allocation17 + $0xef8] sm:$0xff]
    %v2949 = vld [vmem:[#allocation17 + $0xf00] sm:$0xff]
    %v2950 = vld [vmem:[#allocation17 + $0xf08] sm:$0xff]
    %v2951 = vld [vmem:[#allocation17 + $0xf10] sm:$0xff]
    %v2952 = vld [vmem:[#allocation17 + $0xf18] sm:$0xff]
    %v2953 = vld [vmem:[#allocation17 + $0xf20] sm:$0xff]
    %v2954 = vld [vmem:[#allocation17 + $0xf28] sm:$0xff]
    %v2955 = vld [vmem:[#allocation17 + $0xf30] sm:$0xff]
    %v2956 = vld [vmem:[#allocation17 + $0xf38] sm:$0xff]
    %v2957 = vld [vmem:[#allocation17 + $0xf40] sm:$0xff]
    %v2958 = vld [vmem:[#allocation17 + $0xf48] sm:$0xff]
    %v2959 = vld [vmem:[#allocation17 + $0xf50] sm:$0xff]
    %v2960 = vld [vmem:[#allocation17 + $0xf58] sm:$0xff]
    %v2961 = vld [vmem:[#allocation17 + $0xf60] sm:$0xff]
    %v2962 = vld [vmem:[#allocation17 + $0xf68] sm:$0xff]
    %v2963 = vld [vmem:[#allocation17 + $0xf70] sm:$0xff]
    %v2964 = vld [vmem:[#allocation17 + $0xf78] sm:$0xff]
    %v2965 = vld [vmem:[#allocation17 + $0xf80] sm:$0xff]
    %v2966 = vld [vmem:[#allocation17 + $0xf88] sm:$0xff]
    %v2967 = vld [vmem:[#allocation17 + $0xf90] sm:$0xff]
    %v2968 = vld [vmem:[#allocation17 + $0xf98] sm:$0xff]
    %v2969 = vld [vmem:[#allocation17 + $0xfa0] sm:$0xff]
    %v2970 = vld [vmem:[#allocation17 + $0xfa8] sm:$0xff]
    %v2971 = vld [vmem:[#allocation17 + $0xfb0] sm:$0xff]
    %v2972 = vld [vmem:[#allocation17 + $0xfb8] sm:$0xff]
    %v2973 = vld [vmem:[#allocation17 + $0xfc0] sm:$0xff]
    %v2974 = vld [vmem:[#allocation17 + $0xfc8] sm:$0xff]
    %v2975 = vld [vmem:[#allocation17 + $0xfd0] sm:$0xff]
    %v2976 = vld [vmem:[#allocation17 + $0xfd8] sm:$0xff]
    %v2977 = vld [vmem:[#allocation17 + $0xfe0] sm:$0xff]
    %v2978 = vld [vmem:[#allocation17 + $0xfe8] sm:$0xff]
    %v2979 = vld [vmem:[#allocation17 + $0xff0] sm:$0xff]
    %v2980 = vld [vmem:[#allocation17 + $0xff8] sm:$0xff]
    %v2981 = vld [vmem:[#allocation19] sm:$0xff]
    %v2983 = vlaneseq
    %v2984 = vshrl.u32 %v2983, 7
    %v2985 = vsub.s32 0, %v2984
    %v2986 = vrot.slane %v2981, %v2985
    %v2987 = vlaneseq
    %v2988 = vshrl.u32 %v2987, 7
    %v2989 = vsub.s32 1, %v2988
    %v2990 = vrot.slane %v2981, %v2989
    %v2991 = vlaneseq
    %v2992 = vshrl.u32 %v2991, 7
    %v2993 = vsub.s32 2, %v2992
    %v2994 = vrot.slane %v2981, %v2993
    %v2995 = vlaneseq
    %v2996 = vshrl.u32 %v2995, 7
    %v2997 = vsub.s32 3, %v2996
    %v2998 = vrot.slane %v2981, %v2997
    %v2999 = vlaneseq
    %v3000 = vshrl.u32 %v2999, 7
    %v3001 = vsub.s32 4, %v3000
    %v3002 = vrot.slane %v2981, %v3001
    %v3003 = vlaneseq
    %v3004 = vshrl.u32 %v3003, 7
    %v3005 = vsub.s32 5, %v3004
    %v3006 = vrot.slane %v2981, %v3005
    %v3007 = vlaneseq
    %v3008 = vshrl.u32 %v3007, 7
    %v3009 = vsub.s32 6, %v3008
    %v3010 = vrot.slane %v2981, %v3009
    %v3011 = vlaneseq
    %v3012 = vshrl.u32 %v3011, 7
    %v3013 = vsub.s32 7, %v3012
    %v3014 = vrot.slane %v2981, %v3013
    %3023 = vmatprep.subr.mxu0 %v2590
    %3024 = vmatpush1.msra.mxu0 %v2589
    %3025 = vmatprep.subr.mxu0 %v2582
    %3026 = vmatpush1.msra.mxu0 %v2581
    %3027 = vmatprep.subr.mxu0 %v2574
    %3028 = vmatpush1.msra.mxu0 %v2573
    %3029 = vmatprep.subr.mxu0 %v2566
    %3030 = vmatpush1.msra.mxu0 %v2565
    %3031 = vmatprep.subr.mxu0 %v2558
    %3032 = vmatpush1.msra.mxu0 %v2557
    %3033 = vmatprep.subr.mxu0 %v2550
    %3034 = vmatpush1.msra.mxu0 %v2549
    %3035 = vmatprep.subr.mxu0 %v2542
    %3036 = vmatpush1.msra.mxu0 %v2541
    %3037 = vmatprep.subr.mxu0 %v2534
    %3038 = vmatpush1.msra.mxu0 %v2533
    %3039 = vmatprep.subr.mxu0 %v2526
    %3040 = vmatpush1.msra.mxu0 %v2525
    %3041 = vmatprep.subr.mxu0 %v2518
    %3042 = vmatpush1.msra.mxu0 %v2517
    %3043 = vmatprep.subr.mxu0 %v2510
    %3044 = vmatpush1.msra.mxu0 %v2509
    %3045 = vmatprep.subr.mxu0 %v2502
    %3046 = vmatpush1.msra.mxu0 %v2501
    %3047 = vmatprep.subr.mxu0 %v2494
    %3048 = vmatpush1.msra.mxu0 %v2493
    %3049 = vmatprep.subr.mxu0 %v2486
    %3050 = vmatpush1.msra.mxu0 %v2485
    %3051 = vmatprep.subr.mxu0 %v2478
    %3052 = vmatpush1.msra.mxu0 %v2477
    %3053 = vmatprep.subr.mxu0 %v2470
    %3054 = vmatpush1.msra.mxu0 %v2469
    %3055 = vmatprep.subr.mxu0 %v2718
    %3056 = vmatpush2.msra.mxu0 %v2717
    %3057 = vmatprep.subr.mxu0 %v2710
    %3058 = vmatpush2.msra.mxu0 %v2709
    %3059 = vmatprep.subr.mxu0 %v2702
    %3060 = vmatpush2.msra.mxu0 %v2701
    %3061 = vmatprep.subr.mxu0 %v2694
    %3062 = vmatpush2.msra.mxu0 %v2693
    %3063 = vmatprep.subr.mxu0 %v2686
    %3064 = vmatpush2.msra.mxu0 %v2685
    %3065 = vmatprep.subr.mxu0 %v2678
    %3066 = vmatpush2.msra.mxu0 %v2677
    %3067 = vmatprep.subr.mxu0 %v2670
    %3068 = vmatpush2.msra.mxu0 %v2669
    %3069 = vmatprep.subr.mxu0 %v2662
    %3070 = vmatpush2.msra.mxu0 %v2661
    %3071 = vmatprep.subr.mxu0 %v2654
    %3072 = vmatpush2.msra.mxu0 %v2653
    %3073 = vmatprep.subr.mxu0 %v2646
    %3074 = vmatpush2.msra.mxu0 %v2645
    %3075 = vmatprep.subr.mxu0 %v2638
    %3076 = vmatpush2.msra.mxu0 %v2637
    %3077 = vmatprep.subr.mxu0 %v2630
    %3078 = vmatpush2.msra.mxu0 %v2629
    %3079 = vmatprep.subr.mxu0 %v2622
    %3080 = vmatpush2.msra.mxu0 %v2621
    %3081 = vmatprep.subr.mxu0 %v2614
    %3082 = vmatpush2.msra.mxu0 %v2613
    %3083 = vmatprep.subr.mxu0 %v2606
    %3084 = vmatpush2.msra.mxu0 %v2605
    %3085 = vmatprep.subr.mxu0 %v2598
    %3086 = vmatpush2.msra.mxu0 %v2597
    %3087 = vmatprep.mubr.f32.mxu0 %v2462
    %3088 = vmatmul.mubr.f32.gmra.mxu0 %v2461
    %v3089 = vpop.f32.mrf.mxu0
    %v3090 = vadd.f32 %v2986, %v3089
    %v3091 = vpop.f32.mrf.mxu0
    %v3092 = vadd.f32 %v2990, %v3091
    %3093 = vmatprep.mubr.f32.mxu0 %v2466
    %3094 = vmatmul.mubr.f32.gmra.mxu0 %v2465
    %v3095 = vpop.f32.mrf.mxu0
    %v3096 = vadd.f32 %v2986, %v3095
    %v3097 = vpop.f32.mrf.mxu0
    %v3098 = vadd.f32 %v2990, %v3097
    %3099 = vdwg.mxu0
    %3100 = vmatprep.subr.mxu0 %v2846
    %3101 = vmatpush1.msra.mxu0 %v2845
    %3102 = vmatprep.subr.mxu0 %v2838
    %3103 = vmatpush1.msra.mxu0 %v2837
    %3104 = vmatprep.subr.mxu0 %v2830
    %3105 = vmatpush1.msra.mxu0 %v2829
    %3106 = vmatprep.subr.mxu0 %v2822
    %3107 = vmatpush1.msra.mxu0 %v2821
    %3108 = vmatprep.subr.mxu0 %v2814
    %3109 = vmatpush1.msra.mxu0 %v2813
    %3110 = vmatprep.subr.mxu0 %v2806
    %3111 = vmatpush1.msra.mxu0 %v2805
    %3112 = vmatprep.subr.mxu0 %v2798
    %3113 = vmatpush1.msra.mxu0 %v2797
    %3114 = vmatprep.subr.mxu0 %v2790
    %3115 = vmatpush1.msra.mxu0 %v2789
    %3116 = vmatprep.subr.mxu0 %v2782
    %3117 = vmatpush1.msra.mxu0 %v2781
    %3118 = vmatprep.subr.mxu0 %v2774
    %3119 = vmatpush1.msra.mxu0 %v2773
    %3120 = vmatprep.subr.mxu0 %v2766
    %3121 = vmatpush1.msra.mxu0 %v2765
    %3122 = vmatprep.subr.mxu0 %v2758
    %3123 = vmatpush1.msra.mxu0 %v2757
    %3124 = vmatprep.subr.mxu0 %v2750
    %3125 = vmatpush1.msra.mxu0 %v2749
    %3126 = vmatprep.subr.mxu0 %v2742
    %3127 = vmatpush1.msra.mxu0 %v2741
    %3128 = vmatprep.subr.mxu0 %v2734
    %3129 = vmatpush1.msra.mxu0 %v2733
    %3130 = vmatprep.subr.mxu0 %v2726
    %3131 = vmatpush1.msra.mxu0 %v2725
    %3132 = vmatprep.subr.mxu0 %v2974
    %3133 = vmatpush2.msra.mxu0 %v2973
    %3134 = vmatprep.subr.mxu0 %v2966
    %3135 = vmatpush2.msra.mxu0 %v2965
    %3136 = vmatprep.subr.mxu0 %v2958
    %3137 = vmatpush2.msra.mxu0 %v2957
    %3138 = vmatprep.subr.mxu0 %v2950
    %3139 = vmatpush2.msra.mxu0 %v2949
    %3140 = vmatprep.subr.mxu0 %v2942
    %3141 = vmatpush2.msra.mxu0 %v2941
    %3142 = vmatprep.subr.mxu0 %v2934
    %3143 = vmatpush2.msra.mxu0 %v2933
    %3144 = vmatprep.subr.mxu0 %v2926
    %3145 = vmatpush2.msra.mxu0 %v2925
    %3146 = vmatprep.subr.mxu0 %v2918
    %3147 = vmatpush2.msra.mxu0 %v2917
    %3148 = vmatprep.subr.mxu0 %v2910
    %3149 = vmatpush2.msra.mxu0 %v2909
    %3150 = vmatprep.subr.mxu0 %v2902
    %3151 = vmatpush2.msra.mxu0 %v2901
    %3152 = vmatprep.subr.mxu0 %v2894
    %3153 = vmatpush2.msra.mxu0 %v2893
    %3154 = vmatprep.subr.mxu0 %v2886
    %3155 = vmatpush2.msra.mxu0 %v2885
    %3156 = vmatprep.subr.mxu0 %v2878
    %3157 = vmatpush2.msra.mxu0 %v2877
    %3158 = vmatprep.subr.mxu0 %v2870
    %3159 = vmatpush2.msra.mxu0 %v2869
    %3160 = vmatprep.subr.mxu0 %v2862
    %3161 = vmatpush2.msra.mxu0 %v2861
    %3162 = vmatprep.subr.mxu0 %v2854
    %3163 = vmatpush2.msra.mxu0 %v2853
    %3164 = vmatprep.mubr.f32.mxu0 %v2464
    %3165 = vmatmul.mubr.f32.gmra.mxu0 %v2463
    %v3166 = vpop.f32.mrf.mxu0
    %v3167 = vadd.f32 %v3090, %v3166
    %v3168 = vpop.f32.mrf.mxu0
    %v3169 = vadd.f32 %v3092, %v3168
    %3170 = vmatprep.mubr.f32.mxu0 %v2468
    %3171 = vmatmul.mubr.f32.gmra.mxu0 %v2467
    %v3172 = vpop.f32.mrf.mxu0
    %v3173 = vadd.f32 %v3096, %v3172
    %v3174 = vpop.f32.mrf.mxu0
    %v3175 = vadd.f32 %v3098, %v3174
    %3176 = vdwg.mxu0
    %3177 = vmatprep.subr.mxu0 %v2592
    %3178 = vmatpush1.msra.mxu0 %v2591
    %3179 = vmatprep.subr.mxu0 %v2584
    %3180 = vmatpush1.msra.mxu0 %v2583
    %3181 = vmatprep.subr.mxu0 %v2576
    %3182 = vmatpush1.msra.mxu0 %v2575
    %3183 = vmatprep.subr.mxu0 %v2568
    %3184 = vmatpush1.msra.mxu0 %v2567
    %3185 = vmatprep.subr.mxu0 %v2560
    %3186 = vmatpush1.msra.mxu0 %v2559
    %3187 = vmatprep.subr.mxu0 %v2552
    %3188 = vmatpush1.msra.mxu0 %v2551
    %3189 = vmatprep.subr.mxu0 %v2544
    %3190 = vmatpush1.msra.mxu0 %v2543
    %3191 = vmatprep.subr.mxu0 %v2536
    %3192 = vmatpush1.msra.mxu0 %v2535
    %3193 = vmatprep.subr.mxu0 %v2528
    %3194 = vmatpush1.msra.mxu0 %v2527
    %3195 = vmatprep.subr.mxu0 %v2520
    %3196 = vmatpush1.msra.mxu0 %v2519
    %3197 = vmatprep.subr.mxu0 %v2512
    %3198 = vmatpush1.msra.mxu0 %v2511
    %3199 = vmatprep.subr.mxu0 %v2504
    %3200 = vmatpush1.msra.mxu0 %v2503
    %3201 = vmatprep.subr.mxu0 %v2496
    %3202 = vmatpush1.msra.mxu0 %v2495
    %3203 = vmatprep.subr.mxu0 %v2488
    %3204 = vmatpush1.msra.mxu0 %v2487
    %3205 = vmatprep.subr.mxu0 %v2480
    %3206 = vmatpush1.msra.mxu0 %v2479
    %3207 = vmatprep.subr.mxu0 %v2472
    %3208 = vmatpush1.msra.mxu0 %v2471
    %3209 = vmatprep.subr.mxu0 %v2720
    %3210 = vmatpush2.msra.mxu0 %v2719
    %3211 = vmatprep.subr.mxu0 %v2712
    %3212 = vmatpush2.msra.mxu0 %v2711
    %3213 = vmatprep.subr.mxu0 %v2704
    %3214 = vmatpush2.msra.mxu0 %v2703
    %3215 = vmatprep.subr.mxu0 %v2696
    %3216 = vmatpush2.msra.mxu0 %v2695
    %3217 = vmatprep.subr.mxu0 %v2688
    %3218 = vmatpush2.msra.mxu0 %v2687
    %3219 = vmatprep.subr.mxu0 %v2680
    %3220 = vmatpush2.msra.mxu0 %v2679
    %3221 = vmatprep.subr.mxu0 %v2672
    %3222 = vmatpush2.msra.mxu0 %v2671
    %3223 = vmatprep.subr.mxu0 %v2664
    %3224 = vmatpush2.msra.mxu0 %v2663
    %3225 = vmatprep.subr.mxu0 %v2656
    %3226 = vmatpush2.msra.mxu0 %v2655
    %3227 = vmatprep.subr.mxu0 %v2648
    %3228 = vmatpush2.msra.mxu0 %v2647
    %3229 = vmatprep.subr.mxu0 %v2640
    %3230 = vmatpush2.msra.mxu0 %v2639
    %3231 = vmatprep.subr.mxu0 %v2632
    %3232 = vmatpush2.msra.mxu0 %v2631
    %3233 = vmatprep.subr.mxu0 %v2624
    %3234 = vmatpush2.msra.mxu0 %v2623
    %3235 = vmatprep.subr.mxu0 %v2616
    %3236 = vmatpush2.msra.mxu0 %v2615
    %3237 = vmatprep.subr.mxu0 %v2608
    %3238 = vmatpush2.msra.mxu0 %v2607
    %3239 = vmatprep.subr.mxu0 %v2600
    %3240 = vmatpush2.msra.mxu0 %v2599
    %3241 = vmatprep.mubr.f32.mxu0 %v2462
    %3242 = vmatmul.mubr.f32.gmra.mxu0 %v2461
    %v3243 = vpop.f32.mrf.mxu0
    %v3244 = vadd.f32 %v2994, %v3243
    %v3245 = vpop.f32.mrf.mxu0
    %v3246 = vadd.f32 %v2998, %v3245
    %3247 = vmatprep.mubr.f32.mxu0 %v2466
    %3248 = vmatmul.mubr.f32.gmra.mxu0 %v2465
    %v3249 = vpop.f32.mrf.mxu0
    %v3250 = vadd.f32 %v2994, %v3249
    %v3251 = vpop.f32.mrf.mxu0
    %v3252 = vadd.f32 %v2998, %v3251
    %3253 = vdwg.mxu0
    %3254 = vmatprep.subr.mxu0 %v2848
    %3255 = vmatpush1.msra.mxu0 %v2847
    %3256 = vmatprep.subr.mxu0 %v2840
    %3257 = vmatpush1.msra.mxu0 %v2839
    %3258 = vmatprep.subr.mxu0 %v2832
    %3259 = vmatpush1.msra.mxu0 %v2831
    %3260 = vmatprep.subr.mxu0 %v2824
    %3261 = vmatpush1.msra.mxu0 %v2823
    %3262 = vmatprep.subr.mxu0 %v2816
    %3263 = vmatpush1.msra.mxu0 %v2815
    %3264 = vmatprep.subr.mxu0 %v2808
    %3265 = vmatpush1.msra.mxu0 %v2807
    %3266 = vmatprep.subr.mxu0 %v2800
    %3267 = vmatpush1.msra.mxu0 %v2799
    %3268 = vmatprep.subr.mxu0 %v2792
    %3269 = vmatpush1.msra.mxu0 %v2791
    %3270 = vmatprep.subr.mxu0 %v2784
    %3271 = vmatpush1.msra.mxu0 %v2783
    %3272 = vmatprep.subr.mxu0 %v2776
    %3273 = vmatpush1.msra.mxu0 %v2775
    %3274 = vmatprep.subr.mxu0 %v2768
    %3275 = vmatpush1.msra.mxu0 %v2767
    %3276 = vmatprep.subr.mxu0 %v2760
    %3277 = vmatpush1.msra.mxu0 %v2759
    %3278 = vmatprep.subr.mxu0 %v2752
    %3279 = vmatpush1.msra.mxu0 %v2751
    %3280 = vmatprep.subr.mxu0 %v2744
    %3281 = vmatpush1.msra.mxu0 %v2743
    %3282 = vmatprep.subr.mxu0 %v2736
    %3283 = vmatpush1.msra.mxu0 %v2735
    %3284 = vmatprep.subr.mxu0 %v2728
    %3285 = vmatpush1.msra.mxu0 %v2727
    %3286 = vmatprep.subr.mxu0 %v2976
    %3287 = vmatpush2.msra.mxu0 %v2975
    %3288 = vmatprep.subr.mxu0 %v2968
    %3289 = vmatpush2.msra.mxu0 %v2967
    %3290 = vmatprep.subr.mxu0 %v2960
    %3291 = vmatpush2.msra.mxu0 %v2959
    %3292 = vmatprep.subr.mxu0 %v2952
    %3293 = vmatpush2.msra.mxu0 %v2951
    %3294 = vmatprep.subr.mxu0 %v2944
    %3295 = vmatpush2.msra.mxu0 %v2943
    %3296 = vmatprep.subr.mxu0 %v2936
    %3297 = vmatpush2.msra.mxu0 %v2935
    %3298 = vmatprep.subr.mxu0 %v2928
    %3299 = vmatpush2.msra.mxu0 %v2927
    %3300 = vmatprep.subr.mxu0 %v2920
    %3301 = vmatpush2.msra.mxu0 %v2919
    %3302 = vmatprep.subr.mxu0 %v2912
    %3303 = vmatpush2.msra.mxu0 %v2911
    %3304 = vmatprep.subr.mxu0 %v2904
    %3305 = vmatpush2.msra.mxu0 %v2903
    %3306 = vmatprep.subr.mxu0 %v2896
    %3307 = vmatpush2.msra.mxu0 %v2895
    %3308 = vmatprep.subr.mxu0 %v2888
    %3309 = vmatpush2.msra.mxu0 %v2887
    %3310 = vmatprep.subr.mxu0 %v2880
    %3311 = vmatpush2.msra.mxu0 %v2879
    %3312 = vmatprep.subr.mxu0 %v2872
    %3313 = vmatpush2.msra.mxu0 %v2871
    %3314 = vmatprep.subr.mxu0 %v2864
    %3315 = vmatpush2.msra.mxu0 %v2863
    %3316 = vmatprep.subr.mxu0 %v2856
    %3317 = vmatpush2.msra.mxu0 %v2855
    %3318 = vmatprep.mubr.f32.mxu0 %v2464
    %3319 = vmatmul.mubr.f32.gmra.mxu0 %v2463
    %v3320 = vpop.f32.mrf.mxu0
    %v3321 = vadd.f32 %v3244, %v3320
    %v3322 = vpop.f32.mrf.mxu0
    %v3323 = vadd.f32 %v3246, %v3322
    %3324 = vmatprep.mubr.f32.mxu0 %v2468
    %3325 = vmatmul.mubr.f32.gmra.mxu0 %v2467
    %v3326 = vpop.f32.mrf.mxu0
    %v3327 = vadd.f32 %v3250, %v3326
    %v3328 = vpop.f32.mrf.mxu0
    %v3329 = vadd.f32 %v3252, %v3328
    %3330 = vdwg.mxu0
    %3331 = vmatprep.subr.mxu0 %v2594
    %3332 = vmatpush1.msra.mxu0 %v2593
    %3333 = vmatprep.subr.mxu0 %v2586
    %3334 = vmatpush1.msra.mxu0 %v2585
    %3335 = vmatprep.subr.mxu0 %v2578
    %3336 = vmatpush1.msra.mxu0 %v2577
    %3337 = vmatprep.subr.mxu0 %v2570
    %3338 = vmatpush1.msra.mxu0 %v2569
    %3339 = vmatprep.subr.mxu0 %v2562
    %3340 = vmatpush1.msra.mxu0 %v2561
    %3341 = vmatprep.subr.mxu0 %v2554
    %3342 = vmatpush1.msra.mxu0 %v2553
    %3343 = vmatprep.subr.mxu0 %v2546
    %3344 = vmatpush1.msra.mxu0 %v2545
    %3345 = vmatprep.subr.mxu0 %v2538
    %3346 = vmatpush1.msra.mxu0 %v2537
    %3347 = vmatprep.subr.mxu0 %v2530
    %3348 = vmatpush1.msra.mxu0 %v2529
    %3349 = vmatprep.subr.mxu0 %v2522
    %3350 = vmatpush1.msra.mxu0 %v2521
    %3351 = vmatprep.subr.mxu0 %v2514
    %3352 = vmatpush1.msra.mxu0 %v2513
    %3353 = vmatprep.subr.mxu0 %v2506
    %3354 = vmatpush1.msra.mxu0 %v2505
    %3355 = vmatprep.subr.mxu0 %v2498
    %3356 = vmatpush1.msra.mxu0 %v2497
    %3357 = vmatprep.subr.mxu0 %v2490
    %3358 = vmatpush1.msra.mxu0 %v2489
    %3359 = vmatprep.subr.mxu0 %v2482
    %3360 = vmatpush1.msra.mxu0 %v2481
    %3361 = vmatprep.subr.mxu0 %v2474
    %3362 = vmatpush1.msra.mxu0 %v2473
    %3363 = vmatprep.subr.mxu0 %v2722
    %3364 = vmatpush2.msra.mxu0 %v2721
    %3365 = vmatprep.subr.mxu0 %v2714
    %3366 = vmatpush2.msra.mxu0 %v2713
    %3367 = vmatprep.subr.mxu0 %v2706
    %3368 = vmatpush2.msra.mxu0 %v2705
    %3369 = vmatprep.subr.mxu0 %v2698
    %3370 = vmatpush2.msra.mxu0 %v2697
    %3371 = vmatprep.subr.mxu0 %v2690
    %3372 = vmatpush2.msra.mxu0 %v2689
    %3373 = vmatprep.subr.mxu0 %v2682
    %3374 = vmatpush2.msra.mxu0 %v2681
    %3375 = vmatprep.subr.mxu0 %v2674
    %3376 = vmatpush2.msra.mxu0 %v2673
    %3377 = vmatprep.subr.mxu0 %v2666
    %3378 = vmatpush2.msra.mxu0 %v2665
    %3379 = vmatprep.subr.mxu0 %v2658
    %3380 = vmatpush2.msra.mxu0 %v2657
    %3381 = vmatprep.subr.mxu0 %v2650
    %3382 = vmatpush2.msra.mxu0 %v2649
    %3383 = vmatprep.subr.mxu0 %v2642
    %3384 = vmatpush2.msra.mxu0 %v2641
    %3385 = vmatprep.subr.mxu0 %v2634
    %3386 = vmatpush2.msra.mxu0 %v2633
    %3387 = vmatprep.subr.mxu0 %v2626
    %3388 = vmatpush2.msra.mxu0 %v2625
    %3389 = vmatprep.subr.mxu0 %v2618
    %3390 = vmatpush2.msra.mxu0 %v2617
    %3391 = vmatprep.subr.mxu0 %v2610
    %3392 = vmatpush2.msra.mxu0 %v2609
    %3393 = vmatprep.subr.mxu0 %v2602
    %3394 = vmatpush2.msra.mxu0 %v2601
    %3395 = vmatprep.mubr.f32.mxu0 %v2462
    %3396 = vmatmul.mubr.f32.gmra.mxu0 %v2461
    %v3397 = vpop.f32.mrf.mxu0
    %v3398 = vadd.f32 %v3002, %v3397
    %v3399 = vpop.f32.mrf.mxu0
    %v3400 = vadd.f32 %v3006, %v3399
    %3401 = vmatprep.mubr.f32.mxu0 %v2466
    %3402 = vmatmul.mubr.f32.gmra.mxu0 %v2465
    %v3403 = vpop.f32.mrf.mxu0
    %v3404 = vadd.f32 %v3002, %v3403
    %v3405 = vpop.f32.mrf.mxu0
    %v3406 = vadd.f32 %v3006, %v3405
    %3407 = vdwg.mxu0
    %3408 = vmatprep.subr.mxu0 %v2850
    %3409 = vmatpush1.msra.mxu0 %v2849
    %3410 = vmatprep.subr.mxu0 %v2842
    %3411 = vmatpush1.msra.mxu0 %v2841
    %3412 = vmatprep.subr.mxu0 %v2834
    %3413 = vmatpush1.msra.mxu0 %v2833
    %3414 = vmatprep.subr.mxu0 %v2826
    %3415 = vmatpush1.msra.mxu0 %v2825
    %3416 = vmatprep.subr.mxu0 %v2818
    %3417 = vmatpush1.msra.mxu0 %v2817
    %3418 = vmatprep.subr.mxu0 %v2810
    %3419 = vmatpush1.msra.mxu0 %v2809
    %3420 = vmatprep.subr.mxu0 %v2802
    %3421 = vmatpush1.msra.mxu0 %v2801
    %3422 = vmatprep.subr.mxu0 %v2794
    %3423 = vmatpush1.msra.mxu0 %v2793
    %3424 = vmatprep.subr.mxu0 %v2786
    %3425 = vmatpush1.msra.mxu0 %v2785
    %3426 = vmatprep.subr.mxu0 %v2778
    %3427 = vmatpush1.msra.mxu0 %v2777
    %3428 = vmatprep.subr.mxu0 %v2770
    %3429 = vmatpush1.msra.mxu0 %v2769
    %3430 = vmatprep.subr.mxu0 %v2762
    %3431 = vmatpush1.msra.mxu0 %v2761
    %3432 = vmatprep.subr.mxu0 %v2754
    %3433 = vmatpush1.msra.mxu0 %v2753
    %3434 = vmatprep.subr.mxu0 %v2746
    %3435 = vmatpush1.msra.mxu0 %v2745
    %3436 = vmatprep.subr.mxu0 %v2738
    %3437 = vmatpush1.msra.mxu0 %v2737
    %3438 = vmatprep.subr.mxu0 %v2730
    %3439 = vmatpush1.msra.mxu0 %v2729
    %3440 = vmatprep.subr.mxu0 %v2978
    %3441 = vmatpush2.msra.mxu0 %v2977
    %3442 = vmatprep.subr.mxu0 %v2970
    %3443 = vmatpush2.msra.mxu0 %v2969
    %3444 = vmatprep.subr.mxu0 %v2962
    %3445 = vmatpush2.msra.mxu0 %v2961
    %3446 = vmatprep.subr.mxu0 %v2954
    %3447 = vmatpush2.msra.mxu0 %v2953
    %3448 = vmatprep.subr.mxu0 %v2946
    %3449 = vmatpush2.msra.mxu0 %v2945
    %3450 = vmatprep.subr.mxu0 %v2938
    %3451 = vmatpush2.msra.mxu0 %v2937
    %3452 = vmatprep.subr.mxu0 %v2930
    %3453 = vmatpush2.msra.mxu0 %v2929
    %3454 = vmatprep.subr.mxu0 %v2922
    %3455 = vmatpush2.msra.mxu0 %v2921
    %3456 = vmatprep.subr.mxu0 %v2914
    %3457 = vmatpush2.msra.mxu0 %v2913
    %3458 = vmatprep.subr.mxu0 %v2906
    %3459 = vmatpush2.msra.mxu0 %v2905
    %3460 = vmatprep.subr.mxu0 %v2898
    %3461 = vmatpush2.msra.mxu0 %v2897
    %3462 = vmatprep.subr.mxu0 %v2890
    %3463 = vmatpush2.msra.mxu0 %v2889
    %3464 = vmatprep.subr.mxu0 %v2882
    %3465 = vmatpush2.msra.mxu0 %v2881
    %3466 = vmatprep.subr.mxu0 %v2874
    %3467 = vmatpush2.msra.mxu0 %v2873
    %3468 = vmatprep.subr.mxu0 %v2866
    %3469 = vmatpush2.msra.mxu0 %v2865
    %3470 = vmatprep.subr.mxu0 %v2858
    %3471 = vmatpush2.msra.mxu0 %v2857
    %3472 = vmatprep.mubr.f32.mxu0 %v2464
    %3473 = vmatmul.mubr.f32.gmra.mxu0 %v2463
    %v3474 = vpop.f32.mrf.mxu0
    %v3475 = vadd.f32 %v3398, %v3474
    %v3476 = vpop.f32.mrf.mxu0
    %v3477 = vadd.f32 %v3400, %v3476
    %3478 = vmatprep.mubr.f32.mxu0 %v2468
    %3479 = vmatmul.mubr.f32.gmra.mxu0 %v2467
    %v3480 = vpop.f32.mrf.mxu0
    %v3481 = vadd.f32 %v3404, %v3480
    %v3482 = vpop.f32.mrf.mxu0
    %v3483 = vadd.f32 %v3406, %v3482
    %3484 = vdwg.mxu0
    %3485 = vmatprep.subr.mxu0 %v2596
    %3486 = vmatpush1.msra.mxu0 %v2595
    %3487 = vmatprep.subr.mxu0 %v2588
    %3488 = vmatpush1.msra.mxu0 %v2587
    %3489 = vmatprep.subr.mxu0 %v2580
    %3490 = vmatpush1.msra.mxu0 %v2579
    %3491 = vmatprep.subr.mxu0 %v2572
    %3492 = vmatpush1.msra.mxu0 %v2571
    %3493 = vmatprep.subr.mxu0 %v2564
    %3494 = vmatpush1.msra.mxu0 %v2563
    %3495 = vmatprep.subr.mxu0 %v2556
    %3496 = vmatpush1.msra.mxu0 %v2555
    %3497 = vmatprep.subr.mxu0 %v2548
    %3498 = vmatpush1.msra.mxu0 %v2547
    %3499 = vmatprep.subr.mxu0 %v2540
    %3500 = vmatpush1.msra.mxu0 %v2539
    %3501 = vmatprep.subr.mxu0 %v2532
    %3502 = vmatpush1.msra.mxu0 %v2531
    %3503 = vmatprep.subr.mxu0 %v2524
    %3504 = vmatpush1.msra.mxu0 %v2523
    %3505 = vmatprep.subr.mxu0 %v2516
    %3506 = vmatpush1.msra.mxu0 %v2515
    %3507 = vmatprep.subr.mxu0 %v2508
    %3508 = vmatpush1.msra.mxu0 %v2507
    %3509 = vmatprep.subr.mxu0 %v2500
    %3510 = vmatpush1.msra.mxu0 %v2499
    %3511 = vmatprep.subr.mxu0 %v2492
    %3512 = vmatpush1.msra.mxu0 %v2491
    %3513 = vmatprep.subr.mxu0 %v2484
    %3514 = vmatpush1.msra.mxu0 %v2483
    %3515 = vmatprep.subr.mxu0 %v2476
    %3516 = vmatpush1.msra.mxu0 %v2475
    %3517 = vmatprep.subr.mxu0 %v2724
    %3518 = vmatpush2.msra.mxu0 %v2723
    %3519 = vmatprep.subr.mxu0 %v2716
    %3520 = vmatpush2.msra.mxu0 %v2715
    %3521 = vmatprep.subr.mxu0 %v2708
    %3522 = vmatpush2.msra.mxu0 %v2707
    %3523 = vmatprep.subr.mxu0 %v2700
    %3524 = vmatpush2.msra.mxu0 %v2699
    %3525 = vmatprep.subr.mxu0 %v2692
    %3526 = vmatpush2.msra.mxu0 %v2691
    %3527 = vmatprep.subr.mxu0 %v2684
    %3528 = vmatpush2.msra.mxu0 %v2683
    %3529 = vmatprep.subr.mxu0 %v2676
    %3530 = vmatpush2.msra.mxu0 %v2675
    %3531 = vmatprep.subr.mxu0 %v2668
    %3532 = vmatpush2.msra.mxu0 %v2667
    %3533 = vmatprep.subr.mxu0 %v2660
    %3534 = vmatpush2.msra.mxu0 %v2659
    %3535 = vmatprep.subr.mxu0 %v2652
    %3536 = vmatpush2.msra.mxu0 %v2651
    %3537 = vmatprep.subr.mxu0 %v2644
    %3538 = vmatpush2.msra.mxu0 %v2643
    %3539 = vmatprep.subr.mxu0 %v2636
    %3540 = vmatpush2.msra.mxu0 %v2635
    %3541 = vmatprep.subr.mxu0 %v2628
    %3542 = vmatpush2.msra.mxu0 %v2627
    %3543 = vmatprep.subr.mxu0 %v2620
    %3544 = vmatpush2.msra.mxu0 %v2619
    %3545 = vmatprep.subr.mxu0 %v2612
    %3546 = vmatpush2.msra.mxu0 %v2611
    %3547 = vmatprep.subr.mxu0 %v2604
    %3548 = vmatpush2.msra.mxu0 %v2603
    %3549 = vmatprep.mubr.f32.mxu0 %v2462
    %3550 = vmatmul.mubr.f32.gmra.mxu0 %v2461
    %v3551 = vpop.f32.mrf.mxu0
    %v3552 = vadd.f32 %v3010, %v3551
    %v3553 = vpop.f32.mrf.mxu0
    %v3554 = vadd.f32 %v3014, %v3553
    %3555 = vmatprep.mubr.f32.mxu0 %v2466
    %3556 = vmatmul.mubr.f32.gmra.mxu0 %v2465
    %v3557 = vpop.f32.mrf.mxu0
    %v3558 = vadd.f32 %v3010, %v3557
    %v3559 = vpop.f32.mrf.mxu0
    %v3560 = vadd.f32 %v3014, %v3559
    %3561 = vdwg.mxu0
    %3562 = vmatprep.subr.mxu0 %v2852
    %3563 = vmatpush1.msra.mxu0 %v2851
    %3564 = vmatprep.subr.mxu0 %v2844
    %3565 = vmatpush1.msra.mxu0 %v2843
    %3566 = vmatprep.subr.mxu0 %v2836
    %3567 = vmatpush1.msra.mxu0 %v2835
    %3568 = vmatprep.subr.mxu0 %v2828
    %3569 = vmatpush1.msra.mxu0 %v2827
    %3570 = vmatprep.subr.mxu0 %v2820
    %3571 = vmatpush1.msra.mxu0 %v2819
    %3572 = vmatprep.subr.mxu0 %v2812
    %3573 = vmatpush1.msra.mxu0 %v2811
    %3574 = vmatprep.subr.mxu0 %v2804
    %3575 = vmatpush1.msra.mxu0 %v2803
    %3576 = vmatprep.subr.mxu0 %v2796
    %3577 = vmatpush1.msra.mxu0 %v2795
    %3578 = vmatprep.subr.mxu0 %v2788
    %3579 = vmatpush1.msra.mxu0 %v2787
    %3580 = vmatprep.subr.mxu0 %v2780
    %3581 = vmatpush1.msra.mxu0 %v2779
    %3582 = vmatprep.subr.mxu0 %v2772
    %3583 = vmatpush1.msra.mxu0 %v2771
    %3584 = vmatprep.subr.mxu0 %v2764
    %3585 = vmatpush1.msra.mxu0 %v2763
    %3586 = vmatprep.subr.mxu0 %v2756
    %3587 = vmatpush1.msra.mxu0 %v2755
    %3588 = vmatprep.subr.mxu0 %v2748
    %3589 = vmatpush1.msra.mxu0 %v2747
    %3590 = vmatprep.subr.mxu0 %v2740
    %3591 = vmatpush1.msra.mxu0 %v2739
    %3592 = vmatprep.subr.mxu0 %v2732
    %3593 = vmatpush1.msra.mxu0 %v2731
    %3594 = vmatprep.subr.mxu0 %v2980
    %3595 = vmatpush2.msra.mxu0 %v2979
    %3596 = vmatprep.subr.mxu0 %v2972
    %3597 = vmatpush2.msra.mxu0 %v2971
    %3598 = vmatprep.subr.mxu0 %v2964
    %3599 = vmatpush2.msra.mxu0 %v2963
    %3600 = vmatprep.subr.mxu0 %v2956
    %3601 = vmatpush2.msra.mxu0 %v2955
    %3602 = vmatprep.subr.mxu0 %v2948
    %3603 = vmatpush2.msra.mxu0 %v2947
    %3604 = vmatprep.subr.mxu0 %v2940
    %3605 = vmatpush2.msra.mxu0 %v2939
    %3606 = vmatprep.subr.mxu0 %v2932
    %3607 = vmatpush2.msra.mxu0 %v2931
    %3608 = vmatprep.subr.mxu0 %v2924
    %3609 = vmatpush2.msra.mxu0 %v2923
    %3610 = vmatprep.subr.mxu0 %v2916
    %3611 = vmatpush2.msra.mxu0 %v2915
    %3612 = vmatprep.subr.mxu0 %v2908
    %3613 = vmatpush2.msra.mxu0 %v2907
    %3614 = vmatprep.subr.mxu0 %v2900
    %3615 = vmatpush2.msra.mxu0 %v2899
    %3616 = vmatprep.subr.mxu0 %v2892
    %3617 = vmatpush2.msra.mxu0 %v2891
    %3618 = vmatprep.subr.mxu0 %v2884
    %3619 = vmatpush2.msra.mxu0 %v2883
    %3620 = vmatprep.subr.mxu0 %v2876
    %3621 = vmatpush2.msra.mxu0 %v2875
    %3622 = vmatprep.subr.mxu0 %v2868
    %3623 = vmatpush2.msra.mxu0 %v2867
    %3624 = vmatprep.subr.mxu0 %v2860
    %3625 = vmatpush2.msra.mxu0 %v2859
    %3626 = vmatprep.mubr.f32.mxu0 %v2464
    %3627 = vmatmul.mubr.f32.gmra.mxu0 %v2463
    %v3628 = vpop.f32.mrf.mxu0
    %v3629 = vadd.f32 %v3552, %v3628
    %v3630 = vpop.f32.mrf.mxu0
    %v3631 = vadd.f32 %v3554, %v3630
    %3632 = vmatprep.mubr.f32.mxu0 %v2468
    %3633 = vmatmul.mubr.f32.gmra.mxu0 %v2467
    %v3634 = vpop.f32.mrf.mxu0
    %v3635 = vadd.f32 %v3558, %v3634
    %v3636 = vpop.f32.mrf.mxu0
    %v3637 = vadd.f32 %v3560, %v3636
    %3638 = vdwg.mxu0
    %v3639 = vtanh.pop %v3167
    %v3640 = vtanh.pop %v3169
    %v3641 = vtanh.pop %v3321
    %v3642 = vtanh.pop %v3323
    %v3643 = vtanh.pop %v3475
    %v3644 = vtanh.pop %v3477
    %v3645 = vtanh.pop %v3629
    %v3646 = vtanh.pop %v3631
    %v3647 = vtanh.pop %v3173
    %v3648 = vtanh.pop %v3175
    %v3649 = vtanh.pop %v3327
    %v3650 = vtanh.pop %v3329
    %v3651 = vtanh.pop %v3481
    %v3652 = vtanh.pop %v3483
    %v3653 = vtanh.pop %v3635
    %v3654 = vtanh.pop %v3637
    %v3655 = vld [vmem:[#allocation20] sm:$0xff]
    %v3656 = vld [vmem:[#allocation20 + $0x8] sm:$0xff]
    %v3657 = vld [vmem:[#allocation20 + $0x10] sm:$0xff]
    %v3658 = vld [vmem:[#allocation20 + $0x18] sm:$0xff]
    %v3659 = vld [vmem:[#allocation20 + $0x20] sm:$0xff]
    %v3660 = vld [vmem:[#allocation20 + $0x28] sm:$0xff]
    %v3661 = vld [vmem:[#allocation20 + $0x30] sm:$0xff]
    %v3662 = vld [vmem:[#allocation20 + $0x38] sm:$0xff]
    %v3663 = vld [vmem:[#allocation20 + $0x40] sm:$0xff]
    %v3664 = vld [vmem:[#allocation20 + $0x48] sm:$0xff]
    %v3665 = vld [vmem:[#allocation20 + $0x50] sm:$0xff]
    %v3666 = vld [vmem:[#allocation20 + $0x58] sm:$0xff]
    %v3667 = vld [vmem:[#allocation20 + $0x60] sm:$0xff]
    %v3668 = vld [vmem:[#allocation20 + $0x68] sm:$0xff]
    %v3669 = vld [vmem:[#allocation20 + $0x70] sm:$0xff]
    %v3670 = vld [vmem:[#allocation20 + $0x78] sm:$0xff]
    %v3671 = vld [vmem:[#allocation20 + $0x80] sm:$0xff]
    %v3672 = vld [vmem:[#allocation20 + $0x88] sm:$0xff]
    %v3673 = vld [vmem:[#allocation20 + $0x90] sm:$0xff]
    %v3674 = vld [vmem:[#allocation20 + $0x98] sm:$0xff]
    %v3675 = vld [vmem:[#allocation20 + $0xa0] sm:$0xff]
    %v3676 = vld [vmem:[#allocation20 + $0xa8] sm:$0xff]
    %v3677 = vld [vmem:[#allocation20 + $0xb0] sm:$0xff]
    %v3678 = vld [vmem:[#allocation20 + $0xb8] sm:$0xff]
    %v3679 = vld [vmem:[#allocation20 + $0xc0] sm:$0xff]
    %v3680 = vld [vmem:[#allocation20 + $0xc8] sm:$0xff]
    %v3681 = vld [vmem:[#allocation20 + $0xd0] sm:$0xff]
    %v3682 = vld [vmem:[#allocation20 + $0xd8] sm:$0xff]
    %v3683 = vld [vmem:[#allocation20 + $0xe0] sm:$0xff]
    %v3684 = vld [vmem:[#allocation20 + $0xe8] sm:$0xff]
    %v3685 = vld [vmem:[#allocation20 + $0xf0] sm:$0xff]
    %v3686 = vld [vmem:[#allocation20 + $0xf8] sm:$0xff]
    %v3687 = vld [vmem:[#allocation20 + $0x100] sm:$0xff]
    %v3688 = vld [vmem:[#allocation20 + $0x108] sm:$0xff]
    %v3689 = vld [vmem:[#allocation20 + $0x110] sm:$0xff]
    %v3690 = vld [vmem:[#allocation20 + $0x118] sm:$0xff]
    %v3691 = vld [vmem:[#allocation20 + $0x120] sm:$0xff]
    %v3692 = vld [vmem:[#allocation20 + $0x128] sm:$0xff]
    %v3693 = vld [vmem:[#allocation20 + $0x130] sm:$0xff]
    %v3694 = vld [vmem:[#allocation20 + $0x138] sm:$0xff]
    %v3695 = vld [vmem:[#allocation20 + $0x140] sm:$0xff]
    %v3696 = vld [vmem:[#allocation20 + $0x148] sm:$0xff]
    %v3697 = vld [vmem:[#allocation20 + $0x150] sm:$0xff]
    %v3698 = vld [vmem:[#allocation20 + $0x158] sm:$0xff]
    %v3699 = vld [vmem:[#allocation20 + $0x160] sm:$0xff]
    %v3700 = vld [vmem:[#allocation20 + $0x168] sm:$0xff]
    %v3701 = vld [vmem:[#allocation20 + $0x170] sm:$0xff]
    %v3702 = vld [vmem:[#allocation20 + $0x178] sm:$0xff]
    %v3703 = vld [vmem:[#allocation20 + $0x180] sm:$0xff]
    %v3704 = vld [vmem:[#allocation20 + $0x188] sm:$0xff]
    %v3705 = vld [vmem:[#allocation20 + $0x190] sm:$0xff]
    %v3706 = vld [vmem:[#allocation20 + $0x198] sm:$0xff]
    %v3707 = vld [vmem:[#allocation20 + $0x1a0] sm:$0xff]
    %v3708 = vld [vmem:[#allocation20 + $0x1a8] sm:$0xff]
    %v3709 = vld [vmem:[#allocation20 + $0x1b0] sm:$0xff]
    %v3710 = vld [vmem:[#allocation20 + $0x1b8] sm:$0xff]
    %v3711 = vld [vmem:[#allocation20 + $0x1c0] sm:$0xff]
    %v3712 = vld [vmem:[#allocation20 + $0x1c8] sm:$0xff]
    %v3713 = vld [vmem:[#allocation20 + $0x1d0] sm:$0xff]
    %v3714 = vld [vmem:[#allocation20 + $0x1d8] sm:$0xff]
    %v3715 = vld [vmem:[#allocation20 + $0x1e0] sm:$0xff]
    %v3716 = vld [vmem:[#allocation20 + $0x1e8] sm:$0xff]
    %v3717 = vld [vmem:[#allocation20 + $0x1f0] sm:$0xff]
    %v3718 = vld [vmem:[#allocation20 + $0x1f8] sm:$0xff]
    %v3719 = vld [vmem:[#allocation20 + $0x200] sm:$0xff]
    %v3720 = vld [vmem:[#allocation20 + $0x208] sm:$0xff]
    %v3721 = vld [vmem:[#allocation20 + $0x210] sm:$0xff]
    %v3722 = vld [vmem:[#allocation20 + $0x218] sm:$0xff]
    %v3723 = vld [vmem:[#allocation20 + $0x220] sm:$0xff]
    %v3724 = vld [vmem:[#allocation20 + $0x228] sm:$0xff]
    %v3725 = vld [vmem:[#allocation20 + $0x230] sm:$0xff]
    %v3726 = vld [vmem:[#allocation20 + $0x238] sm:$0xff]
    %v3727 = vld [vmem:[#allocation20 + $0x240] sm:$0xff]
    %v3728 = vld [vmem:[#allocation20 + $0x248] sm:$0xff]
    %v3729 = vld [vmem:[#allocation20 + $0x250] sm:$0xff]
    %v3730 = vld [vmem:[#allocation20 + $0x258] sm:$0xff]
    %v3731 = vld [vmem:[#allocation20 + $0x260] sm:$0xff]
    %v3732 = vld [vmem:[#allocation20 + $0x268] sm:$0xff]
    %v3733 = vld [vmem:[#allocation20 + $0x270] sm:$0xff]
    %v3734 = vld [vmem:[#allocation20 + $0x278] sm:$0xff]
    %v3735 = vld [vmem:[#allocation20 + $0x280] sm:$0xff]
    %v3736 = vld [vmem:[#allocation20 + $0x288] sm:$0xff]
    %v3737 = vld [vmem:[#allocation20 + $0x290] sm:$0xff]
    %v3738 = vld [vmem:[#allocation20 + $0x298] sm:$0xff]
    %v3739 = vld [vmem:[#allocation20 + $0x2a0] sm:$0xff]
    %v3740 = vld [vmem:[#allocation20 + $0x2a8] sm:$0xff]
    %v3741 = vld [vmem:[#allocation20 + $0x2b0] sm:$0xff]
    %v3742 = vld [vmem:[#allocation20 + $0x2b8] sm:$0xff]
    %v3743 = vld [vmem:[#allocation20 + $0x2c0] sm:$0xff]
    %v3744 = vld [vmem:[#allocation20 + $0x2c8] sm:$0xff]
    %v3745 = vld [vmem:[#allocation20 + $0x2d0] sm:$0xff]
    %v3746 = vld [vmem:[#allocation20 + $0x2d8] sm:$0xff]
    %v3747 = vld [vmem:[#allocation20 + $0x2e0] sm:$0xff]
    %v3748 = vld [vmem:[#allocation20 + $0x2e8] sm:$0xff]
    %v3749 = vld [vmem:[#allocation20 + $0x2f0] sm:$0xff]
    %v3750 = vld [vmem:[#allocation20 + $0x2f8] sm:$0xff]
    %v3751 = vld [vmem:[#allocation20 + $0x300] sm:$0xff]
    %v3752 = vld [vmem:[#allocation20 + $0x308] sm:$0xff]
    %v3753 = vld [vmem:[#allocation20 + $0x310] sm:$0xff]
    %v3754 = vld [vmem:[#allocation20 + $0x318] sm:$0xff]
    %v3755 = vld [vmem:[#allocation20 + $0x320] sm:$0xff]
    %v3756 = vld [vmem:[#allocation20 + $0x328] sm:$0xff]
    %v3757 = vld [vmem:[#allocation20 + $0x330] sm:$0xff]
    %v3758 = vld [vmem:[#allocation20 + $0x338] sm:$0xff]
    %v3759 = vld [vmem:[#allocation20 + $0x340] sm:$0xff]
    %v3760 = vld [vmem:[#allocation20 + $0x348] sm:$0xff]
    %v3761 = vld [vmem:[#allocation20 + $0x350] sm:$0xff]
    %v3762 = vld [vmem:[#allocation20 + $0x358] sm:$0xff]
    %v3763 = vld [vmem:[#allocation20 + $0x360] sm:$0xff]
    %v3764 = vld [vmem:[#allocation20 + $0x368] sm:$0xff]
    %v3765 = vld [vmem:[#allocation20 + $0x370] sm:$0xff]
    %v3766 = vld [vmem:[#allocation20 + $0x378] sm:$0xff]
    %v3767 = vld [vmem:[#allocation20 + $0x380] sm:$0xff]
    %v3768 = vld [vmem:[#allocation20 + $0x388] sm:$0xff]
    %v3769 = vld [vmem:[#allocation20 + $0x390] sm:$0xff]
    %v3770 = vld [vmem:[#allocation20 + $0x398] sm:$0xff]
    %v3771 = vld [vmem:[#allocation20 + $0x3a0] sm:$0xff]
    %v3772 = vld [vmem:[#allocation20 + $0x3a8] sm:$0xff]
    %v3773 = vld [vmem:[#allocation20 + $0x3b0] sm:$0xff]
    %v3774 = vld [vmem:[#allocation20 + $0x3b8] sm:$0xff]
    %v3775 = vld [vmem:[#allocation20 + $0x3c0] sm:$0xff]
    %v3776 = vld [vmem:[#allocation20 + $0x3c8] sm:$0xff]
    %v3777 = vld [vmem:[#allocation20 + $0x3d0] sm:$0xff]
    %v3778 = vld [vmem:[#allocation20 + $0x3d8] sm:$0xff]
    %v3779 = vld [vmem:[#allocation20 + $0x3e0] sm:$0xff]
    %v3780 = vld [vmem:[#allocation20 + $0x3e8] sm:$0xff]
    %v3781 = vld [vmem:[#allocation20 + $0x3f0] sm:$0xff]
    %v3782 = vld [vmem:[#allocation20 + $0x3f8] sm:$0xff]
    %v3783 = vld [vmem:[#allocation20 + $0x400] sm:$0xff]
    %v3784 = vld [vmem:[#allocation20 + $0x408] sm:$0xff]
    %v3785 = vld [vmem:[#allocation20 + $0x410] sm:$0xff]
    %v3786 = vld [vmem:[#allocation20 + $0x418] sm:$0xff]
    %v3787 = vld [vmem:[#allocation20 + $0x420] sm:$0xff]
    %v3788 = vld [vmem:[#allocation20 + $0x428] sm:$0xff]
    %v3789 = vld [vmem:[#allocation20 + $0x430] sm:$0xff]
    %v3790 = vld [vmem:[#allocation20 + $0x438] sm:$0xff]
    %v3791 = vld [vmem:[#allocation20 + $0x440] sm:$0xff]
    %v3792 = vld [vmem:[#allocation20 + $0x448] sm:$0xff]
    %v3793 = vld [vmem:[#allocation20 + $0x450] sm:$0xff]
    %v3794 = vld [vmem:[#allocation20 + $0x458] sm:$0xff]
    %v3795 = vld [vmem:[#allocation20 + $0x460] sm:$0xff]
    %v3796 = vld [vmem:[#allocation20 + $0x468] sm:$0xff]
    %v3797 = vld [vmem:[#allocation20 + $0x470] sm:$0xff]
    %v3798 = vld [vmem:[#allocation20 + $0x478] sm:$0xff]
    %v3799 = vld [vmem:[#allocation20 + $0x480] sm:$0xff]
    %v3800 = vld [vmem:[#allocation20 + $0x488] sm:$0xff]
    %v3801 = vld [vmem:[#allocation20 + $0x490] sm:$0xff]
    %v3802 = vld [vmem:[#allocation20 + $0x498] sm:$0xff]
    %v3803 = vld [vmem:[#allocation20 + $0x4a0] sm:$0xff]
    %v3804 = vld [vmem:[#allocation20 + $0x4a8] sm:$0xff]
    %v3805 = vld [vmem:[#allocation20 + $0x4b0] sm:$0xff]
    %v3806 = vld [vmem:[#allocation20 + $0x4b8] sm:$0xff]
    %v3807 = vld [vmem:[#allocation20 + $0x4c0] sm:$0xff]
    %v3808 = vld [vmem:[#allocation20 + $0x4c8] sm:$0xff]
    %v3809 = vld [vmem:[#allocation20 + $0x4d0] sm:$0xff]
    %v3810 = vld [vmem:[#allocation20 + $0x4d8] sm:$0xff]
    %v3811 = vld [vmem:[#allocation20 + $0x4e0] sm:$0xff]
    %v3812 = vld [vmem:[#allocation20 + $0x4e8] sm:$0xff]
    %v3813 = vld [vmem:[#allocation20 + $0x4f0] sm:$0xff]
    %v3814 = vld [vmem:[#allocation20 + $0x4f8] sm:$0xff]
    %v3815 = vld [vmem:[#allocation20 + $0x500] sm:$0xff]
    %v3816 = vld [vmem:[#allocation20 + $0x508] sm:$0xff]
    %v3817 = vld [vmem:[#allocation20 + $0x510] sm:$0xff]
    %v3818 = vld [vmem:[#allocation20 + $0x518] sm:$0xff]
    %v3819 = vld [vmem:[#allocation20 + $0x520] sm:$0xff]
    %v3820 = vld [vmem:[#allocation20 + $0x528] sm:$0xff]
    %v3821 = vld [vmem:[#allocation20 + $0x530] sm:$0xff]
    %v3822 = vld [vmem:[#allocation20 + $0x538] sm:$0xff]
    %v3823 = vld [vmem:[#allocation20 + $0x540] sm:$0xff]
    %v3824 = vld [vmem:[#allocation20 + $0x548] sm:$0xff]
    %v3825 = vld [vmem:[#allocation20 + $0x550] sm:$0xff]
    %v3826 = vld [vmem:[#allocation20 + $0x558] sm:$0xff]
    %v3827 = vld [vmem:[#allocation20 + $0x560] sm:$0xff]
    %v3828 = vld [vmem:[#allocation20 + $0x568] sm:$0xff]
    %v3829 = vld [vmem:[#allocation20 + $0x570] sm:$0xff]
    %v3830 = vld [vmem:[#allocation20 + $0x578] sm:$0xff]
    %v3831 = vld [vmem:[#allocation20 + $0x580] sm:$0xff]
    %v3832 = vld [vmem:[#allocation20 + $0x588] sm:$0xff]
    %v3833 = vld [vmem:[#allocation20 + $0x590] sm:$0xff]
    %v3834 = vld [vmem:[#allocation20 + $0x598] sm:$0xff]
    %v3835 = vld [vmem:[#allocation20 + $0x5a0] sm:$0xff]
    %v3836 = vld [vmem:[#allocation20 + $0x5a8] sm:$0xff]
    %v3837 = vld [vmem:[#allocation20 + $0x5b0] sm:$0xff]
    %v3838 = vld [vmem:[#allocation20 + $0x5b8] sm:$0xff]
    %v3839 = vld [vmem:[#allocation20 + $0x5c0] sm:$0xff]
    %v3840 = vld [vmem:[#allocation20 + $0x5c8] sm:$0xff]
    %v3841 = vld [vmem:[#allocation20 + $0x5d0] sm:$0xff]
    %v3842 = vld [vmem:[#allocation20 + $0x5d8] sm:$0xff]
    %v3843 = vld [vmem:[#allocation20 + $0x5e0] sm:$0xff]
    %v3844 = vld [vmem:[#allocation20 + $0x5e8] sm:$0xff]
    %v3845 = vld [vmem:[#allocation20 + $0x5f0] sm:$0xff]
    %v3846 = vld [vmem:[#allocation20 + $0x5f8] sm:$0xff]
    %v3847 = vld [vmem:[#allocation20 + $0x600] sm:$0xff]
    %v3848 = vld [vmem:[#allocation20 + $0x608] sm:$0xff]
    %v3849 = vld [vmem:[#allocation20 + $0x610] sm:$0xff]
    %v3850 = vld [vmem:[#allocation20 + $0x618] sm:$0xff]
    %v3851 = vld [vmem:[#allocation20 + $0x620] sm:$0xff]
    %v3852 = vld [vmem:[#allocation20 + $0x628] sm:$0xff]
    %v3853 = vld [vmem:[#allocation20 + $0x630] sm:$0xff]
    %v3854 = vld [vmem:[#allocation20 + $0x638] sm:$0xff]
    %v3855 = vld [vmem:[#allocation20 + $0x640] sm:$0xff]
    %v3856 = vld [vmem:[#allocation20 + $0x648] sm:$0xff]
    %v3857 = vld [vmem:[#allocation20 + $0x650] sm:$0xff]
    %v3858 = vld [vmem:[#allocation20 + $0x658] sm:$0xff]
    %v3859 = vld [vmem:[#allocation20 + $0x660] sm:$0xff]
    %v3860 = vld [vmem:[#allocation20 + $0x668] sm:$0xff]
    %v3861 = vld [vmem:[#allocation20 + $0x670] sm:$0xff]
    %v3862 = vld [vmem:[#allocation20 + $0x678] sm:$0xff]
    %v3863 = vld [vmem:[#allocation20 + $0x680] sm:$0xff]
    %v3864 = vld [vmem:[#allocation20 + $0x688] sm:$0xff]
    %v3865 = vld [vmem:[#allocation20 + $0x690] sm:$0xff]
    %v3866 = vld [vmem:[#allocation20 + $0x698] sm:$0xff]
    %v3867 = vld [vmem:[#allocation20 + $0x6a0] sm:$0xff]
    %v3868 = vld [vmem:[#allocation20 + $0x6a8] sm:$0xff]
    %v3869 = vld [vmem:[#allocation20 + $0x6b0] sm:$0xff]
    %v3870 = vld [vmem:[#allocation20 + $0x6b8] sm:$0xff]
    %v3871 = vld [vmem:[#allocation20 + $0x6c0] sm:$0xff]
    %v3872 = vld [vmem:[#allocation20 + $0x6c8] sm:$0xff]
    %v3873 = vld [vmem:[#allocation20 + $0x6d0] sm:$0xff]
    %v3874 = vld [vmem:[#allocation20 + $0x6d8] sm:$0xff]
    %v3875 = vld [vmem:[#allocation20 + $0x6e0] sm:$0xff]
    %v3876 = vld [vmem:[#allocation20 + $0x6e8] sm:$0xff]
    %v3877 = vld [vmem:[#allocation20 + $0x6f0] sm:$0xff]
    %v3878 = vld [vmem:[#allocation20 + $0x6f8] sm:$0xff]
    %v3879 = vld [vmem:[#allocation20 + $0x700] sm:$0xff]
    %v3880 = vld [vmem:[#allocation20 + $0x708] sm:$0xff]
    %v3881 = vld [vmem:[#allocation20 + $0x710] sm:$0xff]
    %v3882 = vld [vmem:[#allocation20 + $0x718] sm:$0xff]
    %v3883 = vld [vmem:[#allocation20 + $0x720] sm:$0xff]
    %v3884 = vld [vmem:[#allocation20 + $0x728] sm:$0xff]
    %v3885 = vld [vmem:[#allocation20 + $0x730] sm:$0xff]
    %v3886 = vld [vmem:[#allocation20 + $0x738] sm:$0xff]
    %v3887 = vld [vmem:[#allocation20 + $0x740] sm:$0xff]
    %v3888 = vld [vmem:[#allocation20 + $0x748] sm:$0xff]
    %v3889 = vld [vmem:[#allocation20 + $0x750] sm:$0xff]
    %v3890 = vld [vmem:[#allocation20 + $0x758] sm:$0xff]
    %v3891 = vld [vmem:[#allocation20 + $0x760] sm:$0xff]
    %v3892 = vld [vmem:[#allocation20 + $0x768] sm:$0xff]
    %v3893 = vld [vmem:[#allocation20 + $0x770] sm:$0xff]
    %v3894 = vld [vmem:[#allocation20 + $0x778] sm:$0xff]
    %v3895 = vld [vmem:[#allocation20 + $0x780] sm:$0xff]
    %v3896 = vld [vmem:[#allocation20 + $0x788] sm:$0xff]
    %v3897 = vld [vmem:[#allocation20 + $0x790] sm:$0xff]
    %v3898 = vld [vmem:[#allocation20 + $0x798] sm:$0xff]
    %v3899 = vld [vmem:[#allocation20 + $0x7a0] sm:$0xff]
    %v3900 = vld [vmem:[#allocation20 + $0x7a8] sm:$0xff]
    %v3901 = vld [vmem:[#allocation20 + $0x7b0] sm:$0xff]
    %v3902 = vld [vmem:[#allocation20 + $0x7b8] sm:$0xff]
    %v3903 = vld [vmem:[#allocation20 + $0x7c0] sm:$0xff]
    %v3904 = vld [vmem:[#allocation20 + $0x7c8] sm:$0xff]
    %v3905 = vld [vmem:[#allocation20 + $0x7d0] sm:$0xff]
    %v3906 = vld [vmem:[#allocation20 + $0x7d8] sm:$0xff]
    %v3907 = vld [vmem:[#allocation20 + $0x7e0] sm:$0xff]
    %v3908 = vld [vmem:[#allocation20 + $0x7e8] sm:$0xff]
    %v3909 = vld [vmem:[#allocation20 + $0x7f0] sm:$0xff]
    %v3910 = vld [vmem:[#allocation20 + $0x7f8] sm:$0xff]
    %v3911 = vld [vmem:[#allocation22] sm:$0x3]
    %v3913 = vlaneseq
    %v3914 = vshrl.u32 %v3913, 7
    %v3915 = vsub.s32 0, %v3914
    %v3916 = vrot.slane %v3911, %v3915
    %v3917 = vlaneseq
    %v3918 = vshrl.u32 %v3917, 7
    %v3919 = vsub.s32 1, %v3918
    %v3920 = vrot.slane %v3911, %v3919
    %3923 = vmatprep.subr.mxu0 %v3686
    %3924 = vmatpush1.msra.mxu0 %v3685
    %3925 = vmatprep.subr.mxu0 %v3684
    %3926 = vmatpush1.msra.mxu0 %v3683
    %3927 = vmatprep.subr.mxu0 %v3682
    %3928 = vmatpush1.msra.mxu0 %v3681
    %3929 = vmatprep.subr.mxu0 %v3680
    %3930 = vmatpush1.msra.mxu0 %v3679
    %3931 = vmatprep.subr.mxu0 %v3678
    %3932 = vmatpush1.msra.mxu0 %v3677
    %3933 = vmatprep.subr.mxu0 %v3676
    %3934 = vmatpush1.msra.mxu0 %v3675
    %3935 = vmatprep.subr.mxu0 %v3674
    %3936 = vmatpush1.msra.mxu0 %v3673
    %3937 = vmatprep.subr.mxu0 %v3672
    %3938 = vmatpush1.msra.mxu0 %v3671
    %3939 = vmatprep.subr.mxu0 %v3670
    %3940 = vmatpush1.msra.mxu0 %v3669
    %3941 = vmatprep.subr.mxu0 %v3668
    %3942 = vmatpush1.msra.mxu0 %v3667
    %3943 = vmatprep.subr.mxu0 %v3666
    %3944 = vmatpush1.msra.mxu0 %v3665
    %3945 = vmatprep.subr.mxu0 %v3664
    %3946 = vmatpush1.msra.mxu0 %v3663
    %3947 = vmatprep.subr.mxu0 %v3662
    %3948 = vmatpush1.msra.mxu0 %v3661
    %3949 = vmatprep.subr.mxu0 %v3660
    %3950 = vmatpush1.msra.mxu0 %v3659
    %3951 = vmatprep.subr.mxu0 %v3658
    %3952 = vmatpush1.msra.mxu0 %v3657
    %3953 = vmatprep.subr.mxu0 %v3656
    %3954 = vmatpush1.msra.mxu0 %v3655
    %3955 = vmatprep.subr.mxu0 %v3718
    %3956 = vmatpush2.msra.mxu0 %v3717
    %3957 = vmatprep.subr.mxu0 %v3716
    %3958 = vmatpush2.msra.mxu0 %v3715
    %3959 = vmatprep.subr.mxu0 %v3714
    %3960 = vmatpush2.msra.mxu0 %v3713
    %3961 = vmatprep.subr.mxu0 %v3712
    %3962 = vmatpush2.msra.mxu0 %v3711
    %3963 = vmatprep.subr.mxu0 %v3710
    %3964 = vmatpush2.msra.mxu0 %v3709
    %3965 = vmatprep.subr.mxu0 %v3708
    %3966 = vmatpush2.msra.mxu0 %v3707
    %3967 = vmatprep.subr.mxu0 %v3706
    %3968 = vmatpush2.msra.mxu0 %v3705
    %3969 = vmatprep.subr.mxu0 %v3704
    %3970 = vmatpush2.msra.mxu0 %v3703
    %3971 = vmatprep.subr.mxu0 %v3702
    %3972 = vmatpush2.msra.mxu0 %v3701
    %3973 = vmatprep.subr.mxu0 %v3700
    %3974 = vmatpush2.msra.mxu0 %v3699
    %3975 = vmatprep.subr.mxu0 %v3698
    %3976 = vmatpush2.msra.mxu0 %v3697
    %3977 = vmatprep.subr.mxu0 %v3696
    %3978 = vmatpush2.msra.mxu0 %v3695
    %3979 = vmatprep.subr.mxu0 %v3694
    %3980 = vmatpush2.msra.mxu0 %v3693
    %3981 = vmatprep.subr.mxu0 %v3692
    %3982 = vmatpush2.msra.mxu0 %v3691
    %3983 = vmatprep.subr.mxu0 %v3690
    %3984 = vmatpush2.msra.mxu0 %v3689
    %3985 = vmatprep.subr.mxu0 %v3688
    %3986 = vmatpush2.msra.mxu0 %v3687
    %3987 = vmatprep.mubr.f32.mxu0 %v3640
    %3988 = vmatmul.mubr.f32.gmra.mxu0 %v3639
    %v3989 = vpop.f32.mrf.mxu0
    %v3990 = vadd.f32 %v3916, %v3989
    %v3991 = vpop.f32.mrf.mxu0
    %v3992 = vadd.f32 %v3920, %v3991
    %3993 = vmatprep.mubr.f32.mxu0 %v3648
    %3994 = vmatmul.mubr.f32.gmra.mxu0 %v3647
    %v3995 = vpop.f32.mrf.mxu0
    %v3996 = vadd.f32 %v3916, %v3995
    %v3997 = vpop.f32.mrf.mxu0
    %v3998 = vadd.f32 %v3920, %v3997
    %3999 = vdwg.mxu0
    %4000 = vmatprep.subr.mxu0 %v3750
    %4001 = vmatpush1.msra.mxu0 %v3749
    %4002 = vmatprep.subr.mxu0 %v3748
    %4003 = vmatpush1.msra.mxu0 %v3747
    %4004 = vmatprep.subr.mxu0 %v3746
    %4005 = vmatpush1.msra.mxu0 %v3745
    %4006 = vmatprep.subr.mxu0 %v3744
    %4007 = vmatpush1.msra.mxu0 %v3743
    %4008 = vmatprep.subr.mxu0 %v3742
    %4009 = vmatpush1.msra.mxu0 %v3741
    %4010 = vmatprep.subr.mxu0 %v3740
    %4011 = vmatpush1.msra.mxu0 %v3739
    %4012 = vmatprep.subr.mxu0 %v3738
    %4013 = vmatpush1.msra.mxu0 %v3737
    %4014 = vmatprep.subr.mxu0 %v3736
    %4015 = vmatpush1.msra.mxu0 %v3735
    %4016 = vmatprep.subr.mxu0 %v3734
    %4017 = vmatpush1.msra.mxu0 %v3733
    %4018 = vmatprep.subr.mxu0 %v3732
    %4019 = vmatpush1.msra.mxu0 %v3731
    %4020 = vmatprep.subr.mxu0 %v3730
    %4021 = vmatpush1.msra.mxu0 %v3729
    %4022 = vmatprep.subr.mxu0 %v3728
    %4023 = vmatpush1.msra.mxu0 %v3727
    %4024 = vmatprep.subr.mxu0 %v3726
    %4025 = vmatpush1.msra.mxu0 %v3725
    %4026 = vmatprep.subr.mxu0 %v3724
    %4027 = vmatpush1.msra.mxu0 %v3723
    %4028 = vmatprep.subr.mxu0 %v3722
    %4029 = vmatpush1.msra.mxu0 %v3721
    %4030 = vmatprep.subr.mxu0 %v3720
    %4031 = vmatpush1.msra.mxu0 %v3719
    %4032 = vmatprep.subr.mxu0 %v3782
    %4033 = vmatpush2.msra.mxu0 %v3781
    %4034 = vmatprep.subr.mxu0 %v3780
    %4035 = vmatpush2.msra.mxu0 %v3779
    %4036 = vmatprep.subr.mxu0 %v3778
    %4037 = vmatpush2.msra.mxu0 %v3777
    %4038 = vmatprep.subr.mxu0 %v3776
    %4039 = vmatpush2.msra.mxu0 %v3775
    %4040 = vmatprep.subr.mxu0 %v3774
    %4041 = vmatpush2.msra.mxu0 %v3773
    %4042 = vmatprep.subr.mxu0 %v3772
    %4043 = vmatpush2.msra.mxu0 %v3771
    %4044 = vmatprep.subr.mxu0 %v3770
    %4045 = vmatpush2.msra.mxu0 %v3769
    %4046 = vmatprep.subr.mxu0 %v3768
    %4047 = vmatpush2.msra.mxu0 %v3767
    %4048 = vmatprep.subr.mxu0 %v3766
    %4049 = vmatpush2.msra.mxu0 %v3765
    %4050 = vmatprep.subr.mxu0 %v3764
    %4051 = vmatpush2.msra.mxu0 %v3763
    %4052 = vmatprep.subr.mxu0 %v3762
    %4053 = vmatpush2.msra.mxu0 %v3761
    %4054 = vmatprep.subr.mxu0 %v3760
    %4055 = vmatpush2.msra.mxu0 %v3759
    %4056 = vmatprep.subr.mxu0 %v3758
    %4057 = vmatpush2.msra.mxu0 %v3757
    %4058 = vmatprep.subr.mxu0 %v3756
    %4059 = vmatpush2.msra.mxu0 %v3755
    %4060 = vmatprep.subr.mxu0 %v3754
    %4061 = vmatpush2.msra.mxu0 %v3753
    %4062 = vmatprep.subr.mxu0 %v3752
    %4063 = vmatpush2.msra.mxu0 %v3751
    %4064 = vmatprep.mubr.f32.mxu0 %v3642
    %4065 = vmatmul.mubr.f32.gmra.mxu0 %v3641
    %v4066 = vpop.f32.mrf.mxu0
    %v4067 = vadd.f32 %v3990, %v4066
    %v4068 = vpop.f32.mrf.mxu0
    %v4069 = vadd.f32 %v3992, %v4068
    %4070 = vmatprep.mubr.f32.mxu0 %v3650
    %4071 = vmatmul.mubr.f32.gmra.mxu0 %v3649
    %v4072 = vpop.f32.mrf.mxu0
    %v4073 = vadd.f32 %v3996, %v4072
    %v4074 = vpop.f32.mrf.mxu0
    %v4075 = vadd.f32 %v3998, %v4074
    %4076 = vdwg.mxu0
    %4077 = vmatprep.subr.mxu0 %v3814
    %4078 = vmatpush1.msra.mxu0 %v3813
    %4079 = vmatprep.subr.mxu0 %v3812
    %4080 = vmatpush1.msra.mxu0 %v3811
    %4081 = vmatprep.subr.mxu0 %v3810
    %4082 = vmatpush1.msra.mxu0 %v3809
    %4083 = vmatprep.subr.mxu0 %v3808
    %4084 = vmatpush1.msra.mxu0 %v3807
    %4085 = vmatprep.subr.mxu0 %v3806
    %4086 = vmatpush1.msra.mxu0 %v3805
    %4087 = vmatprep.subr.mxu0 %v3804
    %4088 = vmatpush1.msra.mxu0 %v3803
    %4089 = vmatprep.subr.mxu0 %v3802
    %4090 = vmatpush1.msra.mxu0 %v3801
    %4091 = vmatprep.subr.mxu0 %v3800
    %4092 = vmatpush1.msra.mxu0 %v3799
    %4093 = vmatprep.subr.mxu0 %v3798
    %4094 = vmatpush1.msra.mxu0 %v3797
    %4095 = vmatprep.subr.mxu0 %v3796
    %4096 = vmatpush1.msra.mxu0 %v3795
    %4097 = vmatprep.subr.mxu0 %v3794
    %4098 = vmatpush1.msra.mxu0 %v3793
    %4099 = vmatprep.subr.mxu0 %v3792
    %4100 = vmatpush1.msra.mxu0 %v3791
    %4101 = vmatprep.subr.mxu0 %v3790
    %4102 = vmatpush1.msra.mxu0 %v3789
    %4103 = vmatprep.subr.mxu0 %v3788
    %4104 = vmatpush1.msra.mxu0 %v3787
    %4105 = vmatprep.subr.mxu0 %v3786
    %4106 = vmatpush1.msra.mxu0 %v3785
    %4107 = vmatprep.subr.mxu0 %v3784
    %4108 = vmatpush1.msra.mxu0 %v3783
    %4109 = vmatprep.subr.mxu0 %v3846
    %4110 = vmatpush2.msra.mxu0 %v3845
    %4111 = vmatprep.subr.mxu0 %v3844
    %4112 = vmatpush2.msra.mxu0 %v3843
    %4113 = vmatprep.subr.mxu0 %v3842
    %4114 = vmatpush2.msra.mxu0 %v3841
    %4115 = vmatprep.subr.mxu0 %v3840
    %4116 = vmatpush2.msra.mxu0 %v3839
    %4117 = vmatprep.subr.mxu0 %v3838
    %4118 = vmatpush2.msra.mxu0 %v3837
    %4119 = vmatprep.subr.mxu0 %v3836
    %4120 = vmatpush2.msra.mxu0 %v3835
    %4121 = vmatprep.subr.mxu0 %v3834
    %4122 = vmatpush2.msra.mxu0 %v3833
    %4123 = vmatprep.subr.mxu0 %v3832
    %4124 = vmatpush2.msra.mxu0 %v3831
    %4125 = vmatprep.subr.mxu0 %v3830
    %4126 = vmatpush2.msra.mxu0 %v3829
    %4127 = vmatprep.subr.mxu0 %v3828
    %4128 = vmatpush2.msra.mxu0 %v3827
    %4129 = vmatprep.subr.mxu0 %v3826
    %4130 = vmatpush2.msra.mxu0 %v3825
    %4131 = vmatprep.subr.mxu0 %v3824
    %4132 = vmatpush2.msra.mxu0 %v3823
    %4133 = vmatprep.subr.mxu0 %v3822
    %4134 = vmatpush2.msra.mxu0 %v3821
    %4135 = vmatprep.subr.mxu0 %v3820
    %4136 = vmatpush2.msra.mxu0 %v3819
    %4137 = vmatprep.subr.mxu0 %v3818
    %4138 = vmatpush2.msra.mxu0 %v3817
    %4139 = vmatprep.subr.mxu0 %v3816
    %4140 = vmatpush2.msra.mxu0 %v3815
    %4141 = vmatprep.mubr.f32.mxu0 %v3644
    %4142 = vmatmul.mubr.f32.gmra.mxu0 %v3643
    %v4143 = vpop.f32.mrf.mxu0
    %v4144 = vadd.f32 %v4067, %v4143
    %v4145 = vpop.f32.mrf.mxu0
    %v4146 = vadd.f32 %v4069, %v4145
    %4147 = vmatprep.mubr.f32.mxu0 %v3652
    %4148 = vmatmul.mubr.f32.gmra.mxu0 %v3651
    %v4149 = vpop.f32.mrf.mxu0
    %v4150 = vadd.f32 %v4073, %v4149
    %v4151 = vpop.f32.mrf.mxu0
    %v4152 = vadd.f32 %v4075, %v4151
    %4153 = vdwg.mxu0
    %4154 = vmatprep.subr.mxu0 %v3878
    %4155 = vmatpush1.msra.mxu0 %v3877
    %4156 = vmatprep.subr.mxu0 %v3876
    %4157 = vmatpush1.msra.mxu0 %v3875
    %4158 = vmatprep.subr.mxu0 %v3874
    %4159 = vmatpush1.msra.mxu0 %v3873
    %4160 = vmatprep.subr.mxu0 %v3872
    %4161 = vmatpush1.msra.mxu0 %v3871
    %4162 = vmatprep.subr.mxu0 %v3870
    %4163 = vmatpush1.msra.mxu0 %v3869
    %4164 = vmatprep.subr.mxu0 %v3868
    %4165 = vmatpush1.msra.mxu0 %v3867
    %4166 = vmatprep.subr.mxu0 %v3866
    %4167 = vmatpush1.msra.mxu0 %v3865
    %4168 = vmatprep.subr.mxu0 %v3864
    %4169 = vmatpush1.msra.mxu0 %v3863
    %4170 = vmatprep.subr.mxu0 %v3862
    %4171 = vmatpush1.msra.mxu0 %v3861
    %4172 = vmatprep.subr.mxu0 %v3860
    %4173 = vmatpush1.msra.mxu0 %v3859
    %4174 = vmatprep.subr.mxu0 %v3858
    %4175 = vmatpush1.msra.mxu0 %v3857
    %4176 = vmatprep.subr.mxu0 %v3856
    %4177 = vmatpush1.msra.mxu0 %v3855
    %4178 = vmatprep.subr.mxu0 %v3854
    %4179 = vmatpush1.msra.mxu0 %v3853
    %4180 = vmatprep.subr.mxu0 %v3852
    %4181 = vmatpush1.msra.mxu0 %v3851
    %4182 = vmatprep.subr.mxu0 %v3850
    %4183 = vmatpush1.msra.mxu0 %v3849
    %4184 = vmatprep.subr.mxu0 %v3848
    %4185 = vmatpush1.msra.mxu0 %v3847
    %4186 = vmatprep.subr.mxu0 %v3910
    %4187 = vmatpush2.msra.mxu0 %v3909
    %4188 = vmatprep.subr.mxu0 %v3908
    %4189 = vmatpush2.msra.mxu0 %v3907
    %4190 = vmatprep.subr.mxu0 %v3906
    %4191 = vmatpush2.msra.mxu0 %v3905
    %4192 = vmatprep.subr.mxu0 %v3904
    %4193 = vmatpush2.msra.mxu0 %v3903
    %4194 = vmatprep.subr.mxu0 %v3902
    %4195 = vmatpush2.msra.mxu0 %v3901
    %4196 = vmatprep.subr.mxu0 %v3900
    %4197 = vmatpush2.msra.mxu0 %v3899
    %4198 = vmatprep.subr.mxu0 %v3898
    %4199 = vmatpush2.msra.mxu0 %v3897
    %4200 = vmatprep.subr.mxu0 %v3896
    %4201 = vmatpush2.msra.mxu0 %v3895
    %4202 = vmatprep.subr.mxu0 %v3894
    %4203 = vmatpush2.msra.mxu0 %v3893
    %4204 = vmatprep.subr.mxu0 %v3892
    %4205 = vmatpush2.msra.mxu0 %v3891
    %4206 = vmatprep.subr.mxu0 %v3890
    %4207 = vmatpush2.msra.mxu0 %v3889
    %4208 = vmatprep.subr.mxu0 %v3888
    %4209 = vmatpush2.msra.mxu0 %v3887
    %4210 = vmatprep.subr.mxu0 %v3886
    %4211 = vmatpush2.msra.mxu0 %v3885
    %4212 = vmatprep.subr.mxu0 %v3884
    %4213 = vmatpush2.msra.mxu0 %v3883
    %4214 = vmatprep.subr.mxu0 %v3882
    %4215 = vmatpush2.msra.mxu0 %v3881
    %4216 = vmatprep.subr.mxu0 %v3880
    %4217 = vmatpush2.msra.mxu0 %v3879
    %4218 = vmatprep.mubr.f32.mxu0 %v3646
    %4219 = vmatmul.mubr.f32.gmra.mxu0 %v3645
    %v4220 = vpop.f32.mrf.mxu0
    %v4221 = vadd.f32 %v4144, %v4220
    %v4222 = vpop.f32.mrf.mxu0
    %v4223 = vadd.f32 %v4146, %v4222
    %4224 = vmatprep.mubr.f32.mxu0 %v3654
    %4225 = vmatmul.mubr.f32.gmra.mxu0 %v3653
    %v4226 = vpop.f32.mrf.mxu0
    %v4227 = vadd.f32 %v4150, %v4226
    %v4228 = vpop.f32.mrf.mxu0
    %v4229 = vadd.f32 %v4152, %v4228
    %4230 = vdwg.mxu0
    %4231 = vst [vmem:[#allocation23] sm:$0xff] %v4221
    %4232 = vst [vmem:[#allocation23 + $0x8] sm:$0xff] %v4223
    %4233 = vst [vmem:[#allocation23 + $0x10] sm:$0xff] %v4227
    %4234 = vst [vmem:[#allocation23 + $0x18] sm:$0xff] %v4229
    // Predicated region
    $region106: #{tpu_custom_call.1} parent=1 // pred_check
      _
    $region107: #{tpu_custom_call.1} parent=1 // pred_check_branch
      %4236 = sbr.rel (0) target = $region109
    $region108: #{tpu_custom_call.1} parent=1 // pred_region
      %s4238 = ssub.s32 512, 512
      %4239 = vsyncadd [#allocation4], %s4238
      %s4240 = sshll.u32 [#allocation23], 4
      %s4241 = int_to_ptr.vmem [resolvable:$true] %s4240
      %4246 = dma.vmem_to_hbm [thread:$0]  %s4241, 512, %s13, [#allocation4], 256, 256, 16
    $region109: #{tpu_custom_call.1} parent=1 // pred_fallthru
      _
    // Predicated region
    $region110: #{tpu_custom_call.1} parent=1 // pred_check
      _
    $region111: #{tpu_custom_call.1} parent=1 // pred_check_branch
      %4248 = sbr.rel (0) target = $region113
    $region112: #{tpu_custom_call.1} parent=1 // pred_region
      %s4250 = ssub.s32 256, 256
      %4251 = vsyncadd [#allocation25], %s4250
      %s4252 = sshll.u32 [#allocation24], 4
      %s4253 = int_to_ptr.vmem [resolvable:$true] %s4252
      %4258 = dma.vmem_to_hbm [thread:$0]  %s4253, 256, %s14, [#allocation25], 128, 128, 8
    $region113: #{tpu_custom_call.1} parent=1 // pred_fallthru
      _
    // Predicated region
    $region114: #{tpu_custom_call.1} parent=1 // pred_check
      _
    $region115: #{tpu_custom_call.1} parent=1 // pred_check_branch
      %4260 = sbr.rel (0) target = $region117
    $region116: #{tpu_custom_call.1} parent=1 // pred_region
      %4261 = dma.done [#allocation4], 512
    $region117: #{tpu_custom_call.1} parent=1 // pred_fallthru
      _
    // Predicated region
    $region118: #{tpu_custom_call.1} parent=1 // pred_check
      _
    $region119: #{tpu_custom_call.1} parent=1 // pred_check_branch
      %4263 = sbr.rel (0) target = $region121
    $region120: #{tpu_custom_call.1} parent=1 // pred_region
      %4264 = dma.done [#allocation25], 256
    $region121: #{tpu_custom_call.1} parent=1 // pred_fallthru
      _
    %4265 = vsyncpa [#allocation3], 1
    %4266 = vsyncpa [#allocation6], 1
    %4267 = vsyncpa [#allocation9], 1
    %4268 = vsyncpa [#allocation12], 1
    %4269 = vsyncpa [#allocation15], 1
    %4270 = vsyncpa [#allocation18], 1
    %4271 = vsyncpa [#allocation21], 1
    %4272 = vsyncpa [#allocation4], 1
    %4273 = vsyncpa [#allocation25], 1

</llo_original>
